<compile_context>
chip_gen: v5e
topology: v5e:2x2
jax: 0.10.0
libtpu: 0.0.40
codegen_flags: <defaults>
</compile_context>

<pallas_src>
import jax
import jax.numpy as jnp
import numpy as np
from jax.experimental import pallas as pl
from jax.experimental.pallas import tpu as pltpu


def _round_up(x, m):
    return ((x + m - 1) // m) * m


# --------------------- tiled batched GEMM (bf16 inputs, f32 accumulation) ---------------------

def _make_bmm_kernel(epilogue):
    def kernel(a_ref, b_ref, o_ref, acc_ref):
        @pl.when(pl.program_id(3) == 0)
        def _():
            acc_ref[...] = jnp.zeros_like(acc_ref)

        acc_ref[...] += jnp.dot(a_ref[0], b_ref[0],
                                preferred_element_type=jnp.float32)

        @pl.when(pl.program_id(3) == pl.num_programs(3) - 1)
        def _():
            o_ref[0] = epilogue(acc_ref[...]).astype(o_ref.dtype)

    return kernel


def pallas_bmm(a, b, *, epilogue=None, out_dtype=jnp.float32,
               tm=256, tn=256, tk=512, gemm_dtype=jnp.bfloat16):
    """Batched tiled matmul: a (P, M, K) @ b (P, K, N) -> (P, M, N)."""
    P, M, K = a.shape
    _, _, N = b.shape
    tm = min(tm, _round_up(M, 16))
    tn = min(tn, _round_up(N, 128))
    tk = min(tk, _round_up(K, 128))
    Mp, Kp, Np = _round_up(M, tm), _round_up(K, tk), _round_up(N, tn)
    a_p = jnp.pad(a, ((0, 0), (0, Mp - M), (0, Kp - K))).astype(gemm_dtype)
    b_p = jnp.pad(b, ((0, 0), (0, Kp - K), (0, Np - N))).astype(gemm_dtype)
    if epilogue is None:
        epilogue = lambda x: x
    out = pl.pallas_call(
        _make_bmm_kernel(epilogue),
        out_shape=jax.ShapeDtypeStruct((P, Mp, Np), out_dtype),
        grid=(P, Mp // tm, Np // tn, Kp // tk),
        in_specs=[pl.BlockSpec((1, tm, tk), lambda p, i, j, k: (p, i, k)),
                  pl.BlockSpec((1, tk, tn), lambda p, i, j, k: (p, k, j))],
        out_specs=pl.BlockSpec((1, tm, tn), lambda p, i, j, k: (p, i, j)),
        scratch_shapes=[pltpu.VMEM((tm, tn), jnp.float32)],
        compiler_params=pltpu.CompilerParams(
            dimension_semantics=("parallel", "parallel", "parallel", "arbitrary"),
            vmem_limit_bytes=32 * 1024 * 1024),
    )(a_p, b_p)
    return out[:, :M, :N]


# --------------------- fused finish(1x1 convT) + tanh + alpha blend ---------------------

def _finish_blend_kernel(alpha_ref, a_ref, b_ref, s_ref, o_ref, acc_ref):
    @pl.when(pl.program_id(3) == 0)
    def _():
        acc_ref[...] = jnp.zeros_like(acc_ref)

    acc_ref[...] += jnp.dot(a_ref[0], b_ref[0],
                            preferred_element_type=jnp.float32)

    @pl.when(pl.program_id(3) == pl.num_programs(3) - 1)
    def _():
        al = alpha_ref[0]
        o_ref[0] = (s_ref[0] * (1.0 - al)
                    + jnp.tanh(acc_ref[...]) * al).astype(o_ref.dtype)


def pallas_finish_blend(x, w, small_up, alpha, *, tm=256, tn=128, tk=512,
                        gemm_dtype=jnp.bfloat16):
    """out = small_up*(1-alpha) + tanh(x @ w)*alpha  (tanh + blend fused in GEMM epilogue).

    x: (M, K) f32, w: (K, C) f32, small_up: (M, C) f32, alpha scalar. Returns (M, C) f32."""
    M, K = x.shape
    _, C = w.shape
    tm = min(tm, _round_up(M, 16))
    tn = min(tn, _round_up(C, 128))
    tk = min(tk, _round_up(K, 128))
    Mp, Kp, Cp = _round_up(M, tm), _round_up(K, tk), _round_up(C, tn)
    x_p = jnp.pad(x, ((0, Mp - M), (0, Kp - K))).astype(gemm_dtype)[None]
    w_p = jnp.pad(w, ((0, Kp - K), (0, Cp - C))).astype(gemm_dtype)[None]
    s_p = jnp.pad(small_up, ((0, Mp - M), (0, Cp - C))).astype(jnp.float32)[None]
    a = jnp.asarray(alpha, jnp.float32).reshape(1)
    out = pl.pallas_call(
        _finish_blend_kernel,
        out_shape=jax.ShapeDtypeStruct((1, Mp, Cp), jnp.float32),
        grid=(1, Mp // tm, Cp // tn, Kp // tk),
        in_specs=[pl.BlockSpec(memory_space=pltpu.MemorySpace.SMEM),   # alpha (scalar path)
                  pl.BlockSpec((1, tm, tk), lambda p, i, j, k: (p, i, k)),
                  pl.BlockSpec((1, tk, tn), lambda p, i, j, k: (p, k, j)),
                  pl.BlockSpec((1, tm, tn), lambda p, i, j, k: (p, i, j))],
        out_specs=pl.BlockSpec((1, tm, tn), lambda p, i, j, k: (p, i, j)),
        scratch_shapes=[pltpu.VMEM((tm, tn), jnp.float32)],
        compiler_params=pltpu.CompilerParams(
            dimension_semantics=("parallel", "parallel", "parallel", "arbitrary"),
            vmem_limit_bytes=32 * 1024 * 1024),
    )(a, x_p, w_p, s_p)
    return out[0, :M, :C]


# --------------------- BatchNorm (training-mode stats) + ReLU, tiled ---------------------

def _colstats_kernel(x_ref, o_ref):
    @pl.when(pl.program_id(0) == 0)
    def _():
        o_ref[...] = jnp.zeros_like(o_ref)

    x = x_ref[...]
    sums = jnp.sum(x, axis=0, keepdims=True)          # single pass: sum
    sumsq = jnp.sum(x * x, axis=0, keepdims=True)     # and sum of squares
    o_ref[...] += jnp.concatenate([sums, sumsq], axis=0)


def pallas_channel_stats(x, tr=512):
    """x: (R, C) f32 -> (2, C) f32: row0 = per-channel sum, row1 = per-channel sum(x^2)."""
    R, C = x.shape
    tr = min(tr, _round_up(R, 8))
    Rp = _round_up(R, tr)
    xp = jnp.pad(x, ((0, Rp - R), (0, 0)))            # zero rows contribute nothing
    return pl.pallas_call(
        _colstats_kernel,
        out_shape=jax.ShapeDtypeStruct((2, C), jnp.float32),
        grid=(Rp // tr,),
        in_specs=[pl.BlockSpec((tr, C), lambda i: (i, 0))],
        out_specs=pl.BlockSpec((2, C), lambda i: (0, 0)),
        compiler_params=pltpu.CompilerParams(
            dimension_semantics=("arbitrary",)),
    )(xp)


def _scale_shift_relu_kernel(x_ref, s_ref, b_ref, o_ref):
    o_ref[...] = jnp.maximum(x_ref[...] * s_ref[...] + b_ref[...], 0.0)


def pallas_scale_shift_relu(x, scale, shift, tr=512):
    R, C = x.shape
    tr = min(tr, _round_up(R, 8))
    Rp = _round_up(R, tr)
    xp = jnp.pad(x, ((0, Rp - R), (0, 0)))
    out = pl.pallas_call(
        _scale_shift_relu_kernel,
        out_shape=jax.ShapeDtypeStruct((Rp, C), jnp.float32),
        grid=(Rp // tr,),
        in_specs=[pl.BlockSpec((tr, C), lambda i: (i, 0)),
                  pl.BlockSpec((1, C), lambda i: (0, 0)),
                  pl.BlockSpec((1, C), lambda i: (0, 0))],
        out_specs=pl.BlockSpec((tr, C), lambda i: (i, 0)),
        compiler_params=pltpu.CompilerParams(
            dimension_semantics=("parallel",)),
    )(xp, scale, shift)
    return out[:R]


def batchnorm_relu(y2d, gamma, beta, eps=1e-5):
    """PyTorch train-mode BatchNorm2d + ReLU over rows (rows = N*H*W, cols = C)."""
    R, C = y2d.shape
    stats = pallas_channel_stats(y2d)
    mean = stats[0] / R
    var = jnp.maximum(stats[1] / R - mean * mean, 0.0)    # biased var, f32
    inv = jax.lax.rsqrt(var + eps)
    scale = (gamma * inv).astype(jnp.float32).reshape(1, C)
    shift = (beta - mean * gamma * inv).astype(jnp.float32).reshape(1, C)
    return pallas_scale_shift_relu(y2d, scale, shift)


# --------------------- ConvTranspose2d(4, 2, 1) as 4 parity-phase GEMMs ---------------------

# For each output parity (row/col): the (padded-input offset, kernel tap) pairs contributing.
_PHASE_TAPS = (((1, 1), (0, 3)),   # parity 0: taps k=1 (offset 1), k=3 (offset 0)
               ((2, 0), (1, 2)))   # parity 1: taps k=0 (offset 2), k=2 (offset 1)


def _convT_phase_operands(x_nhwc, w_pt):
    """Returns A: (4, N*H*W, 4*Cin) patches and B: (4, 4*Cin, Cout) weights.

    Phase order p = 2*py + px (py/px = output row/col parity).  Each phase is an
    exact 2x2-tap slice of ConvTranspose2d(k=4, s=2, p=1); no structural zeros."""
    N, H, W, Cin = x_nhwc.shape
    xp = jnp.pad(x_nhwc, ((0, 0), (1, 1), (1, 1), (0, 0)))
    patches, weights = [], []
    for py in (0, 1):
        for px in (0, 1):
            cols, wrows = [], []
            for dy, ky in _PHASE_TAPS[py]:
                for dx, kx in _PHASE_TAPS[px]:
                    cols.append(xp[:, dy:dy + H, dx:dx + W, :])
                    wrows.append(w_pt[:, :, ky, kx])                 # (Cin, Cout)
            patches.append(jnp.concatenate(cols, axis=-1).reshape(N * H * W, 4 * Cin))
            weights.append(jnp.concatenate(wrows, axis=0))           # (4*Cin, Cout)
    return jnp.stack(patches, 0), jnp.stack(weights, 0)
    # TODO(synk): long-term, form these patches in VMEM from overlapping input blocks
    # instead of materializing the im2col matrix in HBM.


# --------------------- model ---------------------

def init_params(key, nc, nz, ngf):
    ch = [ngf * 16, ngf * 8, ngf * 4, ngf * 2, ngf]
    in_ch = [nz] + ch[:-1]
    keys = jax.random.split(key, 10)
    params = {"blocks": [], "finish": []}
    for i in range(5):
        w = 0.02 * jax.random.normal(keys[i], (in_ch[i], ch[i], 4, 4), jnp.float32)
        gamma = jnp.ones((ch[i],), jnp.float32)     # BatchNorm2d default init
        beta = jnp.zeros((ch[i],), jnp.float32)
        params["blocks"].append((w, gamma, beta))
        fw = 0.02 * jax.random.normal(keys[5 + i], (ch[i], nc, 1, 1), jnp.float32)
        params["finish"].append(fw)
    return params


def _apply_block0(params, z):
    # ConvTranspose2d(nz, ngf*16, 4, 1, 0) on a 1x1 input == one GEMM.
    w0, g0, b0 = params["blocks"][0]
    nz_, C0 = w0.shape[0], w0.shape[1]
    N = z.shape[0]
    y = pallas_bmm(z.reshape(1, N, nz_), w0.reshape(1, nz_, C0 * 16))[0]   # (N, C0*16)
    y = y.reshape(N, C0, 4, 4).transpose(0, 2, 3, 1)                       # NHWC
    y = batchnorm_relu(y.reshape(N * 16, C0), g0, b0)
    return y.reshape(N, 4, 4, C0)


def _apply_block(params, x_nhwc, i):
    w, g, b = params["blocks"][i]
    Cout = w.shape[1]
    N, H, W, _ = x_nhwc.shape
    A, B = _convT_phase_operands(x_nhwc, w)
    y = pallas_bmm(A, B)                                     # (4, N*H*W, Cout) f32
    y = batchnorm_relu(y.reshape(4 * N * H * W, Cout), g, b)
    # interleave the 4 parity phases back into (N, 2H, 2W, Cout)
    y = y.reshape(2, 2, N, H, W, Cout).transpose(2, 3, 0, 4, 1, 5)
    return y.reshape(N, 2 * H, 2 * W, Cout)


def _apply_finish(params, x_nhwc, i):
    # 1x1 convT + tanh == GEMM with tanh fused into the epilogue.  pallas_bmm pads
    # nc up to 128 internally so the output store is lane-dense (unmasked vst).
    fw = params["finish"][i]
    Cin, ncc = fw.shape[0], fw.shape[1]
    N, H, W, _ = x_nhwc.shape
    y = pallas_bmm(x_nhwc.reshape(1, N * H * W, Cin),
                   fw.reshape(1, Cin, ncc),
                   epilogue=jnp.tanh)[0]
    return y.reshape(N, H, W, ncc)


def generator_forward(params, z, n, alpha):
    """z: (N, nz, 1, 1) NCHW.  Returns (N, nc, H_out, W_out) NCHW, like the PyTorch module."""
    x = _apply_block0(params, z)
    for i in range(1, n):
        x = _apply_block(params, x, i)
    if n > 0:
        small = _apply_finish(params, x, n - 1)              # (N, H, W, nc)
        Nb, H, W, ncc = small.shape
        # nearest-neighbor 2x upsample (torchvision NEAREST) == pixel repeat; nc-channel
        # tensor is tiny, done in glue.
        # TODO(synk): fuse this 2x upsample into the blend epilogue via a block index_map.
        small_up = jnp.broadcast_to(
            small[:, :, None, :, None, :], (Nb, H, 2, W, 2, ncc)
        ).reshape(Nb, 2 * H, 2 * W, ncc)
        y_big = _apply_block(params, x, n)                   # (N, 2H, 2W, C_n)
        fw = params["finish"][n]
        Cin = fw.shape[0]
        M = Nb * 2 * H * 2 * W
        # finish[n] (tanh) + alpha blend fused into one GEMM epilogue: the "big"
        # finish output is never round-tripped through HBM.
        out = pallas_finish_blend(y_big.reshape(M, Cin),
                                  fw.reshape(Cin, ncc),
                                  small_up.reshape(M, ncc),
                                  alpha)
        out = out.reshape(Nb, 2 * H, 2 * W, ncc)
    else:
        out = _apply_finish(params, x, 0)
    return out.transpose(0, 3, 1, 2)                         # NHWC -> NCHW


# --------------------- pure-JAX f32 reference (for verification) ---------------------

def _ref_convT(x, w, stride, pad):
    k = w.shape[2]
    w_conv = jnp.flip(w, (2, 3)).transpose(1, 0, 2, 3)       # (Cout, Cin, k, k)
    return jax.lax.conv_general_dilated(
        x, w_conv, window_strides=(1, 1),
        padding=[(k - 1 - pad, k - 1 - pad)] * 2,
        lhs_dilation=(stride, stride),
        dimension_numbers=("NCHW", "OIHW", "NCHW"),
        precision=jax.lax.Precision.HIGHEST)


def _ref_bn_relu(x, g, b):
    mean = x.mean(axis=(0, 2, 3), keepdims=True)
    var = ((x - mean) ** 2).mean(axis=(0, 2, 3), keepdims=True)
    xn = (x - mean) / jnp.sqrt(var + 1e-5)
    return jnp.maximum(xn * g.reshape(1, -1, 1, 1) + b.reshape(1, -1, 1, 1), 0.0)


def _ref_finish(x, fw):
    return jnp.tanh(_ref_convT(x, fw, 1, 0))


def reference_forward(params, z, n, alpha):
    w, g, b = params["blocks"][0]
    x = _ref_bn_relu(_ref_convT(z, w, 1, 0), g, b)
    for i in range(1, n):
        w, g, b = params["blocks"][i]
        x = _ref_bn_relu(_ref_convT(x, w, 2, 1), g, b)
    if n > 0:
        small = _ref_finish(x, params["finish"][n - 1])
        small = jnp.repeat(jnp.repeat(small, 2, axis=2), 2, axis=3)
        w, g, b = params["blocks"][n]
        big = _ref_finish(_ref_bn_relu(_ref_convT(x, w, 2, 1), g, b), params["finish"][n])
        return small * (1.0 - alpha) + big * alpha
    return _ref_finish(x, params["finish"][0])


# --------------------- main ---------------------

if __name__ == "__main__":
    nc, nz, ngf = 3, 8, 4
    batch = 2

    key = jax.random.PRNGKey(0)
    kp, kz = jax.random.split(key)
    params = init_params(kp, nc, nz, ngf)
    z = jax.random.normal(kz, (batch, nz, 1, 1), jnp.float32)

    fwd = jax.jit(generator_forward, static_argnames=("n",))

    # Progressive stage n=1: blocks[0]; blend(upsampled finish[0], finish[1](blocks[1])).
    out1 = jax.block_until_ready(fwd(params, z, n=1, alpha=0.3))
    assert out1.shape == (batch, nc, 8, 8), out1.shape
    ref1 = reference_forward(params, z, 1, 0.3)
    # bf16 MXU inputs (f32 accumulation) -> slightly looser tolerance than pure f32.
    np.testing.assert_allclose(np.asarray(out1), np.asarray(ref1), atol=2e-2, rtol=2e-2)

    # Progressive stage n=2 exercises a deeper stack of conv/BN/finish kernels.
    out2 = jax.block_until_ready(fwd(params, z, n=2, alpha=0.7))
    assert out2.shape == (batch, nc, 16, 16), out2.shape
    ref2 = reference_forward(params, z, 2, 0.7)
    np.testing.assert_allclose(np.asarray(out2), np.asarray(ref2), atol=2e-2, rtol=2e-2)

    print("KERNEL_OK")
</pallas_src>

<mosaic_0001>
module attributes {stable_mosaic.version = 11 : i64} {
  func.func @kernel(%arg0: i32, %arg1: i32, %arg2: i32, %arg3: i32, %arg4: memref<1x16x128xbf16, #tpu.memory_space<vmem>>, %arg5: memref<1x128x256xbf16, #tpu.memory_space<vmem>>, %arg6: memref<1x16x256xf32, #tpu.memory_space<vmem>>, %arg7: memref<16x256xf32, #tpu.memory_space<vmem>>) attributes {dimension_semantics = [#tpu.dimension_semantics<parallel>, #tpu.dimension_semantics<parallel>, #tpu.dimension_semantics<parallel>, #tpu.dimension_semantics<arbitrary>], iteration_bounds = array<i64: 1, 1, 4, 1>, scalar_prefetch = 0 : i64, scratch_operands = 1 : i64, tpu.core_type = #tpu.core_type<tc>, window_params = [{transform_indices = @transform_0, window_bounds = array<i64: 1, 16, 128>}, {transform_indices = @transform_1, window_bounds = array<i64: 1, 128, 256>}, {transform_indices = @transform_2, window_bounds = array<i64: 1, 16, 256>}]} {
    %c0_i32 = arith.constant 0 : i32
    %0 = arith.cmpi eq, %arg3, %c0_i32 : i32
    %1 = arith.extui %0 : i1 to i32
    %c0_i32_0 = arith.constant 0 : i32
    %2 = arith.cmpi ne, %1, %c0_i32_0 : i32
    scf.if %2 {
      %cst_12 = arith.constant 0.000000e+00 : f32
      %14 = vector.broadcast %cst_12 : f32 to vector<16x256xf32>
      %c0_13 = arith.constant 0 : index
      %c0_14 = arith.constant 0 : index
      %15 = vector.load %arg7[%c0_13, %c0_14] : memref<16x256xf32, #tpu.memory_space<vmem>>, vector<16x256xf32>
      tpu.vector_store %arg7[%c0_13, %c0_14], %14 {strides = array<i32>} : memref<16x256xf32, #tpu.memory_space<vmem>>, vector<16x256xf32>,
    } else {
    }
    %c0 = arith.constant 0 : index
    %c0_1 = arith.constant 0 : index
    %3 = vector.load %arg7[%c0, %c0_1] : memref<16x256xf32, #tpu.memory_space<vmem>>, vector<16x256xf32>
    %c0_2 = arith.constant 0 : index
    %c0_3 = arith.constant 0 : index
    %c0_4 = arith.constant 0 : index
    %4 = vector.load %arg4[%c0_2, %c0_3, %c0_4] : memref<1x16x128xbf16, #tpu.memory_space<vmem>>, vector<1x16x128xbf16>
    %5 = vector.shape_cast %4 : vector<1x16x128xbf16> to vector<16x128xbf16>
    %c0_5 = arith.constant 0 : index
    %c0_6 = arith.constant 0 : index
    %c0_7 = arith.constant 0 : index
    %6 = vector.load %arg5[%c0_5, %c0_6, %c0_7] : memref<1x128x256xbf16, #tpu.memory_space<vmem>>, vector<1x128x256xbf16>
    %7 = vector.shape_cast %6 : vector<1x128x256xbf16> to vector<128x256xbf16>
    %cst = arith.constant dense<0.000000e+00> : vector<16x256xf32>
    %8 = tpu.matmul %5, %7, %cst {dimension_numbers = #tpu.dot_dimension_numbers<[1], [0], [0], [1], [0, 0, 1, 1], [], []>} : vector<16x128xbf16>, vector<128x256xbf16>, vector<16x256xf32> -> vector<16x256xf32>
    %9 = arith.addf %3, %8 : vector<16x256xf32>
    %c0_8 = arith.constant 0 : index
    %c0_9 = arith.constant 0 : index
    %10 = vector.load %arg7[%c0_8, %c0_9] : memref<16x256xf32, #tpu.memory_space<vmem>>, vector<16x256xf32>
    tpu.vector_store %arg7[%c0_8, %c0_9], %9 {strides = array<i32>} : memref<16x256xf32, #tpu.memory_space<vmem>>, vector<16x256xf32>,
    %c0_i32_10 = arith.constant 0 : i32
    %11 = arith.cmpi eq, %arg3, %c0_i32_10 : i32
    %12 = arith.extui %11 : i1 to i32
    %c0_i32_11 = arith.constant 0 : i32
    %13 = arith.cmpi ne, %12, %c0_i32_11 : i32
    scf.if %13 {
      %c0_12 = arith.constant 0 : index
      %c0_13 = arith.constant 0 : index
      %14 = vector.load %arg7[%c0_12, %c0_13] : memref<16x256xf32, #tpu.memory_space<vmem>>, vector<16x256xf32>
      %c0_14 = arith.constant 0 : index
      %c0_15 = arith.constant 0 : index
      %c0_16 = arith.constant 0 : index
      %15 = vector.load %arg6[%c0_14, %c0_15, %c0_16] : memref<1x16x256xf32, #tpu.memory_space<vmem>>, vector<1x16x256xf32>
      %16 = vector.shape_cast %15 : vector<1x16x256xf32> to vector<16x256xf32>
      %17 = vector.shape_cast %14 : vector<16x256xf32> to vector<1x16x256xf32>
      tpu.vector_store %arg6[%c0_14, %c0_15, %c0_16], %17 {strides = array<i32>} : memref<1x16x256xf32, #tpu.memory_space<vmem>>, vector<1x16x256xf32>,
    } else {
    }
    return
  }
  func.func @transform_0(%arg0: i32, %arg1: i32, %arg2: i32, %arg3: i32) -> (i32, i32, i32) {
    %c0_i32 = arith.constant 0 : i32
    return %arg0, %arg1, %arg3 : i32, i32, i32
  }
  func.func @transform_1(%arg0: i32, %arg1: i32, %arg2: i32, %arg3: i32) -> (i32, i32, i32) {
    %c0_i32 = arith.constant 0 : i32
    return %arg0, %arg3, %arg2 : i32, i32, i32
  }
  func.func @transform_2(%arg0: i32, %arg1: i32, %arg2: i32, %arg3: i32) -> (i32, i32, i32) {
    %c0_i32 = arith.constant 0 : i32
    return %arg0, %arg1, %arg2 : i32, i32, i32
  }
}

module attributes {stable_mosaic.version = 11 : i64} {
  func.func @_colstats_kernel(%arg0: i32, %arg1: memref<32x64xf32, #tpu.memory_space<vmem>>, %arg2: memref<2x64xf32, #tpu.memory_space<vmem>>) attributes {dimension_semantics = [#tpu.dimension_semantics<arbitrary>], iteration_bounds = array<i64: 1>, scalar_prefetch = 0 : i64, scratch_operands = 0 : i64, tpu.core_type = #tpu.core_type<tc>, window_params = [{transform_indices = @transform_0, window_bounds = array<i64: 32, 64>}, {pipeline_mode = #tpu.pipeline_mode<synchronous>, transform_indices = @transform_1, window_bounds = array<i64: 2, 64>}]} {
    %c0_i32 = arith.constant 0 : i32
    %0 = arith.cmpi eq, %arg0, %c0_i32 : i32
    %1 = arith.extui %0 : i1 to i32
    %c0_i32_0 = arith.constant 0 : i32
    %2 = arith.cmpi ne, %1, %c0_i32_0 : i32
    scf.if %2 {
      %cst_7 = arith.constant 0.000000e+00 : f32
      %13 = vector.broadcast %cst_7 : f32 to vector<2x64xf32>
      %c0_8 = arith.constant 0 : index
      %c0_9 = arith.constant 0 : index
      %14 = vector.load %arg2[%c0_8, %c0_9] : memref<2x64xf32, #tpu.memory_space<vmem>>, vector<2x64xf32>
      tpu.vector_store %arg2[%c0_8, %c0_9], %13 {strides = array<i32>} : memref<2x64xf32, #tpu.memory_space<vmem>>, vector<2x64xf32>,
    } else {
    }
    %c0 = arith.constant 0 : index
    %c0_1 = arith.constant 0 : index
    %3 = vector.load %arg1[%c0, %c0_1] : memref<32x64xf32, #tpu.memory_space<vmem>>, vector<32x64xf32>
    %cst = arith.constant dense<0.000000e+00> : vector<64xf32>
    %4 = vector.multi_reduction <add>, %3, %cst [0] : vector<32x64xf32> to vector<64xf32>
    %5 = vector.shape_cast %4 : vector<64xf32> to vector<1x64xf32>
    %6 = arith.mulf %3, %3 : vector<32x64xf32>
    %cst_2 = arith.constant dense<0.000000e+00> : vector<64xf32>
    %7 = vector.multi_reduction <add>, %6, %cst_2 [0] : vector<32x64xf32> to vector<64xf32>
    %8 = vector.shape_cast %7 : vector<64xf32> to vector<1x64xf32>
    %c0_3 = arith.constant 0 : index
    %c0_4 = arith.constant 0 : index
    %9 = vector.load %arg2[%c0_3, %c0_4] : memref<2x64xf32, #tpu.memory_space<vmem>>, vector<2x64xf32>
    %10 = tpu.concatenate %5, %8 in 0 : vector<1x64xf32>, vector<1x64xf32> -> vector<2x64xf32>
    %11 = arith.addf %9, %10 : vector<2x64xf32>
    %c0_5 = arith.constant 0 : index
    %c0_6 = arith.constant 0 : index
    %12 = vector.load %arg2[%c0_5, %c0_6] : memref<2x64xf32, #tpu.memory_space<vmem>>, vector<2x64xf32>
    tpu.vector_store %arg2[%c0_5, %c0_6], %11 {strides = array<i32>} : memref<2x64xf32, #tpu.memory_space<vmem>>, vector<2x64xf32>,
    return
  }
  func.func @transform_0(%arg0: i32) -> (i32, i32) {
    %c0_i32 = arith.constant 0 : i32
    %c0_i32_0 = arith.constant 0 : i32
    return %arg0, %c0_i32 : i32, i32
  }
  func.func @transform_1(%arg0: i32) -> (i32, i32) {
    %c0_i32 = arith.constant 0 : i32
    %c0_i32_0 = arith.constant 0 : i32
    %c0_i32_1 = arith.constant 0 : i32
    return %c0_i32, %c0_i32_0 : i32, i32
  }
}

module attributes {stable_mosaic.version = 11 : i64} {
  func.func @_scale_shift_relu_kernel(%arg0: i32, %arg1: memref<32x64xf32, #tpu.memory_space<vmem>>, %arg2: memref<1x64xf32, #tpu.memory_space<vmem>>, %arg3: memref<1x64xf32, #tpu.memory_space<vmem>>, %arg4: memref<32x64xf32, #tpu.memory_space<vmem>>) attributes {dimension_semantics = [#tpu.dimension_semantics<parallel>], iteration_bounds = array<i64: 1>, scalar_prefetch = 0 : i64, scratch_operands = 0 : i64, tpu.core_type = #tpu.core_type<tc>, window_params = [{transform_indices = @transform_0, window_bounds = array<i64: 32, 64>}, {pipeline_mode = #tpu.pipeline_mode<synchronous>, transform_indices = @transform_1, window_bounds = array<i64: 1, 64>}, {pipeline_mode = #tpu.pipeline_mode<synchronous>, transform_indices = @transform_2, window_bounds = array<i64: 1, 64>}, {transform_indices = @transform_3, window_bounds = array<i64: 32, 64>}]} {
    %c0 = arith.constant 0 : index
    %c0_0 = arith.constant 0 : index
    %0 = vector.load %arg1[%c0, %c0_0] : memref<32x64xf32, #tpu.memory_space<vmem>>, vector<32x64xf32>
    %c0_1 = arith.constant 0 : index
    %c0_2 = arith.constant 0 : index
    %1 = vector.load %arg2[%c0_1, %c0_2] : memref<1x64xf32, #tpu.memory_space<vmem>>, vector<1x64xf32>
    %2 = vector.broadcast %1 : vector<1x64xf32> to vector<32x64xf32>
    %3 = arith.mulf %0, %2 : vector<32x64xf32>
    %c0_3 = arith.constant 0 : index
    %c0_4 = arith.constant 0 : index
    %4 = vector.load %arg3[%c0_3, %c0_4] : memref<1x64xf32, #tpu.memory_space<vmem>>, vector<1x64xf32>
    %5 = vector.broadcast %4 : vector<1x64xf32> to vector<32x64xf32>
    %6 = arith.addf %3, %5 : vector<32x64xf32>
    %cst = arith.constant 0.000000e+00 : f32
    %7 = vector.broadcast %cst : f32 to vector<32x64xf32>
    %8 = arith.maximumf %6, %7 : vector<32x64xf32>
    %c0_5 = arith.constant 0 : index
    %c0_6 = arith.constant 0 : index
    %9 = vector.load %arg4[%c0_5, %c0_6] : memref<32x64xf32, #tpu.memory_space<vmem>>, vector<32x64xf32>
    tpu.vector_store %arg4[%c0_5, %c0_6], %8 {strides = array<i32>} : memref<32x64xf32, #tpu.memory_space<vmem>>, vector<32x64xf32>,
    return
  }
  func.func @transform_0(%arg0: i32) -> (i32, i32) {
    %c0_i32 = arith.constant 0 : i32
    %c0_i32_0 = arith.constant 0 : i32
    return %arg0, %c0_i32 : i32, i32
  }
  func.func @transform_1(%arg0: i32) -> (i32, i32) {
    %c0_i32 = arith.constant 0 : i32
    %c0_i32_0 = arith.constant 0 : i32
    %c0_i32_1 = arith.constant 0 : i32
    return %c0_i32, %c0_i32_0 : i32, i32
  }
  func.func @transform_2(%arg0: i32) -> (i32, i32) {
    %c0_i32 = arith.constant 0 : i32
    %c0_i32_0 = arith.constant 0 : i32
    %c0_i32_1 = arith.constant 0 : i32
    return %c0_i32, %c0_i32_0 : i32, i32
  }
  func.func @transform_3(%arg0: i32) -> (i32, i32) {
    %c0_i32 = arith.constant 0 : i32
    %c0_i32_0 = arith.constant 0 : i32
    return %arg0, %c0_i32 : i32, i32
  }
}

module attributes {stable_mosaic.version = 11 : i64} {
  func.func @kernel(%arg0: i32, %arg1: i32, %arg2: i32, %arg3: i32, %arg4: memref<1x32x256xbf16, #tpu.memory_space<vmem>>, %arg5: memref<1x256x128xbf16, #tpu.memory_space<vmem>>, %arg6: memref<1x32x128xf32, #tpu.memory_space<vmem>>, %arg7: memref<32x128xf32, #tpu.memory_space<vmem>>) attributes {dimension_semantics = [#tpu.dimension_semantics<parallel>, #tpu.dimension_semantics<parallel>, #tpu.dimension_semantics<parallel>, #tpu.dimension_semantics<arbitrary>], iteration_bounds = array<i64: 4, 1, 1, 1>, scalar_prefetch = 0 : i64, scratch_operands = 1 : i64, tpu.core_type = #tpu.core_type<tc>, window_params = [{transform_indices = @transform_0, window_bounds = array<i64: 1, 32, 256>}, {transform_indices = @transform_1, window_bounds = array<i64: 1, 256, 128>}, {transform_indices = @transform_2, window_bounds = array<i64: 1, 32, 128>}]} {
    %c0_i32 = arith.constant 0 : i32
    %0 = arith.cmpi eq, %arg3, %c0_i32 : i32
    %1 = arith.extui %0 : i1 to i32
    %c0_i32_0 = arith.constant 0 : i32
    %2 = arith.cmpi ne, %1, %c0_i32_0 : i32
    scf.if %2 {
      %cst_12 = arith.constant 0.000000e+00 : f32
      %14 = vector.broadcast %cst_12 : f32 to vector<32x128xf32>
      %c0_13 = arith.constant 0 : index
      %c0_14 = arith.constant 0 : index
      %15 = vector.load %arg7[%c0_13, %c0_14] : memref<32x128xf32, #tpu.memory_space<vmem>>, vector<32x128xf32>
      tpu.vector_store %arg7[%c0_13, %c0_14], %14 {strides = array<i32>} : memref<32x128xf32, #tpu.memory_space<vmem>>, vector<32x128xf32>,
    } else {
    }
    %c0 = arith.constant 0 : index
    %c0_1 = arith.constant 0 : index
    %3 = vector.load %arg7[%c0, %c0_1] : memref<32x128xf32, #tpu.memory_space<vmem>>, vector<32x128xf32>
    %c0_2 = arith.constant 0 : index
    %c0_3 = arith.constant 0 : index
    %c0_4 = arith.constant 0 : index
    %4 = vector.load %arg4[%c0_2, %c0_3, %c0_4] : memref<1x32x256xbf16, #tpu.memory_space<vmem>>, vector<1x32x256xbf16>
    %5 = vector.shape_cast %4 : vector<1x32x256xbf16> to vector<32x256xbf16>
    %c0_5 = arith.constant 0 : index
    %c0_6 = arith.constant 0 : index
    %c0_7 = arith.constant 0 : index
    %6 = vector.load %arg5[%c0_5, %c0_6, %c0_7] : memref<1x256x128xbf16, #tpu.memory_space<vmem>>, vector<1x256x128xbf16>
    %7 = vector.shape_cast %6 : vector<1x256x128xbf16> to vector<256x128xbf16>
    %cst = arith.constant dense<0.000000e+00> : vector<32x128xf32>
    %8 = tpu.matmul %5, %7, %cst {dimension_numbers = #tpu.dot_dimension_numbers<[1], [0], [0], [1], [0, 0, 1, 1], [], []>} : vector<32x256xbf16>, vector<256x128xbf16>, vector<32x128xf32> -> vector<32x128xf32>
    %9 = arith.addf %3, %8 : vector<32x128xf32>
    %c0_8 = arith.constant 0 : index
    %c0_9 = arith.constant 0 : index
    %10 = vector.load %arg7[%c0_8, %c0_9] : memref<32x128xf32, #tpu.memory_space<vmem>>, vector<32x128xf32>
    tpu.vector_store %arg7[%c0_8, %c0_9], %9 {strides = array<i32>} : memref<32x128xf32, #tpu.memory_space<vmem>>, vector<32x128xf32>,
    %c0_i32_10 = arith.constant 0 : i32
    %11 = arith.cmpi eq, %arg3, %c0_i32_10 : i32
    %12 = arith.extui %11 : i1 to i32
    %c0_i32_11 = arith.constant 0 : i32
    %13 = arith.cmpi ne, %12, %c0_i32_11 : i32
    scf.if %13 {
      %c0_12 = arith.constant 0 : index
      %c0_13 = arith.constant 0 : index
      %14 = vector.load %arg7[%c0_12, %c0_13] : memref<32x128xf32, #tpu.memory_space<vmem>>, vector<32x128xf32>
      %c0_14 = arith.constant 0 : index
      %c0_15 = arith.constant 0 : index
      %c0_16 = arith.constant 0 : index
      %15 = vector.load %arg6[%c0_14, %c0_15, %c0_16] : memref<1x32x128xf32, #tpu.memory_space<vmem>>, vector<1x32x128xf32>
      %16 = vector.shape_cast %15 : vector<1x32x128xf32> to vector<32x128xf32>
      %17 = vector.shape_cast %14 : vector<32x128xf32> to vector<1x32x128xf32>
      tpu.vector_store %arg6[%c0_14, %c0_15, %c0_16], %17 {strides = array<i32>} : memref<1x32x128xf32, #tpu.memory_space<vmem>>, vector<1x32x128xf32>,
    } else {
    }
    return
  }
  func.func @transform_0(%arg0: i32, %arg1: i32, %arg2: i32, %arg3: i32) -> (i32, i32, i32) {
    %c0_i32 = arith.constant 0 : i32
    return %arg0, %arg1, %arg3 : i32, i32, i32
  }
  func.func @transform_1(%arg0: i32, %arg1: i32, %arg2: i32, %arg3: i32) -> (i32, i32, i32) {
    %c0_i32 = arith.constant 0 : i32
    return %arg0, %arg3, %arg2 : i32, i32, i32
  }
  func.func @transform_2(%arg0: i32, %arg1: i32, %arg2: i32, %arg3: i32) -> (i32, i32, i32) {
    %c0_i32 = arith.constant 0 : i32
    return %arg0, %arg1, %arg2 : i32, i32, i32
  }
}

module attributes {stable_mosaic.version = 11 : i64} {
  func.func @_scale_shift_relu_kernel(%arg0: i32, %arg1: memref<128x32xf32, #tpu.memory_space<vmem>>, %arg2: memref<1x32xf32, #tpu.memory_space<vmem>>, %arg3: memref<1x32xf32, #tpu.memory_space<vmem>>, %arg4: memref<128x32xf32, #tpu.memory_space<vmem>>) attributes {dimension_semantics = [#tpu.dimension_semantics<parallel>], iteration_bounds = array<i64: 1>, scalar_prefetch = 0 : i64, scratch_operands = 0 : i64, tpu.core_type = #tpu.core_type<tc>, window_params = [{transform_indices = @transform_0, window_bounds = array<i64: 128, 32>}, {pipeline_mode = #tpu.pipeline_mode<synchronous>, transform_indices = @transform_1, window_bounds = array<i64: 1, 32>}, {pipeline_mode = #tpu.pipeline_mode<synchronous>, transform_indices = @transform_2, window_bounds = array<i64: 1, 32>}, {transform_indices = @transform_3, window_bounds = array<i64: 128, 32>}]} {
    %c0 = arith.constant 0 : index
    %c0_0 = arith.constant 0 : index
    %0 = vector.load %arg1[%c0, %c0_0] : memref<128x32xf32, #tpu.memory_space<vmem>>, vector<128x32xf32>
    %c0_1 = arith.constant 0 : index
    %c0_2 = arith.constant 0 : index
    %1 = vector.load %arg2[%c0_1, %c0_2] : memref<1x32xf32, #tpu.memory_space<vmem>>, vector<1x32xf32>
    %2 = vector.broadcast %1 : vector<1x32xf32> to vector<128x32xf32>
    %3 = arith.mulf %0, %2 : vector<128x32xf32>
    %c0_3 = arith.constant 0 : index
    %c0_4 = arith.constant 0 : index
    %4 = vector.load %arg3[%c0_3, %c0_4] : memref<1x32xf32, #tpu.memory_space<vmem>>, vector<1x32xf32>
    %5 = vector.broadcast %4 : vector<1x32xf32> to vector<128x32xf32>
    %6 = arith.addf %3, %5 : vector<128x32xf32>
    %cst = arith.constant 0.000000e+00 : f32
    %7 = vector.broadcast %cst : f32 to vector<128x32xf32>
    %8 = arith.maximumf %6, %7 : vector<128x32xf32>
    %c0_5 = arith.constant 0 : index
    %c0_6 = arith.constant 0 : index
    %9 = vector.load %arg4[%c0_5, %c0_6] : memref<128x32xf32, #tpu.memory_space<vmem>>, vector<128x32xf32>
    tpu.vector_store %arg4[%c0_5, %c0_6], %8 {strides = array<i32>} : memref<128x32xf32, #tpu.memory_space<vmem>>, vector<128x32xf32>,
    return
  }
  func.func @transform_0(%arg0: i32) -> (i32, i32) {
    %c0_i32 = arith.constant 0 : i32
    %c0_i32_0 = arith.constant 0 : i32
    return %arg0, %c0_i32 : i32, i32
  }
  func.func @transform_1(%arg0: i32) -> (i32, i32) {
    %c0_i32 = arith.constant 0 : i32
    %c0_i32_0 = arith.constant 0 : i32
    %c0_i32_1 = arith.constant 0 : i32
    return %c0_i32, %c0_i32_0 : i32, i32
  }
  func.func @transform_2(%arg0: i32) -> (i32, i32) {
    %c0_i32 = arith.constant 0 : i32
    %c0_i32_0 = arith.constant 0 : i32
    %c0_i32_1 = arith.constant 0 : i32
    return %c0_i32, %c0_i32_0 : i32, i32
  }
  func.func @transform_3(%arg0: i32) -> (i32, i32) {
    %c0_i32 = arith.constant 0 : i32
    %c0_i32_0 = arith.constant 0 : i32
    return %arg0, %c0_i32 : i32, i32
  }
}

module attributes {stable_mosaic.version = 11 : i64} {
  func.func @_colstats_kernel(%arg0: i32, %arg1: memref<128x32xf32, #tpu.memory_space<vmem>>, %arg2: memref<2x32xf32, #tpu.memory_space<vmem>>) attributes {dimension_semantics = [#tpu.dimension_semantics<arbitrary>], iteration_bounds = array<i64: 1>, scalar_prefetch = 0 : i64, scratch_operands = 0 : i64, tpu.core_type = #tpu.core_type<tc>, window_params = [{transform_indices = @transform_0, window_bounds = array<i64: 128, 32>}, {pipeline_mode = #tpu.pipeline_mode<synchronous>, transform_indices = @transform_1, window_bounds = array<i64: 2, 32>}]} {
    %c0_i32 = arith.constant 0 : i32
    %0 = arith.cmpi eq, %arg0, %c0_i32 : i32
    %1 = arith.extui %0 : i1 to i32
    %c0_i32_0 = arith.constant 0 : i32
    %2 = arith.cmpi ne, %1, %c0_i32_0 : i32
    scf.if %2 {
      %cst_7 = arith.constant 0.000000e+00 : f32
      %13 = vector.broadcast %cst_7 : f32 to vector<2x32xf32>
      %c0_8 = arith.constant 0 : index
      %c0_9 = arith.constant 0 : index
      %14 = vector.load %arg2[%c0_8, %c0_9] : memref<2x32xf32, #tpu.memory_space<vmem>>, vector<2x32xf32>
      tpu.vector_store %arg2[%c0_8, %c0_9], %13 {strides = array<i32>} : memref<2x32xf32, #tpu.memory_space<vmem>>, vector<2x32xf32>,
    } else {
    }
    %c0 = arith.constant 0 : index
    %c0_1 = arith.constant 0 : index
    %3 = vector.load %arg1[%c0, %c0_1] : memref<128x32xf32, #tpu.memory_space<vmem>>, vector<128x32xf32>
    %cst = arith.constant dense<0.000000e+00> : vector<32xf32>
    %4 = vector.multi_reduction <add>, %3, %cst [0] : vector<128x32xf32> to vector<32xf32>
    %5 = vector.shape_cast %4 : vector<32xf32> to vector<1x32xf32>
    %6 = arith.mulf %3, %3 : vector<128x32xf32>
    %cst_2 = arith.constant dense<0.000000e+00> : vector<32xf32>
    %7 = vector.multi_reduction <add>, %6, %cst_2 [0] : vector<128x32xf32> to vector<32xf32>
    %8 = vector.shape_cast %7 : vector<32xf32> to vector<1x32xf32>
    %c0_3 = arith.constant 0 : index
    %c0_4 = arith.constant 0 : index
    %9 = vector.load %arg2[%c0_3, %c0_4] : memref<2x32xf32, #tpu.memory_space<vmem>>, vector<2x32xf32>
    %10 = tpu.concatenate %5, %8 in 0 : vector<1x32xf32>, vector<1x32xf32> -> vector<2x32xf32>
    %11 = arith.addf %9, %10 : vector<2x32xf32>
    %c0_5 = arith.constant 0 : index
    %c0_6 = arith.constant 0 : index
    %12 = vector.load %arg2[%c0_5, %c0_6] : memref<2x32xf32, #tpu.memory_space<vmem>>, vector<2x32xf32>
    tpu.vector_store %arg2[%c0_5, %c0_6], %11 {strides = array<i32>} : memref<2x32xf32, #tpu.memory_space<vmem>>, vector<2x32xf32>,
    return
  }
  func.func @transform_0(%arg0: i32) -> (i32, i32) {
    %c0_i32 = arith.constant 0 : i32
    %c0_i32_0 = arith.constant 0 : i32
    return %arg0, %c0_i32 : i32, i32
  }
  func.func @transform_1(%arg0: i32) -> (i32, i32) {
    %c0_i32 = arith.constant 0 : i32
    %c0_i32_0 = arith.constant 0 : i32
    %c0_i32_1 = arith.constant 0 : i32
    return %c0_i32, %c0_i32_0 : i32, i32
  }
}

module attributes {stable_mosaic.version = 11 : i64} {
  func.func @kernel(%arg0: i32, %arg1: i32, %arg2: i32, %arg3: i32, %arg4: memref<1x32x128xbf16, #tpu.memory_space<vmem>>, %arg5: memref<1x128x128xbf16, #tpu.memory_space<vmem>>, %arg6: memref<1x32x128xf32, #tpu.memory_space<vmem>>, %arg7: memref<32x128xf32, #tpu.memory_space<vmem>>) attributes {dimension_semantics = [#tpu.dimension_semantics<parallel>, #tpu.dimension_semantics<parallel>, #tpu.dimension_semantics<parallel>, #tpu.dimension_semantics<arbitrary>], iteration_bounds = array<i64: 1, 1, 1, 1>, scalar_prefetch = 0 : i64, scratch_operands = 1 : i64, tpu.core_type = #tpu.core_type<tc>, window_params = [{transform_indices = @transform_0, window_bounds = array<i64: 1, 32, 128>}, {transform_indices = @transform_1, window_bounds = array<i64: 1, 128, 128>}, {transform_indices = @transform_2, window_bounds = array<i64: 1, 32, 128>}]} {
    %c0_i32 = arith.constant 0 : i32
    %0 = arith.cmpi eq, %arg3, %c0_i32 : i32
    %1 = arith.extui %0 : i1 to i32
    %c0_i32_0 = arith.constant 0 : i32
    %2 = arith.cmpi ne, %1, %c0_i32_0 : i32
    scf.if %2 {
      %cst_12 = arith.constant 0.000000e+00 : f32
      %14 = vector.broadcast %cst_12 : f32 to vector<32x128xf32>
      %c0_13 = arith.constant 0 : index
      %c0_14 = arith.constant 0 : index
      %15 = vector.load %arg7[%c0_13, %c0_14] : memref<32x128xf32, #tpu.memory_space<vmem>>, vector<32x128xf32>
      tpu.vector_store %arg7[%c0_13, %c0_14], %14 {strides = array<i32>} : memref<32x128xf32, #tpu.memory_space<vmem>>, vector<32x128xf32>,
    } else {
    }
    %c0 = arith.constant 0 : index
    %c0_1 = arith.constant 0 : index
    %3 = vector.load %arg7[%c0, %c0_1] : memref<32x128xf32, #tpu.memory_space<vmem>>, vector<32x128xf32>
    %c0_2 = arith.constant 0 : index
    %c0_3 = arith.constant 0 : index
    %c0_4 = arith.constant 0 : index
    %4 = vector.load %arg4[%c0_2, %c0_3, %c0_4] : memref<1x32x128xbf16, #tpu.memory_space<vmem>>, vector<1x32x128xbf16>
    %5 = vector.shape_cast %4 : vector<1x32x128xbf16> to vector<32x128xbf16>
    %c0_5 = arith.constant 0 : index
    %c0_6 = arith.constant 0 : index
    %c0_7 = arith.constant 0 : index
    %6 = vector.load %arg5[%c0_5, %c0_6, %c0_7] : memref<1x128x128xbf16, #tpu.memory_space<vmem>>, vector<1x128x128xbf16>
    %7 = vector.shape_cast %6 : vector<1x128x128xbf16> to vector<128x128xbf16>
    %cst = arith.constant dense<0.000000e+00> : vector<32x128xf32>
    %8 = tpu.matmul %5, %7, %cst {dimension_numbers = #tpu.dot_dimension_numbers<[1], [0], [0], [1], [0, 0, 1, 1], [], []>} : vector<32x128xbf16>, vector<128x128xbf16>, vector<32x128xf32> -> vector<32x128xf32>
    %9 = arith.addf %3, %8 : vector<32x128xf32>
    %c0_8 = arith.constant 0 : index
    %c0_9 = arith.constant 0 : index
    %10 = vector.load %arg7[%c0_8, %c0_9] : memref<32x128xf32, #tpu.memory_space<vmem>>, vector<32x128xf32>
    tpu.vector_store %arg7[%c0_8, %c0_9], %9 {strides = array<i32>} : memref<32x128xf32, #tpu.memory_space<vmem>>, vector<32x128xf32>,
    %c0_i32_10 = arith.constant 0 : i32
    %11 = arith.cmpi eq, %arg3, %c0_i32_10 : i32
    %12 = arith.extui %11 : i1 to i32
    %c0_i32_11 = arith.constant 0 : i32
    %13 = arith.cmpi ne, %12, %c0_i32_11 : i32
    scf.if %13 {
      %c0_12 = arith.constant 0 : index
      %c0_13 = arith.constant 0 : index
      %14 = vector.load %arg7[%c0_12, %c0_13] : memref<32x128xf32, #tpu.memory_space<vmem>>, vector<32x128xf32>
      %15 = math.tanh %14 : vector<32x128xf32>
      %c0_14 = arith.constant 0 : index
      %c0_15 = arith.constant 0 : index
      %c0_16 = arith.constant 0 : index
      %16 = vector.load %arg6[%c0_14, %c0_15, %c0_16] : memref<1x32x128xf32, #tpu.memory_space<vmem>>, vector<1x32x128xf32>
      %17 = vector.shape_cast %16 : vector<1x32x128xf32> to vector<32x128xf32>
      %18 = vector.shape_cast %15 : vector<32x128xf32> to vector<1x32x128xf32>
      tpu.vector_store %arg6[%c0_14, %c0_15, %c0_16], %18 {strides = array<i32>} : memref<1x32x128xf32, #tpu.memory_space<vmem>>, vector<1x32x128xf32>,
    } else {
    }
    return
  }
  func.func @transform_0(%arg0: i32, %arg1: i32, %arg2: i32, %arg3: i32) -> (i32, i32, i32) {
    %c0_i32 = arith.constant 0 : i32
    return %arg0, %arg1, %arg3 : i32, i32, i32
  }
  func.func @transform_1(%arg0: i32, %arg1: i32, %arg2: i32, %arg3: i32) -> (i32, i32, i32) {
    %c0_i32 = arith.constant 0 : i32
    return %arg0, %arg3, %arg2 : i32, i32, i32
  }
  func.func @transform_2(%arg0: i32, %arg1: i32, %arg2: i32, %arg3: i32) -> (i32, i32, i32) {
    %c0_i32 = arith.constant 0 : i32
    return %arg0, %arg1, %arg2 : i32, i32, i32
  }
}

module attributes {stable_mosaic.version = 11 : i64} {
  func.func @_finish_blend_kernel(%arg0: i32, %arg1: i32, %arg2: i32, %arg3: i32, %arg4: memref<1xf32, #tpu.memory_space<smem>>, %arg5: memref<1x128x128xbf16, #tpu.memory_space<vmem>>, %arg6: memref<1x128x128xbf16, #tpu.memory_space<vmem>>, %arg7: memref<1x128x128xf32, #tpu.memory_space<vmem>>, %arg8: memref<1x128x128xf32, #tpu.memory_space<vmem>>, %arg9: memref<128x128xf32, #tpu.memory_space<vmem>>) attributes {dimension_semantics = [#tpu.dimension_semantics<parallel>, #tpu.dimension_semantics<parallel>, #tpu.dimension_semantics<parallel>, #tpu.dimension_semantics<arbitrary>], iteration_bounds = array<i64: 1, 1, 1, 1>, scalar_prefetch = 0 : i64, scratch_operands = 1 : i64, tpu.core_type = #tpu.core_type<tc>, window_params = [{transform_indices = @transform_0, window_bounds = array<i64: 1>}, {transform_indices = @transform_1, window_bounds = array<i64: 1, 128, 128>}, {transform_indices = @transform_2, window_bounds = array<i64: 1, 128, 128>}, {transform_indices = @transform_3, window_bounds = array<i64: 1, 128, 128>}, {transform_indices = @transform_4, window_bounds = array<i64: 1, 128, 128>}]} {
    %c0_i32 = arith.constant 0 : i32
    %0 = arith.cmpi eq, %arg3, %c0_i32 : i32
    %1 = arith.extui %0 : i1 to i32
    %c0_i32_0 = arith.constant 0 : i32
    %2 = arith.cmpi ne, %1, %c0_i32_0 : i32
    scf.if %2 {
      %cst_12 = arith.constant 0.000000e+00 : f32
      %14 = vector.broadcast %cst_12 : f32 to vector<128x128xf32>
      %c0_13 = arith.constant 0 : index
      %c0_14 = arith.constant 0 : index
      %15 = vector.load %arg9[%c0_13, %c0_14] : memref<128x128xf32, #tpu.memory_space<vmem>>, vector<128x128xf32>
      tpu.vector_store %arg9[%c0_13, %c0_14], %14 {strides = array<i32>} : memref<128x128xf32, #tpu.memory_space<vmem>>, vector<128x128xf32>,
    } else {
    }
    %c0 = arith.constant 0 : index
    %c0_1 = arith.constant 0 : index
    %3 = vector.load %arg9[%c0, %c0_1] : memref<128x128xf32, #tpu.memory_space<vmem>>, vector<128x128xf32>
    %c0_2 = arith.constant 0 : index
    %c0_3 = arith.constant 0 : index
    %c0_4 = arith.constant 0 : index
    %4 = vector.load %arg5[%c0_2, %c0_3, %c0_4] : memref<1x128x128xbf16, #tpu.memory_space<vmem>>, vector<1x128x128xbf16>
    %5 = vector.shape_cast %4 : vector<1x128x128xbf16> to vector<128x128xbf16>
    %c0_5 = arith.constant 0 : index
    %c0_6 = arith.constant 0 : index
    %c0_7 = arith.constant 0 : index
    %6 = vector.load %arg6[%c0_5, %c0_6, %c0_7] : memref<1x128x128xbf16, #tpu.memory_space<vmem>>, vector<1x128x128xbf16>
    %7 = vector.shape_cast %6 : vector<1x128x128xbf16> to vector<128x128xbf16>
    %cst = arith.constant dense<0.000000e+00> : vector<128x128xf32>
    %8 = tpu.matmul %5, %7, %cst {dimension_numbers = #tpu.dot_dimension_numbers<[1], [0], [0], [1], [0, 0, 1, 1], [], []>} : vector<128x128xbf16>, vector<128x128xbf16>, vector<128x128xf32> -> vector<128x128xf32>
    %9 = arith.addf %3, %8 : vector<128x128xf32>
    %c0_8 = arith.constant 0 : index
    %c0_9 = arith.constant 0 : index
    %10 = vector.load %arg9[%c0_8, %c0_9] : memref<128x128xf32, #tpu.memory_space<vmem>>, vector<128x128xf32>
    tpu.vector_store %arg9[%c0_8, %c0_9], %9 {strides = array<i32>} : memref<128x128xf32, #tpu.memory_space<vmem>>, vector<128x128xf32>,
    %c0_i32_10 = arith.constant 0 : i32
    %11 = arith.cmpi eq, %arg3, %c0_i32_10 : i32
    %12 = arith.extui %11 : i1 to i32
    %c0_i32_11 = arith.constant 0 : i32
    %13 = arith.cmpi ne, %12, %c0_i32_11 : i32
    scf.if %13 {
      %c0_12 = arith.constant 0 : index
      %14 = memref.load %arg4[%c0_12] : memref<1xf32, #tpu.memory_space<smem>>
      %c0_13 = arith.constant 0 : index
      %c0_14 = arith.constant 0 : index
      %c0_15 = arith.constant 0 : index
      %15 = vector.load %arg7[%c0_13, %c0_14, %c0_15] : memref<1x128x128xf32, #tpu.memory_space<vmem>>, vector<1x128x128xf32>
      %16 = vector.shape_cast %15 : vector<1x128x128xf32> to vector<128x128xf32>
      %cst_16 = arith.constant 1.000000e+00 : f32
      %17 = arith.subf %cst_16, %14 : f32
      %18 = vector.broadcast %17 : f32 to vector<128x128xf32>
      %19 = arith.mulf %16, %18 : vector<128x128xf32>
      %c0_17 = arith.constant 0 : index
      %c0_18 = arith.constant 0 : index
      %20 = vector.load %arg9[%c0_17, %c0_18] : memref<128x128xf32, #tpu.memory_space<vmem>>, vector<128x128xf32>
      %21 = math.tanh %20 : vector<128x128xf32>
      %22 = vector.broadcast %14 : f32 to vector<128x128xf32>
      %23 = arith.mulf %21, %22 : vector<128x128xf32>
      %24 = arith.addf %19, %23 : vector<128x128xf32>
      %c0_19 = arith.constant 0 : index
      %c0_20 = arith.constant 0 : index
      %c0_21 = arith.constant 0 : index
      %25 = vector.load %arg8[%c0_19, %c0_20, %c0_21] : memref<1x128x128xf32, #tpu.memory_space<vmem>>, vector<1x128x128xf32>
      %26 = vector.shape_cast %25 : vector<1x128x128xf32> to vector<128x128xf32>
      %27 = vector.shape_cast %24 : vector<128x128xf32> to vector<1x128x128xf32>
      tpu.vector_store %arg8[%c0_19, %c0_20, %c0_21], %27 {strides = array<i32>} : memref<1x128x128xf32, #tpu.memory_space<vmem>>, vector<1x128x128xf32>,
    } else {
    }
    return
  }
  func.func @transform_0(%arg0: i32, %arg1: i32, %arg2: i32, %arg3: i32) -> i32 {
    %c0_i32 = arith.constant 0 : i32
    %c0_i32_0 = arith.constant 0 : i32
    return %c0_i32 : i32
  }
  func.func @transform_1(%arg0: i32, %arg1: i32, %arg2: i32, %arg3: i32) -> (i32, i32, i32) {
    %c0_i32 = arith.constant 0 : i32
    return %arg0, %arg1, %arg3 : i32, i32, i32
  }
  func.func @transform_2(%arg0: i32, %arg1: i32, %arg2: i32, %arg3: i32) -> (i32, i32, i32) {
    %c0_i32 = arith.constant 0 : i32
    return %arg0, %arg3, %arg2 : i32, i32, i32
  }
  func.func @transform_3(%arg0: i32, %arg1: i32, %arg2: i32, %arg3: i32) -> (i32, i32, i32) {
    %c0_i32 = arith.constant 0 : i32
    return %arg0, %arg1, %arg2 : i32, i32, i32
  }
  func.func @transform_4(%arg0: i32, %arg1: i32, %arg2: i32, %arg3: i32) -> (i32, i32, i32) {
    %c0_i32 = arith.constant 0 : i32
    return %arg0, %arg1, %arg2 : i32, i32, i32
  }
}

</mosaic_0001>

<llo_original>
// kernel: squeeze.23
$region0: #{squeeze.23}
  %s0 = inlined_call_operand.vmem [shape: f32[1,2,1024], index: 0, kind: input, shape index: {}]
  %s1 = inlined_call_operand.vmem [shape: f32[2,64,4,4], index: 1, kind: output, shape index: {}]
  $region1: #{squeeze.23} parent=0
    #allocation0 [shape = 'u8[524288]{0}', space=vmem, size = 0x80000, scoped, tag = 'scoped mem for output reshape']
    #allocation1 [shape = 'u8[32768]{0}', space=vmem, size = 0x8000, scoped, tag = 'scoped mem for input reshape']
    %s3 = ssub.s32 4, 1
    %s4 = scalar_lea.vmem %s0, 14
    %v5 = vld [vmem:[%s4] sm:%s3]
    %s6 = scalar_lea.vmem [#allocation1], 56
    %7 = vst [vmem:[%s6] sm:%s3] %v5
    %s8 = scalar_lea.vmem %s0, 12
    %v9 = vld [vmem:[%s8] sm:%s3]
    %s10 = scalar_lea.vmem [#allocation1], 48
    %11 = vst [vmem:[%s10] sm:%s3] %v9
    %s12 = scalar_lea.vmem %s0, 10
    %v13 = vld [vmem:[%s12] sm:%s3]
    %s14 = scalar_lea.vmem [#allocation1], 40
    %15 = vst [vmem:[%s14] sm:%s3] %v13
    %s16 = scalar_lea.vmem %s0, 8
    %v17 = vld [vmem:[%s16] sm:%s3]
    %s18 = scalar_lea.vmem [#allocation1], 32
    %19 = vst [vmem:[%s18] sm:%s3] %v17
    %s20 = scalar_lea.vmem %s0, 6
    %v21 = vld [vmem:[%s20] sm:%s3]
    %s22 = scalar_lea.vmem [#allocation1], 24
    %23 = vst [vmem:[%s22] sm:%s3] %v21
    %s24 = scalar_lea.vmem %s0, 4
    %v25 = vld [vmem:[%s24] sm:%s3]
    %s26 = scalar_lea.vmem [#allocation1], 16
    %27 = vst [vmem:[%s26] sm:%s3] %v25
    %s28 = scalar_lea.vmem %s0, 2
    %v29 = vld [vmem:[%s28] sm:%s3]
    %s30 = scalar_lea.vmem [#allocation1], 8
    %31 = vst [vmem:[%s30] sm:%s3] %v29
    %v32 = vld [vmem:[%s0] sm:%s3]
    %33 = vst [vmem:[#allocation1] sm:%s3] %v32
    %v34 = vld [vmem:[#allocation1] sm:$0x3]
    %vm35 = vcmask 31744
    %36 = vst.msk [vmem:[#allocation0] sm:$0x1] %vm35, %v34
    %s37 = scalar_lea.vmem [#allocation0], 511
    %38 = vst.msk [vmem:[%s37] sm:$0x2] %vm35, %v34
    %s39 = scalar_lea.vmem [#allocation1], 8
    %v40 = vld [vmem:[%s39] sm:$0x3]
    %vm41 = vcmask 31744
    %s42 = scalar_lea.vmem [#allocation0], 64
    %43 = vst.msk [vmem:[%s42] sm:$0x1] %vm41, %v40
    %s44 = scalar_lea.vmem [#allocation0], 575
    %45 = vst.msk [vmem:[%s44] sm:$0x2] %vm41, %v40
    %s46 = scalar_lea.vmem [#allocation1], 16
    %v47 = vld [vmem:[%s46] sm:$0x3]
    %vm48 = vcmask 31744
    %s49 = scalar_lea.vmem [#allocation0], 128
    %50 = vst.msk [vmem:[%s49] sm:$0x1] %vm48, %v47
    %s51 = scalar_lea.vmem [#allocation0], 639
    %52 = vst.msk [vmem:[%s51] sm:$0x2] %vm48, %v47
    %s53 = scalar_lea.vmem [#allocation1], 24
    %v54 = vld [vmem:[%s53] sm:$0x3]
    %vm55 = vcmask 31744
    %s56 = scalar_lea.vmem [#allocation0], 192
    %57 = vst.msk [vmem:[%s56] sm:$0x1] %vm55, %v54
    %s58 = scalar_lea.vmem [#allocation0], 703
    %59 = vst.msk [vmem:[%s58] sm:$0x2] %vm55, %v54
    %s60 = scalar_lea.vmem [#allocation1], 32
    %v61 = vld [vmem:[%s60] sm:$0x3]
    %vm62 = vcmask 31744
    %s63 = scalar_lea.vmem [#allocation0], 256
    %64 = vst.msk [vmem:[%s63] sm:$0x1] %vm62, %v61
    %s65 = scalar_lea.vmem [#allocation0], 767
    %66 = vst.msk [vmem:[%s65] sm:$0x2] %vm62, %v61
    %s67 = scalar_lea.vmem [#allocation1], 40
    %v68 = vld [vmem:[%s67] sm:$0x3]
    %vm69 = vcmask 31744
    %s70 = scalar_lea.vmem [#allocation0], 320
    %71 = vst.msk [vmem:[%s70] sm:$0x1] %vm69, %v68
    %s72 = scalar_lea.vmem [#allocation0], 831
    %73 = vst.msk [vmem:[%s72] sm:$0x2] %vm69, %v68
    %s74 = scalar_lea.vmem [#allocation1], 48
    %v75 = vld [vmem:[%s74] sm:$0x3]
    %vm76 = vcmask 31744
    %s77 = scalar_lea.vmem [#allocation0], 384
    %78 = vst.msk [vmem:[%s77] sm:$0x1] %vm76, %v75
    %s79 = scalar_lea.vmem [#allocation0], 895
    %80 = vst.msk [vmem:[%s79] sm:$0x2] %vm76, %v75
    %s81 = scalar_lea.vmem [#allocation1], 56
    %v82 = vld [vmem:[%s81] sm:$0x3]
    %vm83 = vcmask 31744
    %s84 = scalar_lea.vmem [#allocation0], 448
    %85 = vst.msk [vmem:[%s84] sm:$0x1] %vm83, %v82
    %s86 = scalar_lea.vmem [#allocation0], 959
    %87 = vst.msk [vmem:[%s86] sm:$0x2] %vm83, %v82
    %v88 = vld.sshfl [vmem:[#allocation1] sm:$0xff pattern:$0x99999810]
    %s89 = scalar_lea.vmem [#allocation1], 16
    %v90 = vld.sshfl [vmem:[%s89] sm:$0xff pattern:$0x98100000]
    %vm91 = vcmask 1047556
    %v92 = vsel %vm91, %v90, %v88
    %93 = vrot.lane.b32.xlu0 %v92, 124
    %v94 = vpop.permute.xlu0 %93
    %vm95 = vcmask 31744
    %s96 = scalar_lea.vmem [#allocation0], 1
    %97 = vst.msk [vmem:[%s96] sm:$0x1] %vm95, %v94
    %s98 = scalar_lea.vmem [#allocation0], 512
    %99 = vst.msk [vmem:[%s98] sm:$0x2] %vm95, %v94
    %s100 = scalar_lea.vmem [#allocation0], 63
    %101 = vst.msk [vmem:[%s100] sm:$0x4] %vm95, %v94
    %s102 = scalar_lea.vmem [#allocation0], 574
    %103 = vst.msk [vmem:[%s102] sm:$0x8] %vm95, %v94
    %s104 = scalar_lea.vmem [#allocation0], 125
    %105 = vst.msk [vmem:[%s104] sm:$0x10] %vm95, %v94
    %s106 = scalar_lea.vmem [#allocation0], 636
    %107 = vst.msk [vmem:[%s106] sm:$0x20] %vm95, %v94
    %s108 = scalar_lea.vmem [#allocation0], 187
    %109 = vst.msk [vmem:[%s108] sm:$0x40] %vm95, %v94
    %s110 = scalar_lea.vmem [#allocation0], 698
    %111 = vst.msk [vmem:[%s110] sm:$0x80] %vm95, %v94
    %s112 = scalar_lea.vmem [#allocation1], 32
    %v113 = vld.sshfl [vmem:[%s112] sm:$0xff pattern:$0x99999810]
    %s114 = scalar_lea.vmem [#allocation1], 48
    %v115 = vld.sshfl [vmem:[%s114] sm:$0xff pattern:$0x98100000]
    %vm116 = vcmask 1047556
    %v117 = vsel %vm116, %v115, %v113
    %118 = vrot.lane.b32.xlu0 %v117, 124
    %v119 = vpop.permute.xlu0 %118
    %vm120 = vcmask 31744
    %s121 = scalar_lea.vmem [#allocation0], 257
    %122 = vst.msk [vmem:[%s121] sm:$0x1] %vm120, %v119
    %s123 = scalar_lea.vmem [#allocation0], 768
    %124 = vst.msk [vmem:[%s123] sm:$0x2] %vm120, %v119
    %s125 = scalar_lea.vmem [#allocation0], 319
    %126 = vst.msk [vmem:[%s125] sm:$0x4] %vm120, %v119
    %s127 = scalar_lea.vmem [#allocation0], 830
    %128 = vst.msk [vmem:[%s127] sm:$0x8] %vm120, %v119
    %s129 = scalar_lea.vmem [#allocation0], 381
    %130 = vst.msk [vmem:[%s129] sm:$0x10] %vm120, %v119
    %s131 = scalar_lea.vmem [#allocation0], 892
    %132 = vst.msk [vmem:[%s131] sm:$0x20] %vm120, %v119
    %s133 = scalar_lea.vmem [#allocation0], 443
    %134 = vst.msk [vmem:[%s133] sm:$0x40] %vm120, %v119
    %s135 = scalar_lea.vmem [#allocation0], 954
    %136 = vst.msk [vmem:[%s135] sm:$0x80] %vm120, %v119
    %v137 = vld.sshfl [vmem:[#allocation1] sm:$0xff pattern:$0x99999810]
    %s138 = scalar_lea.vmem [#allocation1], 16
    %v139 = vld.sshfl [vmem:[%s138] sm:$0xff pattern:$0x98100000]
    %vm140 = vcmask 1047556
    %v141 = vsel %vm140, %v139, %v137
    %142 = vrot.lane.b32.xlu0 %v141, 120
    %v143 = vpop.permute.xlu0 %142
    %vm144 = vcmask 31744
    %s145 = scalar_lea.vmem [#allocation0], 2
    %146 = vst.msk [vmem:[%s145] sm:$0x1] %vm144, %v143
    %s147 = scalar_lea.vmem [#allocation0], 513
    %148 = vst.msk [vmem:[%s147] sm:$0x2] %vm144, %v143
    %s149 = scalar_lea.vmem [#allocation0], 64
    %150 = vst.msk [vmem:[%s149] sm:$0x4] %vm144, %v143
    %s151 = scalar_lea.vmem [#allocation0], 575
    %152 = vst.msk [vmem:[%s151] sm:$0x8] %vm144, %v143
    %s153 = scalar_lea.vmem [#allocation0], 126
    %154 = vst.msk [vmem:[%s153] sm:$0x10] %vm144, %v143
    %s155 = scalar_lea.vmem [#allocation0], 637
    %156 = vst.msk [vmem:[%s155] sm:$0x20] %vm144, %v143
    %s157 = scalar_lea.vmem [#allocation0], 188
    %158 = vst.msk [vmem:[%s157] sm:$0x40] %vm144, %v143
    %s159 = scalar_lea.vmem [#allocation0], 699
    %160 = vst.msk [vmem:[%s159] sm:$0x80] %vm144, %v143
    %s161 = scalar_lea.vmem [#allocation1], 32
    %v162 = vld.sshfl [vmem:[%s161] sm:$0xff pattern:$0x99999810]
    %s163 = scalar_lea.vmem [#allocation1], 48
    %v164 = vld.sshfl [vmem:[%s163] sm:$0xff pattern:$0x98100000]
    %vm165 = vcmask 1047556
    %v166 = vsel %vm165, %v164, %v162
    %167 = vrot.lane.b32.xlu0 %v166, 120
    %v168 = vpop.permute.xlu0 %167
    %vm169 = vcmask 31744
    %s170 = scalar_lea.vmem [#allocation0], 258
    %171 = vst.msk [vmem:[%s170] sm:$0x1] %vm169, %v168
    %s172 = scalar_lea.vmem [#allocation0], 769
    %173 = vst.msk [vmem:[%s172] sm:$0x2] %vm169, %v168
    %s174 = scalar_lea.vmem [#allocation0], 320
    %175 = vst.msk [vmem:[%s174] sm:$0x4] %vm169, %v168
    %s176 = scalar_lea.vmem [#allocation0], 831
    %177 = vst.msk [vmem:[%s176] sm:$0x8] %vm169, %v168
    %s178 = scalar_lea.vmem [#allocation0], 382
    %179 = vst.msk [vmem:[%s178] sm:$0x10] %vm169, %v168
    %s180 = scalar_lea.vmem [#allocation0], 893
    %181 = vst.msk [vmem:[%s180] sm:$0x20] %vm169, %v168
    %s182 = scalar_lea.vmem [#allocation0], 444
    %183 = vst.msk [vmem:[%s182] sm:$0x40] %vm169, %v168
    %s184 = scalar_lea.vmem [#allocation0], 955
    %185 = vst.msk [vmem:[%s184] sm:$0x80] %vm169, %v168
    %v186 = vld.sshfl [vmem:[#allocation1] sm:$0xff pattern:$0x99999810]
    %s187 = scalar_lea.vmem [#allocation1], 16
    %v188 = vld.sshfl [vmem:[%s187] sm:$0xff pattern:$0x98100000]
    %vm189 = vcmask 1047556
    %v190 = vsel %vm189, %v188, %v186
    %191 = vrot.lane.b32.xlu0 %v190, 116
    %v192 = vpop.permute.xlu0 %191
    %vm193 = vcmask 31744
    %s194 = scalar_lea.vmem [#allocation0], 3
    %195 = vst.msk [vmem:[%s194] sm:$0x1] %vm193, %v192
    %s196 = scalar_lea.vmem [#allocation0], 514
    %197 = vst.msk [vmem:[%s196] sm:$0x2] %vm193, %v192
    %s198 = scalar_lea.vmem [#allocation0], 65
    %199 = vst.msk [vmem:[%s198] sm:$0x4] %vm193, %v192
    %s200 = scalar_lea.vmem [#allocation0], 576
    %201 = vst.msk [vmem:[%s200] sm:$0x8] %vm193, %v192
    %s202 = scalar_lea.vmem [#allocation0], 127
    %203 = vst.msk [vmem:[%s202] sm:$0x10] %vm193, %v192
    %s204 = scalar_lea.vmem [#allocation0], 638
    %205 = vst.msk [vmem:[%s204] sm:$0x20] %vm193, %v192
    %s206 = scalar_lea.vmem [#allocation0], 189
    %207 = vst.msk [vmem:[%s206] sm:$0x40] %vm193, %v192
    %s208 = scalar_lea.vmem [#allocation0], 700
    %209 = vst.msk [vmem:[%s208] sm:$0x80] %vm193, %v192
    %s210 = scalar_lea.vmem [#allocation1], 32
    %v211 = vld.sshfl [vmem:[%s210] sm:$0xff pattern:$0x99999810]
    %s212 = scalar_lea.vmem [#allocation1], 48
    %v213 = vld.sshfl [vmem:[%s212] sm:$0xff pattern:$0x98100000]
    %vm214 = vcmask 1047556
    %v215 = vsel %vm214, %v213, %v211
    %216 = vrot.lane.b32.xlu0 %v215, 116
    %v217 = vpop.permute.xlu0 %216
    %vm218 = vcmask 31744
    %s219 = scalar_lea.vmem [#allocation0], 259
    %220 = vst.msk [vmem:[%s219] sm:$0x1] %vm218, %v217
    %s221 = scalar_lea.vmem [#allocation0], 770
    %222 = vst.msk [vmem:[%s221] sm:$0x2] %vm218, %v217
    %s223 = scalar_lea.vmem [#allocation0], 321
    %224 = vst.msk [vmem:[%s223] sm:$0x4] %vm218, %v217
    %s225 = scalar_lea.vmem [#allocation0], 832
    %226 = vst.msk [vmem:[%s225] sm:$0x8] %vm218, %v217
    %s227 = scalar_lea.vmem [#allocation0], 383
    %228 = vst.msk [vmem:[%s227] sm:$0x10] %vm218, %v217
    %s229 = scalar_lea.vmem [#allocation0], 894
    %230 = vst.msk [vmem:[%s229] sm:$0x20] %vm218, %v217
    %s231 = scalar_lea.vmem [#allocation0], 445
    %232 = vst.msk [vmem:[%s231] sm:$0x40] %vm218, %v217
    %s233 = scalar_lea.vmem [#allocation0], 956
    %234 = vst.msk [vmem:[%s233] sm:$0x80] %vm218, %v217
    %v235 = vld.sshfl [vmem:[#allocation1] sm:$0xff pattern:$0x99999810]
    %s236 = scalar_lea.vmem [#allocation1], 16
    %v237 = vld.sshfl [vmem:[%s236] sm:$0xff pattern:$0x98100000]
    %vm238 = vcmask 1047556
    %v239 = vsel %vm238, %v237, %v235
    %240 = vrot.lane.b32.xlu0 %v239, 112
    %v241 = vpop.permute.xlu0 %240
    %vm242 = vcmask 31744
    %s243 = scalar_lea.vmem [#allocation0], 8
    %244 = vst.msk [vmem:[%s243] sm:$0x1] %vm242, %v241
    %s245 = scalar_lea.vmem [#allocation0], 519
    %246 = vst.msk [vmem:[%s245] sm:$0x2] %vm242, %v241
    %s247 = scalar_lea.vmem [#allocation0], 70
    %248 = vst.msk [vmem:[%s247] sm:$0x4] %vm242, %v241
    %s249 = scalar_lea.vmem [#allocation0], 581
    %250 = vst.msk [vmem:[%s249] sm:$0x8] %vm242, %v241
    %s251 = scalar_lea.vmem [#allocation0], 132
    %252 = vst.msk [vmem:[%s251] sm:$0x10] %vm242, %v241
    %s253 = scalar_lea.vmem [#allocation0], 643
    %254 = vst.msk [vmem:[%s253] sm:$0x20] %vm242, %v241
    %s255 = scalar_lea.vmem [#allocation0], 194
    %256 = vst.msk [vmem:[%s255] sm:$0x40] %vm242, %v241
    %s257 = scalar_lea.vmem [#allocation0], 705
    %258 = vst.msk [vmem:[%s257] sm:$0x80] %vm242, %v241
    %s259 = scalar_lea.vmem [#allocation1], 32
    %v260 = vld.sshfl [vmem:[%s259] sm:$0xff pattern:$0x99999810]
    %s261 = scalar_lea.vmem [#allocation1], 48
    %v262 = vld.sshfl [vmem:[%s261] sm:$0xff pattern:$0x98100000]
    %vm263 = vcmask 1047556
    %v264 = vsel %vm263, %v262, %v260
    %265 = vrot.lane.b32.xlu0 %v264, 112
    %v266 = vpop.permute.xlu0 %265
    %vm267 = vcmask 31744
    %s268 = scalar_lea.vmem [#allocation0], 264
    %269 = vst.msk [vmem:[%s268] sm:$0x1] %vm267, %v266
    %s270 = scalar_lea.vmem [#allocation0], 775
    %271 = vst.msk [vmem:[%s270] sm:$0x2] %vm267, %v266
    %s272 = scalar_lea.vmem [#allocation0], 326
    %273 = vst.msk [vmem:[%s272] sm:$0x4] %vm267, %v266
    %s274 = scalar_lea.vmem [#allocation0], 837
    %275 = vst.msk [vmem:[%s274] sm:$0x8] %vm267, %v266
    %s276 = scalar_lea.vmem [#allocation0], 388
    %277 = vst.msk [vmem:[%s276] sm:$0x10] %vm267, %v266
    %s278 = scalar_lea.vmem [#allocation0], 899
    %279 = vst.msk [vmem:[%s278] sm:$0x20] %vm267, %v266
    %s280 = scalar_lea.vmem [#allocation0], 450
    %281 = vst.msk [vmem:[%s280] sm:$0x40] %vm267, %v266
    %s282 = scalar_lea.vmem [#allocation0], 961
    %283 = vst.msk [vmem:[%s282] sm:$0x80] %vm267, %v266
    %v284 = vld.sshfl [vmem:[#allocation1] sm:$0xff pattern:$0x99999810]
    %s285 = scalar_lea.vmem [#allocation1], 16
    %v286 = vld.sshfl [vmem:[%s285] sm:$0xff pattern:$0x98100000]
    %vm287 = vcmask 1047556
    %v288 = vsel %vm287, %v286, %v284
    %289 = vrot.lane.b32.xlu0 %v288, 108
    %v290 = vpop.permute.xlu0 %289
    %vm291 = vcmask 31744
    %s292 = scalar_lea.vmem [#allocation0], 9
    %293 = vst.msk [vmem:[%s292] sm:$0x1] %vm291, %v290
    %s294 = scalar_lea.vmem [#allocation0], 520
    %295 = vst.msk [vmem:[%s294] sm:$0x2] %vm291, %v290
    %s296 = scalar_lea.vmem [#allocation0], 71
    %297 = vst.msk [vmem:[%s296] sm:$0x4] %vm291, %v290
    %s298 = scalar_lea.vmem [#allocation0], 582
    %299 = vst.msk [vmem:[%s298] sm:$0x8] %vm291, %v290
    %s300 = scalar_lea.vmem [#allocation0], 133
    %301 = vst.msk [vmem:[%s300] sm:$0x10] %vm291, %v290
    %s302 = scalar_lea.vmem [#allocation0], 644
    %303 = vst.msk [vmem:[%s302] sm:$0x20] %vm291, %v290
    %s304 = scalar_lea.vmem [#allocation0], 195
    %305 = vst.msk [vmem:[%s304] sm:$0x40] %vm291, %v290
    %s306 = scalar_lea.vmem [#allocation0], 706
    %307 = vst.msk [vmem:[%s306] sm:$0x80] %vm291, %v290
    %s308 = scalar_lea.vmem [#allocation1], 32
    %v309 = vld.sshfl [vmem:[%s308] sm:$0xff pattern:$0x99999810]
    %s310 = scalar_lea.vmem [#allocation1], 48
    %v311 = vld.sshfl [vmem:[%s310] sm:$0xff pattern:$0x98100000]
    %vm312 = vcmask 1047556
    %v313 = vsel %vm312, %v311, %v309
    %314 = vrot.lane.b32.xlu0 %v313, 108
    %v315 = vpop.permute.xlu0 %314
    %vm316 = vcmask 31744
    %s317 = scalar_lea.vmem [#allocation0], 265
    %318 = vst.msk [vmem:[%s317] sm:$0x1] %vm316, %v315
    %s319 = scalar_lea.vmem [#allocation0], 776
    %320 = vst.msk [vmem:[%s319] sm:$0x2] %vm316, %v315
    %s321 = scalar_lea.vmem [#allocation0], 327
    %322 = vst.msk [vmem:[%s321] sm:$0x4] %vm316, %v315
    %s323 = scalar_lea.vmem [#allocation0], 838
    %324 = vst.msk [vmem:[%s323] sm:$0x8] %vm316, %v315
    %s325 = scalar_lea.vmem [#allocation0], 389
    %326 = vst.msk [vmem:[%s325] sm:$0x10] %vm316, %v315
    %s327 = scalar_lea.vmem [#allocation0], 900
    %328 = vst.msk [vmem:[%s327] sm:$0x20] %vm316, %v315
    %s329 = scalar_lea.vmem [#allocation0], 451
    %330 = vst.msk [vmem:[%s329] sm:$0x40] %vm316, %v315
    %s331 = scalar_lea.vmem [#allocation0], 962
    %332 = vst.msk [vmem:[%s331] sm:$0x80] %vm316, %v315
    %v333 = vld.sshfl [vmem:[#allocation1] sm:$0xff pattern:$0x99999810]
    %s334 = scalar_lea.vmem [#allocation1], 16
    %v335 = vld.sshfl [vmem:[%s334] sm:$0xff pattern:$0x98100000]
    %vm336 = vcmask 1047556
    %v337 = vsel %vm336, %v335, %v333
    %338 = vrot.lane.b32.xlu0 %v337, 104
    %v339 = vpop.permute.xlu0 %338
    %vm340 = vcmask 31744
    %s341 = scalar_lea.vmem [#allocation0], 10
    %342 = vst.msk [vmem:[%s341] sm:$0x1] %vm340, %v339
    %s343 = scalar_lea.vmem [#allocation0], 521
    %344 = vst.msk [vmem:[%s343] sm:$0x2] %vm340, %v339
    %s345 = scalar_lea.vmem [#allocation0], 72
    %346 = vst.msk [vmem:[%s345] sm:$0x4] %vm340, %v339
    %s347 = scalar_lea.vmem [#allocation0], 583
    %348 = vst.msk [vmem:[%s347] sm:$0x8] %vm340, %v339
    %s349 = scalar_lea.vmem [#allocation0], 134
    %350 = vst.msk [vmem:[%s349] sm:$0x10] %vm340, %v339
    %s351 = scalar_lea.vmem [#allocation0], 645
    %352 = vst.msk [vmem:[%s351] sm:$0x20] %vm340, %v339
    %s353 = scalar_lea.vmem [#allocation0], 196
    %354 = vst.msk [vmem:[%s353] sm:$0x40] %vm340, %v339
    %s355 = scalar_lea.vmem [#allocation0], 707
    %356 = vst.msk [vmem:[%s355] sm:$0x80] %vm340, %v339
    %s357 = scalar_lea.vmem [#allocation1], 32
    %v358 = vld.sshfl [vmem:[%s357] sm:$0xff pattern:$0x99999810]
    %s359 = scalar_lea.vmem [#allocation1], 48
    %v360 = vld.sshfl [vmem:[%s359] sm:$0xff pattern:$0x98100000]
    %vm361 = vcmask 1047556
    %v362 = vsel %vm361, %v360, %v358
    %363 = vrot.lane.b32.xlu0 %v362, 104
    %v364 = vpop.permute.xlu0 %363
    %vm365 = vcmask 31744
    %s366 = scalar_lea.vmem [#allocation0], 266
    %367 = vst.msk [vmem:[%s366] sm:$0x1] %vm365, %v364
    %s368 = scalar_lea.vmem [#allocation0], 777
    %369 = vst.msk [vmem:[%s368] sm:$0x2] %vm365, %v364
    %s370 = scalar_lea.vmem [#allocation0], 328
    %371 = vst.msk [vmem:[%s370] sm:$0x4] %vm365, %v364
    %s372 = scalar_lea.vmem [#allocation0], 839
    %373 = vst.msk [vmem:[%s372] sm:$0x8] %vm365, %v364
    %s374 = scalar_lea.vmem [#allocation0], 390
    %375 = vst.msk [vmem:[%s374] sm:$0x10] %vm365, %v364
    %s376 = scalar_lea.vmem [#allocation0], 901
    %377 = vst.msk [vmem:[%s376] sm:$0x20] %vm365, %v364
    %s378 = scalar_lea.vmem [#allocation0], 452
    %379 = vst.msk [vmem:[%s378] sm:$0x40] %vm365, %v364
    %s380 = scalar_lea.vmem [#allocation0], 963
    %381 = vst.msk [vmem:[%s380] sm:$0x80] %vm365, %v364
    %v382 = vld.sshfl [vmem:[#allocation1] sm:$0xff pattern:$0x99999810]
    %s383 = scalar_lea.vmem [#allocation1], 16
    %v384 = vld.sshfl [vmem:[%s383] sm:$0xff pattern:$0x98100000]
    %vm385 = vcmask 1047556
    %v386 = vsel %vm385, %v384, %v382
    %387 = vrot.lane.b32.xlu0 %v386, 100
    %v388 = vpop.permute.xlu0 %387
    %vm389 = vcmask 31744
    %s390 = scalar_lea.vmem [#allocation0], 11
    %391 = vst.msk [vmem:[%s390] sm:$0x1] %vm389, %v388
    %s392 = scalar_lea.vmem [#allocation0], 522
    %393 = vst.msk [vmem:[%s392] sm:$0x2] %vm389, %v388
    %s394 = scalar_lea.vmem [#allocation0], 73
    %395 = vst.msk [vmem:[%s394] sm:$0x4] %vm389, %v388
    %s396 = scalar_lea.vmem [#allocation0], 584
    %397 = vst.msk [vmem:[%s396] sm:$0x8] %vm389, %v388
    %s398 = scalar_lea.vmem [#allocation0], 135
    %399 = vst.msk [vmem:[%s398] sm:$0x10] %vm389, %v388
    %s400 = scalar_lea.vmem [#allocation0], 646
    %401 = vst.msk [vmem:[%s400] sm:$0x20] %vm389, %v388
    %s402 = scalar_lea.vmem [#allocation0], 197
    %403 = vst.msk [vmem:[%s402] sm:$0x40] %vm389, %v388
    %s404 = scalar_lea.vmem [#allocation0], 708
    %405 = vst.msk [vmem:[%s404] sm:$0x80] %vm389, %v388
    %s406 = scalar_lea.vmem [#allocation1], 32
    %v407 = vld.sshfl [vmem:[%s406] sm:$0xff pattern:$0x99999810]
    %s408 = scalar_lea.vmem [#allocation1], 48
    %v409 = vld.sshfl [vmem:[%s408] sm:$0xff pattern:$0x98100000]
    %vm410 = vcmask 1047556
    %v411 = vsel %vm410, %v409, %v407
    %412 = vrot.lane.b32.xlu0 %v411, 100
    %v413 = vpop.permute.xlu0 %412
    %vm414 = vcmask 31744
    %s415 = scalar_lea.vmem [#allocation0], 267
    %416 = vst.msk [vmem:[%s415] sm:$0x1] %vm414, %v413
    %s417 = scalar_lea.vmem [#allocation0], 778
    %418 = vst.msk [vmem:[%s417] sm:$0x2] %vm414, %v413
    %s419 = scalar_lea.vmem [#allocation0], 329
    %420 = vst.msk [vmem:[%s419] sm:$0x4] %vm414, %v413
    %s421 = scalar_lea.vmem [#allocation0], 840
    %422 = vst.msk [vmem:[%s421] sm:$0x8] %vm414, %v413
    %s423 = scalar_lea.vmem [#allocation0], 391
    %424 = vst.msk [vmem:[%s423] sm:$0x10] %vm414, %v413
    %s425 = scalar_lea.vmem [#allocation0], 902
    %426 = vst.msk [vmem:[%s425] sm:$0x20] %vm414, %v413
    %s427 = scalar_lea.vmem [#allocation0], 453
    %428 = vst.msk [vmem:[%s427] sm:$0x40] %vm414, %v413
    %s429 = scalar_lea.vmem [#allocation0], 964
    %430 = vst.msk [vmem:[%s429] sm:$0x80] %vm414, %v413
    %v431 = vld.sshfl [vmem:[#allocation1] sm:$0xff pattern:$0x99999810]
    %s432 = scalar_lea.vmem [#allocation1], 16
    %v433 = vld.sshfl [vmem:[%s432] sm:$0xff pattern:$0x98100000]
    %vm434 = vcmask 1047556
    %v435 = vsel %vm434, %v433, %v431
    %436 = vrot.lane.b32.xlu0 %v435, 96
    %v437 = vpop.permute.xlu0 %436
    %vm438 = vcmask 31744
    %s439 = scalar_lea.vmem [#allocation0], 16
    %440 = vst.msk [vmem:[%s439] sm:$0x1] %vm438, %v437
    %s441 = scalar_lea.vmem [#allocation0], 527
    %442 = vst.msk [vmem:[%s441] sm:$0x2] %vm438, %v437
    %s443 = scalar_lea.vmem [#allocation0], 78
    %444 = vst.msk [vmem:[%s443] sm:$0x4] %vm438, %v437
    %s445 = scalar_lea.vmem [#allocation0], 589
    %446 = vst.msk [vmem:[%s445] sm:$0x8] %vm438, %v437
    %s447 = scalar_lea.vmem [#allocation0], 140
    %448 = vst.msk [vmem:[%s447] sm:$0x10] %vm438, %v437
    %s449 = scalar_lea.vmem [#allocation0], 651
    %450 = vst.msk [vmem:[%s449] sm:$0x20] %vm438, %v437
    %s451 = scalar_lea.vmem [#allocation0], 202
    %452 = vst.msk [vmem:[%s451] sm:$0x40] %vm438, %v437
    %s453 = scalar_lea.vmem [#allocation0], 713
    %454 = vst.msk [vmem:[%s453] sm:$0x80] %vm438, %v437
    %s455 = scalar_lea.vmem [#allocation1], 32
    %v456 = vld.sshfl [vmem:[%s455] sm:$0xff pattern:$0x99999810]
    %s457 = scalar_lea.vmem [#allocation1], 48
    %v458 = vld.sshfl [vmem:[%s457] sm:$0xff pattern:$0x98100000]
    %vm459 = vcmask 1047556
    %v460 = vsel %vm459, %v458, %v456
    %461 = vrot.lane.b32.xlu0 %v460, 96
    %v462 = vpop.permute.xlu0 %461
    %vm463 = vcmask 31744
    %s464 = scalar_lea.vmem [#allocation0], 272
    %465 = vst.msk [vmem:[%s464] sm:$0x1] %vm463, %v462
    %s466 = scalar_lea.vmem [#allocation0], 783
    %467 = vst.msk [vmem:[%s466] sm:$0x2] %vm463, %v462
    %s468 = scalar_lea.vmem [#allocation0], 334
    %469 = vst.msk [vmem:[%s468] sm:$0x4] %vm463, %v462
    %s470 = scalar_lea.vmem [#allocation0], 845
    %471 = vst.msk [vmem:[%s470] sm:$0x8] %vm463, %v462
    %s472 = scalar_lea.vmem [#allocation0], 396
    %473 = vst.msk [vmem:[%s472] sm:$0x10] %vm463, %v462
    %s474 = scalar_lea.vmem [#allocation0], 907
    %475 = vst.msk [vmem:[%s474] sm:$0x20] %vm463, %v462
    %s476 = scalar_lea.vmem [#allocation0], 458
    %477 = vst.msk [vmem:[%s476] sm:$0x40] %vm463, %v462
    %s478 = scalar_lea.vmem [#allocation0], 969
    %479 = vst.msk [vmem:[%s478] sm:$0x80] %vm463, %v462
    %v480 = vld.sshfl [vmem:[#allocation1] sm:$0xff pattern:$0x99999810]
    %s481 = scalar_lea.vmem [#allocation1], 16
    %v482 = vld.sshfl [vmem:[%s481] sm:$0xff pattern:$0x98100000]
    %vm483 = vcmask 1047556
    %v484 = vsel %vm483, %v482, %v480
    %485 = vrot.lane.b32.xlu0 %v484, 92
    %v486 = vpop.permute.xlu0 %485
    %vm487 = vcmask 31744
    %s488 = scalar_lea.vmem [#allocation0], 17
    %489 = vst.msk [vmem:[%s488] sm:$0x1] %vm487, %v486
    %s490 = scalar_lea.vmem [#allocation0], 528
    %491 = vst.msk [vmem:[%s490] sm:$0x2] %vm487, %v486
    %s492 = scalar_lea.vmem [#allocation0], 79
    %493 = vst.msk [vmem:[%s492] sm:$0x4] %vm487, %v486
    %s494 = scalar_lea.vmem [#allocation0], 590
    %495 = vst.msk [vmem:[%s494] sm:$0x8] %vm487, %v486
    %s496 = scalar_lea.vmem [#allocation0], 141
    %497 = vst.msk [vmem:[%s496] sm:$0x10] %vm487, %v486
    %s498 = scalar_lea.vmem [#allocation0], 652
    %499 = vst.msk [vmem:[%s498] sm:$0x20] %vm487, %v486
    %s500 = scalar_lea.vmem [#allocation0], 203
    %501 = vst.msk [vmem:[%s500] sm:$0x40] %vm487, %v486
    %s502 = scalar_lea.vmem [#allocation0], 714
    %503 = vst.msk [vmem:[%s502] sm:$0x80] %vm487, %v486
    %s504 = scalar_lea.vmem [#allocation1], 32
    %v505 = vld.sshfl [vmem:[%s504] sm:$0xff pattern:$0x99999810]
    %s506 = scalar_lea.vmem [#allocation1], 48
    %v507 = vld.sshfl [vmem:[%s506] sm:$0xff pattern:$0x98100000]
    %vm508 = vcmask 1047556
    %v509 = vsel %vm508, %v507, %v505
    %510 = vrot.lane.b32.xlu0 %v509, 92
    %v511 = vpop.permute.xlu0 %510
    %vm512 = vcmask 31744
    %s513 = scalar_lea.vmem [#allocation0], 273
    %514 = vst.msk [vmem:[%s513] sm:$0x1] %vm512, %v511
    %s515 = scalar_lea.vmem [#allocation0], 784
    %516 = vst.msk [vmem:[%s515] sm:$0x2] %vm512, %v511
    %s517 = scalar_lea.vmem [#allocation0], 335
    %518 = vst.msk [vmem:[%s517] sm:$0x4] %vm512, %v511
    %s519 = scalar_lea.vmem [#allocation0], 846
    %520 = vst.msk [vmem:[%s519] sm:$0x8] %vm512, %v511
    %s521 = scalar_lea.vmem [#allocation0], 397
    %522 = vst.msk [vmem:[%s521] sm:$0x10] %vm512, %v511
    %s523 = scalar_lea.vmem [#allocation0], 908
    %524 = vst.msk [vmem:[%s523] sm:$0x20] %vm512, %v511
    %s525 = scalar_lea.vmem [#allocation0], 459
    %526 = vst.msk [vmem:[%s525] sm:$0x40] %vm512, %v511
    %s527 = scalar_lea.vmem [#allocation0], 970
    %528 = vst.msk [vmem:[%s527] sm:$0x80] %vm512, %v511
    %v529 = vld.sshfl [vmem:[#allocation1] sm:$0xff pattern:$0x99999810]
    %s530 = scalar_lea.vmem [#allocation1], 16
    %v531 = vld.sshfl [vmem:[%s530] sm:$0xff pattern:$0x98100000]
    %vm532 = vcmask 1047556
    %v533 = vsel %vm532, %v531, %v529
    %534 = vrot.lane.b32.xlu0 %v533, 88
    %v535 = vpop.permute.xlu0 %534
    %vm536 = vcmask 31744
    %s537 = scalar_lea.vmem [#allocation0], 18
    %538 = vst.msk [vmem:[%s537] sm:$0x1] %vm536, %v535
    %s539 = scalar_lea.vmem [#allocation0], 529
    %540 = vst.msk [vmem:[%s539] sm:$0x2] %vm536, %v535
    %s541 = scalar_lea.vmem [#allocation0], 80
    %542 = vst.msk [vmem:[%s541] sm:$0x4] %vm536, %v535
    %s543 = scalar_lea.vmem [#allocation0], 591
    %544 = vst.msk [vmem:[%s543] sm:$0x8] %vm536, %v535
    %s545 = scalar_lea.vmem [#allocation0], 142
    %546 = vst.msk [vmem:[%s545] sm:$0x10] %vm536, %v535
    %s547 = scalar_lea.vmem [#allocation0], 653
    %548 = vst.msk [vmem:[%s547] sm:$0x20] %vm536, %v535
    %s549 = scalar_lea.vmem [#allocation0], 204
    %550 = vst.msk [vmem:[%s549] sm:$0x40] %vm536, %v535
    %s551 = scalar_lea.vmem [#allocation0], 715
    %552 = vst.msk [vmem:[%s551] sm:$0x80] %vm536, %v535
    %s553 = scalar_lea.vmem [#allocation1], 32
    %v554 = vld.sshfl [vmem:[%s553] sm:$0xff pattern:$0x99999810]
    %s555 = scalar_lea.vmem [#allocation1], 48
    %v556 = vld.sshfl [vmem:[%s555] sm:$0xff pattern:$0x98100000]
    %vm557 = vcmask 1047556
    %v558 = vsel %vm557, %v556, %v554
    %559 = vrot.lane.b32.xlu0 %v558, 88
    %v560 = vpop.permute.xlu0 %559
    %vm561 = vcmask 31744
    %s562 = scalar_lea.vmem [#allocation0], 274
    %563 = vst.msk [vmem:[%s562] sm:$0x1] %vm561, %v560
    %s564 = scalar_lea.vmem [#allocation0], 785
    %565 = vst.msk [vmem:[%s564] sm:$0x2] %vm561, %v560
    %s566 = scalar_lea.vmem [#allocation0], 336
    %567 = vst.msk [vmem:[%s566] sm:$0x4] %vm561, %v560
    %s568 = scalar_lea.vmem [#allocation0], 847
    %569 = vst.msk [vmem:[%s568] sm:$0x8] %vm561, %v560
    %s570 = scalar_lea.vmem [#allocation0], 398
    %571 = vst.msk [vmem:[%s570] sm:$0x10] %vm561, %v560
    %s572 = scalar_lea.vmem [#allocation0], 909
    %573 = vst.msk [vmem:[%s572] sm:$0x20] %vm561, %v560
    %s574 = scalar_lea.vmem [#allocation0], 460
    %575 = vst.msk [vmem:[%s574] sm:$0x40] %vm561, %v560
    %s576 = scalar_lea.vmem [#allocation0], 971
    %577 = vst.msk [vmem:[%s576] sm:$0x80] %vm561, %v560
    %v578 = vld.sshfl [vmem:[#allocation1] sm:$0xff pattern:$0x99999810]
    %s579 = scalar_lea.vmem [#allocation1], 16
    %v580 = vld.sshfl [vmem:[%s579] sm:$0xff pattern:$0x98100000]
    %vm581 = vcmask 1047556
    %v582 = vsel %vm581, %v580, %v578
    %583 = vrot.lane.b32.xlu0 %v582, 84
    %v584 = vpop.permute.xlu0 %583
    %vm585 = vcmask 31744
    %s586 = scalar_lea.vmem [#allocation0], 19
    %587 = vst.msk [vmem:[%s586] sm:$0x1] %vm585, %v584
    %s588 = scalar_lea.vmem [#allocation0], 530
    %589 = vst.msk [vmem:[%s588] sm:$0x2] %vm585, %v584
    %s590 = scalar_lea.vmem [#allocation0], 81
    %591 = vst.msk [vmem:[%s590] sm:$0x4] %vm585, %v584
    %s592 = scalar_lea.vmem [#allocation0], 592
    %593 = vst.msk [vmem:[%s592] sm:$0x8] %vm585, %v584
    %s594 = scalar_lea.vmem [#allocation0], 143
    %595 = vst.msk [vmem:[%s594] sm:$0x10] %vm585, %v584
    %s596 = scalar_lea.vmem [#allocation0], 654
    %597 = vst.msk [vmem:[%s596] sm:$0x20] %vm585, %v584
    %s598 = scalar_lea.vmem [#allocation0], 205
    %599 = vst.msk [vmem:[%s598] sm:$0x40] %vm585, %v584
    %s600 = scalar_lea.vmem [#allocation0], 716
    %601 = vst.msk [vmem:[%s600] sm:$0x80] %vm585, %v584
    %s602 = scalar_lea.vmem [#allocation1], 32
    %v603 = vld.sshfl [vmem:[%s602] sm:$0xff pattern:$0x99999810]
    %s604 = scalar_lea.vmem [#allocation1], 48
    %v605 = vld.sshfl [vmem:[%s604] sm:$0xff pattern:$0x98100000]
    %vm606 = vcmask 1047556
    %v607 = vsel %vm606, %v605, %v603
    %608 = vrot.lane.b32.xlu0 %v607, 84
    %v609 = vpop.permute.xlu0 %608
    %vm610 = vcmask 31744
    %s611 = scalar_lea.vmem [#allocation0], 275
    %612 = vst.msk [vmem:[%s611] sm:$0x1] %vm610, %v609
    %s613 = scalar_lea.vmem [#allocation0], 786
    %614 = vst.msk [vmem:[%s613] sm:$0x2] %vm610, %v609
    %s615 = scalar_lea.vmem [#allocation0], 337
    %616 = vst.msk [vmem:[%s615] sm:$0x4] %vm610, %v609
    %s617 = scalar_lea.vmem [#allocation0], 848
    %618 = vst.msk [vmem:[%s617] sm:$0x8] %vm610, %v609
    %s619 = scalar_lea.vmem [#allocation0], 399
    %620 = vst.msk [vmem:[%s619] sm:$0x10] %vm610, %v609
    %s621 = scalar_lea.vmem [#allocation0], 910
    %622 = vst.msk [vmem:[%s621] sm:$0x20] %vm610, %v609
    %s623 = scalar_lea.vmem [#allocation0], 461
    %624 = vst.msk [vmem:[%s623] sm:$0x40] %vm610, %v609
    %s625 = scalar_lea.vmem [#allocation0], 972
    %626 = vst.msk [vmem:[%s625] sm:$0x80] %vm610, %v609
    %v627 = vld.sshfl [vmem:[#allocation1] sm:$0xff pattern:$0x99999810]
    %s628 = scalar_lea.vmem [#allocation1], 16
    %v629 = vld.sshfl [vmem:[%s628] sm:$0xff pattern:$0x98100000]
    %vm630 = vcmask 1047556
    %v631 = vsel %vm630, %v629, %v627
    %632 = vrot.lane.b32.xlu0 %v631, 80
    %v633 = vpop.permute.xlu0 %632
    %vm634 = vcmask 31744
    %s635 = scalar_lea.vmem [#allocation0], 24
    %636 = vst.msk [vmem:[%s635] sm:$0x1] %vm634, %v633
    %s637 = scalar_lea.vmem [#allocation0], 535
    %638 = vst.msk [vmem:[%s637] sm:$0x2] %vm634, %v633
    %s639 = scalar_lea.vmem [#allocation0], 86
    %640 = vst.msk [vmem:[%s639] sm:$0x4] %vm634, %v633
    %s641 = scalar_lea.vmem [#allocation0], 597
    %642 = vst.msk [vmem:[%s641] sm:$0x8] %vm634, %v633
    %s643 = scalar_lea.vmem [#allocation0], 148
    %644 = vst.msk [vmem:[%s643] sm:$0x10] %vm634, %v633
    %s645 = scalar_lea.vmem [#allocation0], 659
    %646 = vst.msk [vmem:[%s645] sm:$0x20] %vm634, %v633
    %s647 = scalar_lea.vmem [#allocation0], 210
    %648 = vst.msk [vmem:[%s647] sm:$0x40] %vm634, %v633
    %s649 = scalar_lea.vmem [#allocation0], 721
    %650 = vst.msk [vmem:[%s649] sm:$0x80] %vm634, %v633
    %s651 = scalar_lea.vmem [#allocation1], 32
    %v652 = vld.sshfl [vmem:[%s651] sm:$0xff pattern:$0x99999810]
    %s653 = scalar_lea.vmem [#allocation1], 48
    %v654 = vld.sshfl [vmem:[%s653] sm:$0xff pattern:$0x98100000]
    %vm655 = vcmask 1047556
    %v656 = vsel %vm655, %v654, %v652
    %657 = vrot.lane.b32.xlu0 %v656, 80
    %v658 = vpop.permute.xlu0 %657
    %vm659 = vcmask 31744
    %s660 = scalar_lea.vmem [#allocation0], 280
    %661 = vst.msk [vmem:[%s660] sm:$0x1] %vm659, %v658
    %s662 = scalar_lea.vmem [#allocation0], 791
    %663 = vst.msk [vmem:[%s662] sm:$0x2] %vm659, %v658
    %s664 = scalar_lea.vmem [#allocation0], 342
    %665 = vst.msk [vmem:[%s664] sm:$0x4] %vm659, %v658
    %s666 = scalar_lea.vmem [#allocation0], 853
    %667 = vst.msk [vmem:[%s666] sm:$0x8] %vm659, %v658
    %s668 = scalar_lea.vmem [#allocation0], 404
    %669 = vst.msk [vmem:[%s668] sm:$0x10] %vm659, %v658
    %s670 = scalar_lea.vmem [#allocation0], 915
    %671 = vst.msk [vmem:[%s670] sm:$0x20] %vm659, %v658
    %s672 = scalar_lea.vmem [#allocation0], 466
    %673 = vst.msk [vmem:[%s672] sm:$0x40] %vm659, %v658
    %s674 = scalar_lea.vmem [#allocation0], 977
    %675 = vst.msk [vmem:[%s674] sm:$0x80] %vm659, %v658
    %v676 = vld.sshfl [vmem:[#allocation1] sm:$0xff pattern:$0x99999810]
    %s677 = scalar_lea.vmem [#allocation1], 16
    %v678 = vld.sshfl [vmem:[%s677] sm:$0xff pattern:$0x98100000]
    %vm679 = vcmask 1047556
    %v680 = vsel %vm679, %v678, %v676
    %681 = vrot.lane.b32.xlu0 %v680, 76
    %v682 = vpop.permute.xlu0 %681
    %vm683 = vcmask 31744
    %s684 = scalar_lea.vmem [#allocation0], 25
    %685 = vst.msk [vmem:[%s684] sm:$0x1] %vm683, %v682
    %s686 = scalar_lea.vmem [#allocation0], 536
    %687 = vst.msk [vmem:[%s686] sm:$0x2] %vm683, %v682
    %s688 = scalar_lea.vmem [#allocation0], 87
    %689 = vst.msk [vmem:[%s688] sm:$0x4] %vm683, %v682
    %s690 = scalar_lea.vmem [#allocation0], 598
    %691 = vst.msk [vmem:[%s690] sm:$0x8] %vm683, %v682
    %s692 = scalar_lea.vmem [#allocation0], 149
    %693 = vst.msk [vmem:[%s692] sm:$0x10] %vm683, %v682
    %s694 = scalar_lea.vmem [#allocation0], 660
    %695 = vst.msk [vmem:[%s694] sm:$0x20] %vm683, %v682
    %s696 = scalar_lea.vmem [#allocation0], 211
    %697 = vst.msk [vmem:[%s696] sm:$0x40] %vm683, %v682
    %s698 = scalar_lea.vmem [#allocation0], 722
    %699 = vst.msk [vmem:[%s698] sm:$0x80] %vm683, %v682
    %s700 = scalar_lea.vmem [#allocation1], 32
    %v701 = vld.sshfl [vmem:[%s700] sm:$0xff pattern:$0x99999810]
    %s702 = scalar_lea.vmem [#allocation1], 48
    %v703 = vld.sshfl [vmem:[%s702] sm:$0xff pattern:$0x98100000]
    %vm704 = vcmask 1047556
    %v705 = vsel %vm704, %v703, %v701
    %706 = vrot.lane.b32.xlu0 %v705, 76
    %v707 = vpop.permute.xlu0 %706
    %vm708 = vcmask 31744
    %s709 = scalar_lea.vmem [#allocation0], 281
    %710 = vst.msk [vmem:[%s709] sm:$0x1] %vm708, %v707
    %s711 = scalar_lea.vmem [#allocation0], 792
    %712 = vst.msk [vmem:[%s711] sm:$0x2] %vm708, %v707
    %s713 = scalar_lea.vmem [#allocation0], 343
    %714 = vst.msk [vmem:[%s713] sm:$0x4] %vm708, %v707
    %s715 = scalar_lea.vmem [#allocation0], 854
    %716 = vst.msk [vmem:[%s715] sm:$0x8] %vm708, %v707
    %s717 = scalar_lea.vmem [#allocation0], 405
    %718 = vst.msk [vmem:[%s717] sm:$0x10] %vm708, %v707
    %s719 = scalar_lea.vmem [#allocation0], 916
    %720 = vst.msk [vmem:[%s719] sm:$0x20] %vm708, %v707
    %s721 = scalar_lea.vmem [#allocation0], 467
    %722 = vst.msk [vmem:[%s721] sm:$0x40] %vm708, %v707
    %s723 = scalar_lea.vmem [#allocation0], 978
    %724 = vst.msk [vmem:[%s723] sm:$0x80] %vm708, %v707
    %v725 = vld.sshfl [vmem:[#allocation1] sm:$0xff pattern:$0x99999810]
    %s726 = scalar_lea.vmem [#allocation1], 16
    %v727 = vld.sshfl [vmem:[%s726] sm:$0xff pattern:$0x98100000]
    %vm728 = vcmask 1047556
    %v729 = vsel %vm728, %v727, %v725
    %730 = vrot.lane.b32.xlu0 %v729, 72
    %v731 = vpop.permute.xlu0 %730
    %vm732 = vcmask 31744
    %s733 = scalar_lea.vmem [#allocation0], 26
    %734 = vst.msk [vmem:[%s733] sm:$0x1] %vm732, %v731
    %s735 = scalar_lea.vmem [#allocation0], 537
    %736 = vst.msk [vmem:[%s735] sm:$0x2] %vm732, %v731
    %s737 = scalar_lea.vmem [#allocation0], 88
    %738 = vst.msk [vmem:[%s737] sm:$0x4] %vm732, %v731
    %s739 = scalar_lea.vmem [#allocation0], 599
    %740 = vst.msk [vmem:[%s739] sm:$0x8] %vm732, %v731
    %s741 = scalar_lea.vmem [#allocation0], 150
    %742 = vst.msk [vmem:[%s741] sm:$0x10] %vm732, %v731
    %s743 = scalar_lea.vmem [#allocation0], 661
    %744 = vst.msk [vmem:[%s743] sm:$0x20] %vm732, %v731
    %s745 = scalar_lea.vmem [#allocation0], 212
    %746 = vst.msk [vmem:[%s745] sm:$0x40] %vm732, %v731
    %s747 = scalar_lea.vmem [#allocation0], 723
    %748 = vst.msk [vmem:[%s747] sm:$0x80] %vm732, %v731
    %s749 = scalar_lea.vmem [#allocation1], 32
    %v750 = vld.sshfl [vmem:[%s749] sm:$0xff pattern:$0x99999810]
    %s751 = scalar_lea.vmem [#allocation1], 48
    %v752 = vld.sshfl [vmem:[%s751] sm:$0xff pattern:$0x98100000]
    %vm753 = vcmask 1047556
    %v754 = vsel %vm753, %v752, %v750
    %755 = vrot.lane.b32.xlu0 %v754, 72
    %v756 = vpop.permute.xlu0 %755
    %vm757 = vcmask 31744
    %s758 = scalar_lea.vmem [#allocation0], 282
    %759 = vst.msk [vmem:[%s758] sm:$0x1] %vm757, %v756
    %s760 = scalar_lea.vmem [#allocation0], 793
    %761 = vst.msk [vmem:[%s760] sm:$0x2] %vm757, %v756
    %s762 = scalar_lea.vmem [#allocation0], 344
    %763 = vst.msk [vmem:[%s762] sm:$0x4] %vm757, %v756
    %s764 = scalar_lea.vmem [#allocation0], 855
    %765 = vst.msk [vmem:[%s764] sm:$0x8] %vm757, %v756
    %s766 = scalar_lea.vmem [#allocation0], 406
    %767 = vst.msk [vmem:[%s766] sm:$0x10] %vm757, %v756
    %s768 = scalar_lea.vmem [#allocation0], 917
    %769 = vst.msk [vmem:[%s768] sm:$0x20] %vm757, %v756
    %s770 = scalar_lea.vmem [#allocation0], 468
    %771 = vst.msk [vmem:[%s770] sm:$0x40] %vm757, %v756
    %s772 = scalar_lea.vmem [#allocation0], 979
    %773 = vst.msk [vmem:[%s772] sm:$0x80] %vm757, %v756
    %v774 = vld.sshfl [vmem:[#allocation1] sm:$0xff pattern:$0x99999810]
    %s775 = scalar_lea.vmem [#allocation1], 16
    %v776 = vld.sshfl [vmem:[%s775] sm:$0xff pattern:$0x98100000]
    %vm777 = vcmask 1047556
    %v778 = vsel %vm777, %v776, %v774
    %779 = vrot.lane.b32.xlu0 %v778, 68
    %v780 = vpop.permute.xlu0 %779
    %vm781 = vcmask 31744
    %s782 = scalar_lea.vmem [#allocation0], 27
    %783 = vst.msk [vmem:[%s782] sm:$0x1] %vm781, %v780
    %s784 = scalar_lea.vmem [#allocation0], 538
    %785 = vst.msk [vmem:[%s784] sm:$0x2] %vm781, %v780
    %s786 = scalar_lea.vmem [#allocation0], 89
    %787 = vst.msk [vmem:[%s786] sm:$0x4] %vm781, %v780
    %s788 = scalar_lea.vmem [#allocation0], 600
    %789 = vst.msk [vmem:[%s788] sm:$0x8] %vm781, %v780
    %s790 = scalar_lea.vmem [#allocation0], 151
    %791 = vst.msk [vmem:[%s790] sm:$0x10] %vm781, %v780
    %s792 = scalar_lea.vmem [#allocation0], 662
    %793 = vst.msk [vmem:[%s792] sm:$0x20] %vm781, %v780
    %s794 = scalar_lea.vmem [#allocation0], 213
    %795 = vst.msk [vmem:[%s794] sm:$0x40] %vm781, %v780
    %s796 = scalar_lea.vmem [#allocation0], 724
    %797 = vst.msk [vmem:[%s796] sm:$0x80] %vm781, %v780
    %s798 = scalar_lea.vmem [#allocation1], 32
    %v799 = vld.sshfl [vmem:[%s798] sm:$0xff pattern:$0x99999810]
    %s800 = scalar_lea.vmem [#allocation1], 48
    %v801 = vld.sshfl [vmem:[%s800] sm:$0xff pattern:$0x98100000]
    %vm802 = vcmask 1047556
    %v803 = vsel %vm802, %v801, %v799
    %804 = vrot.lane.b32.xlu0 %v803, 68
    %v805 = vpop.permute.xlu0 %804
    %vm806 = vcmask 31744
    %s807 = scalar_lea.vmem [#allocation0], 283
    %808 = vst.msk [vmem:[%s807] sm:$0x1] %vm806, %v805
    %s809 = scalar_lea.vmem [#allocation0], 794
    %810 = vst.msk [vmem:[%s809] sm:$0x2] %vm806, %v805
    %s811 = scalar_lea.vmem [#allocation0], 345
    %812 = vst.msk [vmem:[%s811] sm:$0x4] %vm806, %v805
    %s813 = scalar_lea.vmem [#allocation0], 856
    %814 = vst.msk [vmem:[%s813] sm:$0x8] %vm806, %v805
    %s815 = scalar_lea.vmem [#allocation0], 407
    %816 = vst.msk [vmem:[%s815] sm:$0x10] %vm806, %v805
    %s817 = scalar_lea.vmem [#allocation0], 918
    %818 = vst.msk [vmem:[%s817] sm:$0x20] %vm806, %v805
    %s819 = scalar_lea.vmem [#allocation0], 469
    %820 = vst.msk [vmem:[%s819] sm:$0x40] %vm806, %v805
    %s821 = scalar_lea.vmem [#allocation0], 980
    %822 = vst.msk [vmem:[%s821] sm:$0x80] %vm806, %v805
    %v823 = vld.sshfl [vmem:[#allocation1] sm:$0xff pattern:$0x99999810]
    %s824 = scalar_lea.vmem [#allocation1], 16
    %v825 = vld.sshfl [vmem:[%s824] sm:$0xff pattern:$0x98100000]
    %vm826 = vcmask 1047556
    %v827 = vsel %vm826, %v825, %v823
    %828 = vrot.lane.b32.xlu0 %v827, 64
    %v829 = vpop.permute.xlu0 %828
    %vm830 = vcmask 31744
    %s831 = scalar_lea.vmem [#allocation0], 32
    %832 = vst.msk [vmem:[%s831] sm:$0x1] %vm830, %v829
    %s833 = scalar_lea.vmem [#allocation0], 543
    %834 = vst.msk [vmem:[%s833] sm:$0x2] %vm830, %v829
    %s835 = scalar_lea.vmem [#allocation0], 94
    %836 = vst.msk [vmem:[%s835] sm:$0x4] %vm830, %v829
    %s837 = scalar_lea.vmem [#allocation0], 605
    %838 = vst.msk [vmem:[%s837] sm:$0x8] %vm830, %v829
    %s839 = scalar_lea.vmem [#allocation0], 156
    %840 = vst.msk [vmem:[%s839] sm:$0x10] %vm830, %v829
    %s841 = scalar_lea.vmem [#allocation0], 667
    %842 = vst.msk [vmem:[%s841] sm:$0x20] %vm830, %v829
    %s843 = scalar_lea.vmem [#allocation0], 218
    %844 = vst.msk [vmem:[%s843] sm:$0x40] %vm830, %v829
    %s845 = scalar_lea.vmem [#allocation0], 729
    %846 = vst.msk [vmem:[%s845] sm:$0x80] %vm830, %v829
    %s847 = scalar_lea.vmem [#allocation1], 32
    %v848 = vld.sshfl [vmem:[%s847] sm:$0xff pattern:$0x99999810]
    %s849 = scalar_lea.vmem [#allocation1], 48
    %v850 = vld.sshfl [vmem:[%s849] sm:$0xff pattern:$0x98100000]
    %vm851 = vcmask 1047556
    %v852 = vsel %vm851, %v850, %v848
    %853 = vrot.lane.b32.xlu0 %v852, 64
    %v854 = vpop.permute.xlu0 %853
    %vm855 = vcmask 31744
    %s856 = scalar_lea.vmem [#allocation0], 288
    %857 = vst.msk [vmem:[%s856] sm:$0x1] %vm855, %v854
    %s858 = scalar_lea.vmem [#allocation0], 799
    %859 = vst.msk [vmem:[%s858] sm:$0x2] %vm855, %v854
    %s860 = scalar_lea.vmem [#allocation0], 350
    %861 = vst.msk [vmem:[%s860] sm:$0x4] %vm855, %v854
    %s862 = scalar_lea.vmem [#allocation0], 861
    %863 = vst.msk [vmem:[%s862] sm:$0x8] %vm855, %v854
    %s864 = scalar_lea.vmem [#allocation0], 412
    %865 = vst.msk [vmem:[%s864] sm:$0x10] %vm855, %v854
    %s866 = scalar_lea.vmem [#allocation0], 923
    %867 = vst.msk [vmem:[%s866] sm:$0x20] %vm855, %v854
    %s868 = scalar_lea.vmem [#allocation0], 474
    %869 = vst.msk [vmem:[%s868] sm:$0x40] %vm855, %v854
    %s870 = scalar_lea.vmem [#allocation0], 985
    %871 = vst.msk [vmem:[%s870] sm:$0x80] %vm855, %v854
    %v872 = vld.sshfl [vmem:[#allocation1] sm:$0xff pattern:$0x99999810]
    %s873 = scalar_lea.vmem [#allocation1], 16
    %v874 = vld.sshfl [vmem:[%s873] sm:$0xff pattern:$0x98100000]
    %vm875 = vcmask 1047556
    %v876 = vsel %vm875, %v874, %v872
    %877 = vrot.lane.b32.xlu0 %v876, 60
    %v878 = vpop.permute.xlu0 %877
    %vm879 = vcmask 31744
    %s880 = scalar_lea.vmem [#allocation0], 33
    %881 = vst.msk [vmem:[%s880] sm:$0x1] %vm879, %v878
    %s882 = scalar_lea.vmem [#allocation0], 544
    %883 = vst.msk [vmem:[%s882] sm:$0x2] %vm879, %v878
    %s884 = scalar_lea.vmem [#allocation0], 95
    %885 = vst.msk [vmem:[%s884] sm:$0x4] %vm879, %v878
    %s886 = scalar_lea.vmem [#allocation0], 606
    %887 = vst.msk [vmem:[%s886] sm:$0x8] %vm879, %v878
    %s888 = scalar_lea.vmem [#allocation0], 157
    %889 = vst.msk [vmem:[%s888] sm:$0x10] %vm879, %v878
    %s890 = scalar_lea.vmem [#allocation0], 668
    %891 = vst.msk [vmem:[%s890] sm:$0x20] %vm879, %v878
    %s892 = scalar_lea.vmem [#allocation0], 219
    %893 = vst.msk [vmem:[%s892] sm:$0x40] %vm879, %v878
    %s894 = scalar_lea.vmem [#allocation0], 730
    %895 = vst.msk [vmem:[%s894] sm:$0x80] %vm879, %v878
    %s896 = scalar_lea.vmem [#allocation1], 32
    %v897 = vld.sshfl [vmem:[%s896] sm:$0xff pattern:$0x99999810]
    %s898 = scalar_lea.vmem [#allocation1], 48
    %v899 = vld.sshfl [vmem:[%s898] sm:$0xff pattern:$0x98100000]
    %vm900 = vcmask 1047556
    %v901 = vsel %vm900, %v899, %v897
    %902 = vrot.lane.b32.xlu0 %v901, 60
    %v903 = vpop.permute.xlu0 %902
    %vm904 = vcmask 31744
    %s905 = scalar_lea.vmem [#allocation0], 289
    %906 = vst.msk [vmem:[%s905] sm:$0x1] %vm904, %v903
    %s907 = scalar_lea.vmem [#allocation0], 800
    %908 = vst.msk [vmem:[%s907] sm:$0x2] %vm904, %v903
    %s909 = scalar_lea.vmem [#allocation0], 351
    %910 = vst.msk [vmem:[%s909] sm:$0x4] %vm904, %v903
    %s911 = scalar_lea.vmem [#allocation0], 862
    %912 = vst.msk [vmem:[%s911] sm:$0x8] %vm904, %v903
    %s913 = scalar_lea.vmem [#allocation0], 413
    %914 = vst.msk [vmem:[%s913] sm:$0x10] %vm904, %v903
    %s915 = scalar_lea.vmem [#allocation0], 924
    %916 = vst.msk [vmem:[%s915] sm:$0x20] %vm904, %v903
    %s917 = scalar_lea.vmem [#allocation0], 475
    %918 = vst.msk [vmem:[%s917] sm:$0x40] %vm904, %v903
    %s919 = scalar_lea.vmem [#allocation0], 986
    %920 = vst.msk [vmem:[%s919] sm:$0x80] %vm904, %v903
    %v921 = vld.sshfl [vmem:[#allocation1] sm:$0xff pattern:$0x99999810]
    %s922 = scalar_lea.vmem [#allocation1], 16
    %v923 = vld.sshfl [vmem:[%s922] sm:$0xff pattern:$0x98100000]
    %vm924 = vcmask 1047556
    %v925 = vsel %vm924, %v923, %v921
    %926 = vrot.lane.b32.xlu0 %v925, 56
    %v927 = vpop.permute.xlu0 %926
    %vm928 = vcmask 31744
    %s929 = scalar_lea.vmem [#allocation0], 34
    %930 = vst.msk [vmem:[%s929] sm:$0x1] %vm928, %v927
    %s931 = scalar_lea.vmem [#allocation0], 545
    %932 = vst.msk [vmem:[%s931] sm:$0x2] %vm928, %v927
    %s933 = scalar_lea.vmem [#allocation0], 96
    %934 = vst.msk [vmem:[%s933] sm:$0x4] %vm928, %v927
    %s935 = scalar_lea.vmem [#allocation0], 607
    %936 = vst.msk [vmem:[%s935] sm:$0x8] %vm928, %v927
    %s937 = scalar_lea.vmem [#allocation0], 158
    %938 = vst.msk [vmem:[%s937] sm:$0x10] %vm928, %v927
    %s939 = scalar_lea.vmem [#allocation0], 669
    %940 = vst.msk [vmem:[%s939] sm:$0x20] %vm928, %v927
    %s941 = scalar_lea.vmem [#allocation0], 220
    %942 = vst.msk [vmem:[%s941] sm:$0x40] %vm928, %v927
    %s943 = scalar_lea.vmem [#allocation0], 731
    %944 = vst.msk [vmem:[%s943] sm:$0x80] %vm928, %v927
    %s945 = scalar_lea.vmem [#allocation1], 32
    %v946 = vld.sshfl [vmem:[%s945] sm:$0xff pattern:$0x99999810]
    %s947 = scalar_lea.vmem [#allocation1], 48
    %v948 = vld.sshfl [vmem:[%s947] sm:$0xff pattern:$0x98100000]
    %vm949 = vcmask 1047556
    %v950 = vsel %vm949, %v948, %v946
    %951 = vrot.lane.b32.xlu0 %v950, 56
    %v952 = vpop.permute.xlu0 %951
    %vm953 = vcmask 31744
    %s954 = scalar_lea.vmem [#allocation0], 290
    %955 = vst.msk [vmem:[%s954] sm:$0x1] %vm953, %v952
    %s956 = scalar_lea.vmem [#allocation0], 801
    %957 = vst.msk [vmem:[%s956] sm:$0x2] %vm953, %v952
    %s958 = scalar_lea.vmem [#allocation0], 352
    %959 = vst.msk [vmem:[%s958] sm:$0x4] %vm953, %v952
    %s960 = scalar_lea.vmem [#allocation0], 863
    %961 = vst.msk [vmem:[%s960] sm:$0x8] %vm953, %v952
    %s962 = scalar_lea.vmem [#allocation0], 414
    %963 = vst.msk [vmem:[%s962] sm:$0x10] %vm953, %v952
    %s964 = scalar_lea.vmem [#allocation0], 925
    %965 = vst.msk [vmem:[%s964] sm:$0x20] %vm953, %v952
    %s966 = scalar_lea.vmem [#allocation0], 476
    %967 = vst.msk [vmem:[%s966] sm:$0x40] %vm953, %v952
    %s968 = scalar_lea.vmem [#allocation0], 987
    %969 = vst.msk [vmem:[%s968] sm:$0x80] %vm953, %v952
    %v970 = vld.sshfl [vmem:[#allocation1] sm:$0xff pattern:$0x99999810]
    %s971 = scalar_lea.vmem [#allocation1], 16
    %v972 = vld.sshfl [vmem:[%s971] sm:$0xff pattern:$0x98100000]
    %vm973 = vcmask 1047556
    %v974 = vsel %vm973, %v972, %v970
    %975 = vrot.lane.b32.xlu0 %v974, 52
    %v976 = vpop.permute.xlu0 %975
    %vm977 = vcmask 31744
    %s978 = scalar_lea.vmem [#allocation0], 35
    %979 = vst.msk [vmem:[%s978] sm:$0x1] %vm977, %v976
    %s980 = scalar_lea.vmem [#allocation0], 546
    %981 = vst.msk [vmem:[%s980] sm:$0x2] %vm977, %v976
    %s982 = scalar_lea.vmem [#allocation0], 97
    %983 = vst.msk [vmem:[%s982] sm:$0x4] %vm977, %v976
    %s984 = scalar_lea.vmem [#allocation0], 608
    %985 = vst.msk [vmem:[%s984] sm:$0x8] %vm977, %v976
    %s986 = scalar_lea.vmem [#allocation0], 159
    %987 = vst.msk [vmem:[%s986] sm:$0x10] %vm977, %v976
    %s988 = scalar_lea.vmem [#allocation0], 670
    %989 = vst.msk [vmem:[%s988] sm:$0x20] %vm977, %v976
    %s990 = scalar_lea.vmem [#allocation0], 221
    %991 = vst.msk [vmem:[%s990] sm:$0x40] %vm977, %v976
    %s992 = scalar_lea.vmem [#allocation0], 732
    %993 = vst.msk [vmem:[%s992] sm:$0x80] %vm977, %v976
    %s994 = scalar_lea.vmem [#allocation1], 32
    %v995 = vld.sshfl [vmem:[%s994] sm:$0xff pattern:$0x99999810]
    %s996 = scalar_lea.vmem [#allocation1], 48
    %v997 = vld.sshfl [vmem:[%s996] sm:$0xff pattern:$0x98100000]
    %vm998 = vcmask 1047556
    %v999 = vsel %vm998, %v997, %v995
    %1000 = vrot.lane.b32.xlu0 %v999, 52
    %v1001 = vpop.permute.xlu0 %1000
    %vm1002 = vcmask 31744
    %s1003 = scalar_lea.vmem [#allocation0], 291
    %1004 = vst.msk [vmem:[%s1003] sm:$0x1] %vm1002, %v1001
    %s1005 = scalar_lea.vmem [#allocation0], 802
    %1006 = vst.msk [vmem:[%s1005] sm:$0x2] %vm1002, %v1001
    %s1007 = scalar_lea.vmem [#allocation0], 353
    %1008 = vst.msk [vmem:[%s1007] sm:$0x4] %vm1002, %v1001
    %s1009 = scalar_lea.vmem [#allocation0], 864
    %1010 = vst.msk [vmem:[%s1009] sm:$0x8] %vm1002, %v1001
    %s1011 = scalar_lea.vmem [#allocation0], 415
    %1012 = vst.msk [vmem:[%s1011] sm:$0x10] %vm1002, %v1001
    %s1013 = scalar_lea.vmem [#allocation0], 926
    %1014 = vst.msk [vmem:[%s1013] sm:$0x20] %vm1002, %v1001
    %s1015 = scalar_lea.vmem [#allocation0], 477
    %1016 = vst.msk [vmem:[%s1015] sm:$0x40] %vm1002, %v1001
    %s1017 = scalar_lea.vmem [#allocation0], 988
    %1018 = vst.msk [vmem:[%s1017] sm:$0x80] %vm1002, %v1001
    %v1019 = vld.sshfl [vmem:[#allocation1] sm:$0xff pattern:$0x99999810]
    %s1020 = scalar_lea.vmem [#allocation1], 16
    %v1021 = vld.sshfl [vmem:[%s1020] sm:$0xff pattern:$0x98100000]
    %vm1022 = vcmask 1047556
    %v1023 = vsel %vm1022, %v1021, %v1019
    %1024 = vrot.lane.b32.xlu0 %v1023, 48
    %v1025 = vpop.permute.xlu0 %1024
    %vm1026 = vcmask 31744
    %s1027 = scalar_lea.vmem [#allocation0], 40
    %1028 = vst.msk [vmem:[%s1027] sm:$0x1] %vm1026, %v1025
    %s1029 = scalar_lea.vmem [#allocation0], 551
    %1030 = vst.msk [vmem:[%s1029] sm:$0x2] %vm1026, %v1025
    %s1031 = scalar_lea.vmem [#allocation0], 102
    %1032 = vst.msk [vmem:[%s1031] sm:$0x4] %vm1026, %v1025
    %s1033 = scalar_lea.vmem [#allocation0], 613
    %1034 = vst.msk [vmem:[%s1033] sm:$0x8] %vm1026, %v1025
    %s1035 = scalar_lea.vmem [#allocation0], 164
    %1036 = vst.msk [vmem:[%s1035] sm:$0x10] %vm1026, %v1025
    %s1037 = scalar_lea.vmem [#allocation0], 675
    %1038 = vst.msk [vmem:[%s1037] sm:$0x20] %vm1026, %v1025
    %s1039 = scalar_lea.vmem [#allocation0], 226
    %1040 = vst.msk [vmem:[%s1039] sm:$0x40] %vm1026, %v1025
    %s1041 = scalar_lea.vmem [#allocation0], 737
    %1042 = vst.msk [vmem:[%s1041] sm:$0x80] %vm1026, %v1025
    %s1043 = scalar_lea.vmem [#allocation1], 32
    %v1044 = vld.sshfl [vmem:[%s1043] sm:$0xff pattern:$0x99999810]
    %s1045 = scalar_lea.vmem [#allocation1], 48
    %v1046 = vld.sshfl [vmem:[%s1045] sm:$0xff pattern:$0x98100000]
    %vm1047 = vcmask 1047556
    %v1048 = vsel %vm1047, %v1046, %v1044
    %1049 = vrot.lane.b32.xlu0 %v1048, 48
    %v1050 = vpop.permute.xlu0 %1049
    %vm1051 = vcmask 31744
    %s1052 = scalar_lea.vmem [#allocation0], 296
    %1053 = vst.msk [vmem:[%s1052] sm:$0x1] %vm1051, %v1050
    %s1054 = scalar_lea.vmem [#allocation0], 807
    %1055 = vst.msk [vmem:[%s1054] sm:$0x2] %vm1051, %v1050
    %s1056 = scalar_lea.vmem [#allocation0], 358
    %1057 = vst.msk [vmem:[%s1056] sm:$0x4] %vm1051, %v1050
    %s1058 = scalar_lea.vmem [#allocation0], 869
    %1059 = vst.msk [vmem:[%s1058] sm:$0x8] %vm1051, %v1050
    %s1060 = scalar_lea.vmem [#allocation0], 420
    %1061 = vst.msk [vmem:[%s1060] sm:$0x10] %vm1051, %v1050
    %s1062 = scalar_lea.vmem [#allocation0], 931
    %1063 = vst.msk [vmem:[%s1062] sm:$0x20] %vm1051, %v1050
    %s1064 = scalar_lea.vmem [#allocation0], 482
    %1065 = vst.msk [vmem:[%s1064] sm:$0x40] %vm1051, %v1050
    %s1066 = scalar_lea.vmem [#allocation0], 993
    %1067 = vst.msk [vmem:[%s1066] sm:$0x80] %vm1051, %v1050
    %v1068 = vld.sshfl [vmem:[#allocation1] sm:$0xff pattern:$0x99999810]
    %s1069 = scalar_lea.vmem [#allocation1], 16
    %v1070 = vld.sshfl [vmem:[%s1069] sm:$0xff pattern:$0x98100000]
    %vm1071 = vcmask 1047556
    %v1072 = vsel %vm1071, %v1070, %v1068
    %1073 = vrot.lane.b32.xlu0 %v1072, 44
    %v1074 = vpop.permute.xlu0 %1073
    %vm1075 = vcmask 31744
    %s1076 = scalar_lea.vmem [#allocation0], 41
    %1077 = vst.msk [vmem:[%s1076] sm:$0x1] %vm1075, %v1074
    %s1078 = scalar_lea.vmem [#allocation0], 552
    %1079 = vst.msk [vmem:[%s1078] sm:$0x2] %vm1075, %v1074
    %s1080 = scalar_lea.vmem [#allocation0], 103
    %1081 = vst.msk [vmem:[%s1080] sm:$0x4] %vm1075, %v1074
    %s1082 = scalar_lea.vmem [#allocation0], 614
    %1083 = vst.msk [vmem:[%s1082] sm:$0x8] %vm1075, %v1074
    %s1084 = scalar_lea.vmem [#allocation0], 165
    %1085 = vst.msk [vmem:[%s1084] sm:$0x10] %vm1075, %v1074
    %s1086 = scalar_lea.vmem [#allocation0], 676
    %1087 = vst.msk [vmem:[%s1086] sm:$0x20] %vm1075, %v1074
    %s1088 = scalar_lea.vmem [#allocation0], 227
    %1089 = vst.msk [vmem:[%s1088] sm:$0x40] %vm1075, %v1074
    %s1090 = scalar_lea.vmem [#allocation0], 738
    %1091 = vst.msk [vmem:[%s1090] sm:$0x80] %vm1075, %v1074
    %s1092 = scalar_lea.vmem [#allocation1], 32
    %v1093 = vld.sshfl [vmem:[%s1092] sm:$0xff pattern:$0x99999810]
    %s1094 = scalar_lea.vmem [#allocation1], 48
    %v1095 = vld.sshfl [vmem:[%s1094] sm:$0xff pattern:$0x98100000]
    %vm1096 = vcmask 1047556
    %v1097 = vsel %vm1096, %v1095, %v1093
    %1098 = vrot.lane.b32.xlu0 %v1097, 44
    %v1099 = vpop.permute.xlu0 %1098
    %vm1100 = vcmask 31744
    %s1101 = scalar_lea.vmem [#allocation0], 297
    %1102 = vst.msk [vmem:[%s1101] sm:$0x1] %vm1100, %v1099
    %s1103 = scalar_lea.vmem [#allocation0], 808
    %1104 = vst.msk [vmem:[%s1103] sm:$0x2] %vm1100, %v1099
    %s1105 = scalar_lea.vmem [#allocation0], 359
    %1106 = vst.msk [vmem:[%s1105] sm:$0x4] %vm1100, %v1099
    %s1107 = scalar_lea.vmem [#allocation0], 870
    %1108 = vst.msk [vmem:[%s1107] sm:$0x8] %vm1100, %v1099
    %s1109 = scalar_lea.vmem [#allocation0], 421
    %1110 = vst.msk [vmem:[%s1109] sm:$0x10] %vm1100, %v1099
    %s1111 = scalar_lea.vmem [#allocation0], 932
    %1112 = vst.msk [vmem:[%s1111] sm:$0x20] %vm1100, %v1099
    %s1113 = scalar_lea.vmem [#allocation0], 483
    %1114 = vst.msk [vmem:[%s1113] sm:$0x40] %vm1100, %v1099
    %s1115 = scalar_lea.vmem [#allocation0], 994
    %1116 = vst.msk [vmem:[%s1115] sm:$0x80] %vm1100, %v1099
    %v1117 = vld.sshfl [vmem:[#allocation1] sm:$0xff pattern:$0x99999810]
    %s1118 = scalar_lea.vmem [#allocation1], 16
    %v1119 = vld.sshfl [vmem:[%s1118] sm:$0xff pattern:$0x98100000]
    %vm1120 = vcmask 1047556
    %v1121 = vsel %vm1120, %v1119, %v1117
    %1122 = vrot.lane.b32.xlu0 %v1121, 40
    %v1123 = vpop.permute.xlu0 %1122
    %vm1124 = vcmask 31744
    %s1125 = scalar_lea.vmem [#allocation0], 42
    %1126 = vst.msk [vmem:[%s1125] sm:$0x1] %vm1124, %v1123
    %s1127 = scalar_lea.vmem [#allocation0], 553
    %1128 = vst.msk [vmem:[%s1127] sm:$0x2] %vm1124, %v1123
    %s1129 = scalar_lea.vmem [#allocation0], 104
    %1130 = vst.msk [vmem:[%s1129] sm:$0x4] %vm1124, %v1123
    %s1131 = scalar_lea.vmem [#allocation0], 615
    %1132 = vst.msk [vmem:[%s1131] sm:$0x8] %vm1124, %v1123
    %s1133 = scalar_lea.vmem [#allocation0], 166
    %1134 = vst.msk [vmem:[%s1133] sm:$0x10] %vm1124, %v1123
    %s1135 = scalar_lea.vmem [#allocation0], 677
    %1136 = vst.msk [vmem:[%s1135] sm:$0x20] %vm1124, %v1123
    %s1137 = scalar_lea.vmem [#allocation0], 228
    %1138 = vst.msk [vmem:[%s1137] sm:$0x40] %vm1124, %v1123
    %s1139 = scalar_lea.vmem [#allocation0], 739
    %1140 = vst.msk [vmem:[%s1139] sm:$0x80] %vm1124, %v1123
    %s1141 = scalar_lea.vmem [#allocation1], 32
    %v1142 = vld.sshfl [vmem:[%s1141] sm:$0xff pattern:$0x99999810]
    %s1143 = scalar_lea.vmem [#allocation1], 48
    %v1144 = vld.sshfl [vmem:[%s1143] sm:$0xff pattern:$0x98100000]
    %vm1145 = vcmask 1047556
    %v1146 = vsel %vm1145, %v1144, %v1142
    %1147 = vrot.lane.b32.xlu0 %v1146, 40
    %v1148 = vpop.permute.xlu0 %1147
    %vm1149 = vcmask 31744
    %s1150 = scalar_lea.vmem [#allocation0], 298
    %1151 = vst.msk [vmem:[%s1150] sm:$0x1] %vm1149, %v1148
    %s1152 = scalar_lea.vmem [#allocation0], 809
    %1153 = vst.msk [vmem:[%s1152] sm:$0x2] %vm1149, %v1148
    %s1154 = scalar_lea.vmem [#allocation0], 360
    %1155 = vst.msk [vmem:[%s1154] sm:$0x4] %vm1149, %v1148
    %s1156 = scalar_lea.vmem [#allocation0], 871
    %1157 = vst.msk [vmem:[%s1156] sm:$0x8] %vm1149, %v1148
    %s1158 = scalar_lea.vmem [#allocation0], 422
    %1159 = vst.msk [vmem:[%s1158] sm:$0x10] %vm1149, %v1148
    %s1160 = scalar_lea.vmem [#allocation0], 933
    %1161 = vst.msk [vmem:[%s1160] sm:$0x20] %vm1149, %v1148
    %s1162 = scalar_lea.vmem [#allocation0], 484
    %1163 = vst.msk [vmem:[%s1162] sm:$0x40] %vm1149, %v1148
    %s1164 = scalar_lea.vmem [#allocation0], 995
    %1165 = vst.msk [vmem:[%s1164] sm:$0x80] %vm1149, %v1148
    %v1166 = vld.sshfl [vmem:[#allocation1] sm:$0xff pattern:$0x99999810]
    %s1167 = scalar_lea.vmem [#allocation1], 16
    %v1168 = vld.sshfl [vmem:[%s1167] sm:$0xff pattern:$0x98100000]
    %vm1169 = vcmask 1047556
    %v1170 = vsel %vm1169, %v1168, %v1166
    %1171 = vrot.lane.b32.xlu0 %v1170, 36
    %v1172 = vpop.permute.xlu0 %1171
    %vm1173 = vcmask 31744
    %s1174 = scalar_lea.vmem [#allocation0], 43
    %1175 = vst.msk [vmem:[%s1174] sm:$0x1] %vm1173, %v1172
    %s1176 = scalar_lea.vmem [#allocation0], 554
    %1177 = vst.msk [vmem:[%s1176] sm:$0x2] %vm1173, %v1172
    %s1178 = scalar_lea.vmem [#allocation0], 105
    %1179 = vst.msk [vmem:[%s1178] sm:$0x4] %vm1173, %v1172
    %s1180 = scalar_lea.vmem [#allocation0], 616
    %1181 = vst.msk [vmem:[%s1180] sm:$0x8] %vm1173, %v1172
    %s1182 = scalar_lea.vmem [#allocation0], 167
    %1183 = vst.msk [vmem:[%s1182] sm:$0x10] %vm1173, %v1172
    %s1184 = scalar_lea.vmem [#allocation0], 678
    %1185 = vst.msk [vmem:[%s1184] sm:$0x20] %vm1173, %v1172
    %s1186 = scalar_lea.vmem [#allocation0], 229
    %1187 = vst.msk [vmem:[%s1186] sm:$0x40] %vm1173, %v1172
    %s1188 = scalar_lea.vmem [#allocation0], 740
    %1189 = vst.msk [vmem:[%s1188] sm:$0x80] %vm1173, %v1172
    %s1190 = scalar_lea.vmem [#allocation1], 32
    %v1191 = vld.sshfl [vmem:[%s1190] sm:$0xff pattern:$0x99999810]
    %s1192 = scalar_lea.vmem [#allocation1], 48
    %v1193 = vld.sshfl [vmem:[%s1192] sm:$0xff pattern:$0x98100000]
    %vm1194 = vcmask 1047556
    %v1195 = vsel %vm1194, %v1193, %v1191
    %1196 = vrot.lane.b32.xlu0 %v1195, 36
    %v1197 = vpop.permute.xlu0 %1196
    %vm1198 = vcmask 31744
    %s1199 = scalar_lea.vmem [#allocation0], 299
    %1200 = vst.msk [vmem:[%s1199] sm:$0x1] %vm1198, %v1197
    %s1201 = scalar_lea.vmem [#allocation0], 810
    %1202 = vst.msk [vmem:[%s1201] sm:$0x2] %vm1198, %v1197
    %s1203 = scalar_lea.vmem [#allocation0], 361
    %1204 = vst.msk [vmem:[%s1203] sm:$0x4] %vm1198, %v1197
    %s1205 = scalar_lea.vmem [#allocation0], 872
    %1206 = vst.msk [vmem:[%s1205] sm:$0x8] %vm1198, %v1197
    %s1207 = scalar_lea.vmem [#allocation0], 423
    %1208 = vst.msk [vmem:[%s1207] sm:$0x10] %vm1198, %v1197
    %s1209 = scalar_lea.vmem [#allocation0], 934
    %1210 = vst.msk [vmem:[%s1209] sm:$0x20] %vm1198, %v1197
    %s1211 = scalar_lea.vmem [#allocation0], 485
    %1212 = vst.msk [vmem:[%s1211] sm:$0x40] %vm1198, %v1197
    %s1213 = scalar_lea.vmem [#allocation0], 996
    %1214 = vst.msk [vmem:[%s1213] sm:$0x80] %vm1198, %v1197
    %v1215 = vld.sshfl [vmem:[#allocation1] sm:$0xff pattern:$0x99999810]
    %s1216 = scalar_lea.vmem [#allocation1], 16
    %v1217 = vld.sshfl [vmem:[%s1216] sm:$0xff pattern:$0x98100000]
    %vm1218 = vcmask 1047556
    %v1219 = vsel %vm1218, %v1217, %v1215
    %1220 = vrot.lane.b32.xlu0 %v1219, 32
    %v1221 = vpop.permute.xlu0 %1220
    %vm1222 = vcmask 31744
    %s1223 = scalar_lea.vmem [#allocation0], 48
    %1224 = vst.msk [vmem:[%s1223] sm:$0x1] %vm1222, %v1221
    %s1225 = scalar_lea.vmem [#allocation0], 559
    %1226 = vst.msk [vmem:[%s1225] sm:$0x2] %vm1222, %v1221
    %s1227 = scalar_lea.vmem [#allocation0], 110
    %1228 = vst.msk [vmem:[%s1227] sm:$0x4] %vm1222, %v1221
    %s1229 = scalar_lea.vmem [#allocation0], 621
    %1230 = vst.msk [vmem:[%s1229] sm:$0x8] %vm1222, %v1221
    %s1231 = scalar_lea.vmem [#allocation0], 172
    %1232 = vst.msk [vmem:[%s1231] sm:$0x10] %vm1222, %v1221
    %s1233 = scalar_lea.vmem [#allocation0], 683
    %1234 = vst.msk [vmem:[%s1233] sm:$0x20] %vm1222, %v1221
    %s1235 = scalar_lea.vmem [#allocation0], 234
    %1236 = vst.msk [vmem:[%s1235] sm:$0x40] %vm1222, %v1221
    %s1237 = scalar_lea.vmem [#allocation0], 745
    %1238 = vst.msk [vmem:[%s1237] sm:$0x80] %vm1222, %v1221
    %s1239 = scalar_lea.vmem [#allocation1], 32
    %v1240 = vld.sshfl [vmem:[%s1239] sm:$0xff pattern:$0x99999810]
    %s1241 = scalar_lea.vmem [#allocation1], 48
    %v1242 = vld.sshfl [vmem:[%s1241] sm:$0xff pattern:$0x98100000]
    %vm1243 = vcmask 1047556
    %v1244 = vsel %vm1243, %v1242, %v1240
    %1245 = vrot.lane.b32.xlu0 %v1244, 32
    %v1246 = vpop.permute.xlu0 %1245
    %vm1247 = vcmask 31744
    %s1248 = scalar_lea.vmem [#allocation0], 304
    %1249 = vst.msk [vmem:[%s1248] sm:$0x1] %vm1247, %v1246
    %s1250 = scalar_lea.vmem [#allocation0], 815
    %1251 = vst.msk [vmem:[%s1250] sm:$0x2] %vm1247, %v1246
    %s1252 = scalar_lea.vmem [#allocation0], 366
    %1253 = vst.msk [vmem:[%s1252] sm:$0x4] %vm1247, %v1246
    %s1254 = scalar_lea.vmem [#allocation0], 877
    %1255 = vst.msk [vmem:[%s1254] sm:$0x8] %vm1247, %v1246
    %s1256 = scalar_lea.vmem [#allocation0], 428
    %1257 = vst.msk [vmem:[%s1256] sm:$0x10] %vm1247, %v1246
    %s1258 = scalar_lea.vmem [#allocation0], 939
    %1259 = vst.msk [vmem:[%s1258] sm:$0x20] %vm1247, %v1246
    %s1260 = scalar_lea.vmem [#allocation0], 490
    %1261 = vst.msk [vmem:[%s1260] sm:$0x40] %vm1247, %v1246
    %s1262 = scalar_lea.vmem [#allocation0], 1001
    %1263 = vst.msk [vmem:[%s1262] sm:$0x80] %vm1247, %v1246
    %v1264 = vld.sshfl [vmem:[#allocation1] sm:$0xff pattern:$0x99999810]
    %s1265 = scalar_lea.vmem [#allocation1], 16
    %v1266 = vld.sshfl [vmem:[%s1265] sm:$0xff pattern:$0x98100000]
    %vm1267 = vcmask 1047556
    %v1268 = vsel %vm1267, %v1266, %v1264
    %1269 = vrot.lane.b32.xlu0 %v1268, 28
    %v1270 = vpop.permute.xlu0 %1269
    %vm1271 = vcmask 31744
    %s1272 = scalar_lea.vmem [#allocation0], 49
    %1273 = vst.msk [vmem:[%s1272] sm:$0x1] %vm1271, %v1270
    %s1274 = scalar_lea.vmem [#allocation0], 560
    %1275 = vst.msk [vmem:[%s1274] sm:$0x2] %vm1271, %v1270
    %s1276 = scalar_lea.vmem [#allocation0], 111
    %1277 = vst.msk [vmem:[%s1276] sm:$0x4] %vm1271, %v1270
    %s1278 = scalar_lea.vmem [#allocation0], 622
    %1279 = vst.msk [vmem:[%s1278] sm:$0x8] %vm1271, %v1270
    %s1280 = scalar_lea.vmem [#allocation0], 173
    %1281 = vst.msk [vmem:[%s1280] sm:$0x10] %vm1271, %v1270
    %s1282 = scalar_lea.vmem [#allocation0], 684
    %1283 = vst.msk [vmem:[%s1282] sm:$0x20] %vm1271, %v1270
    %s1284 = scalar_lea.vmem [#allocation0], 235
    %1285 = vst.msk [vmem:[%s1284] sm:$0x40] %vm1271, %v1270
    %s1286 = scalar_lea.vmem [#allocation0], 746
    %1287 = vst.msk [vmem:[%s1286] sm:$0x80] %vm1271, %v1270
    %s1288 = scalar_lea.vmem [#allocation1], 32
    %v1289 = vld.sshfl [vmem:[%s1288] sm:$0xff pattern:$0x99999810]
    %s1290 = scalar_lea.vmem [#allocation1], 48
    %v1291 = vld.sshfl [vmem:[%s1290] sm:$0xff pattern:$0x98100000]
    %vm1292 = vcmask 1047556
    %v1293 = vsel %vm1292, %v1291, %v1289
    %1294 = vrot.lane.b32.xlu0 %v1293, 28
    %v1295 = vpop.permute.xlu0 %1294
    %vm1296 = vcmask 31744
    %s1297 = scalar_lea.vmem [#allocation0], 305
    %1298 = vst.msk [vmem:[%s1297] sm:$0x1] %vm1296, %v1295
    %s1299 = scalar_lea.vmem [#allocation0], 816
    %1300 = vst.msk [vmem:[%s1299] sm:$0x2] %vm1296, %v1295
    %s1301 = scalar_lea.vmem [#allocation0], 367
    %1302 = vst.msk [vmem:[%s1301] sm:$0x4] %vm1296, %v1295
    %s1303 = scalar_lea.vmem [#allocation0], 878
    %1304 = vst.msk [vmem:[%s1303] sm:$0x8] %vm1296, %v1295
    %s1305 = scalar_lea.vmem [#allocation0], 429
    %1306 = vst.msk [vmem:[%s1305] sm:$0x10] %vm1296, %v1295
    %s1307 = scalar_lea.vmem [#allocation0], 940
    %1308 = vst.msk [vmem:[%s1307] sm:$0x20] %vm1296, %v1295
    %s1309 = scalar_lea.vmem [#allocation0], 491
    %1310 = vst.msk [vmem:[%s1309] sm:$0x40] %vm1296, %v1295
    %s1311 = scalar_lea.vmem [#allocation0], 1002
    %1312 = vst.msk [vmem:[%s1311] sm:$0x80] %vm1296, %v1295
    %v1313 = vld.sshfl [vmem:[#allocation1] sm:$0xff pattern:$0x99999810]
    %s1314 = scalar_lea.vmem [#allocation1], 16
    %v1315 = vld.sshfl [vmem:[%s1314] sm:$0xff pattern:$0x98100000]
    %vm1316 = vcmask 1047556
    %v1317 = vsel %vm1316, %v1315, %v1313
    %1318 = vrot.lane.b32.xlu0 %v1317, 24
    %v1319 = vpop.permute.xlu0 %1318
    %vm1320 = vcmask 31744
    %s1321 = scalar_lea.vmem [#allocation0], 50
    %1322 = vst.msk [vmem:[%s1321] sm:$0x1] %vm1320, %v1319
    %s1323 = scalar_lea.vmem [#allocation0], 561
    %1324 = vst.msk [vmem:[%s1323] sm:$0x2] %vm1320, %v1319
    %s1325 = scalar_lea.vmem [#allocation0], 112
    %1326 = vst.msk [vmem:[%s1325] sm:$0x4] %vm1320, %v1319
    %s1327 = scalar_lea.vmem [#allocation0], 623
    %1328 = vst.msk [vmem:[%s1327] sm:$0x8] %vm1320, %v1319
    %s1329 = scalar_lea.vmem [#allocation0], 174
    %1330 = vst.msk [vmem:[%s1329] sm:$0x10] %vm1320, %v1319
    %s1331 = scalar_lea.vmem [#allocation0], 685
    %1332 = vst.msk [vmem:[%s1331] sm:$0x20] %vm1320, %v1319
    %s1333 = scalar_lea.vmem [#allocation0], 236
    %1334 = vst.msk [vmem:[%s1333] sm:$0x40] %vm1320, %v1319
    %s1335 = scalar_lea.vmem [#allocation0], 747
    %1336 = vst.msk [vmem:[%s1335] sm:$0x80] %vm1320, %v1319
    %s1337 = scalar_lea.vmem [#allocation1], 32
    %v1338 = vld.sshfl [vmem:[%s1337] sm:$0xff pattern:$0x99999810]
    %s1339 = scalar_lea.vmem [#allocation1], 48
    %v1340 = vld.sshfl [vmem:[%s1339] sm:$0xff pattern:$0x98100000]
    %vm1341 = vcmask 1047556
    %v1342 = vsel %vm1341, %v1340, %v1338
    %1343 = vrot.lane.b32.xlu0 %v1342, 24
    %v1344 = vpop.permute.xlu0 %1343
    %vm1345 = vcmask 31744
    %s1346 = scalar_lea.vmem [#allocation0], 306
    %1347 = vst.msk [vmem:[%s1346] sm:$0x1] %vm1345, %v1344
    %s1348 = scalar_lea.vmem [#allocation0], 817
    %1349 = vst.msk [vmem:[%s1348] sm:$0x2] %vm1345, %v1344
    %s1350 = scalar_lea.vmem [#allocation0], 368
    %1351 = vst.msk [vmem:[%s1350] sm:$0x4] %vm1345, %v1344
    %s1352 = scalar_lea.vmem [#allocation0], 879
    %1353 = vst.msk [vmem:[%s1352] sm:$0x8] %vm1345, %v1344
    %s1354 = scalar_lea.vmem [#allocation0], 430
    %1355 = vst.msk [vmem:[%s1354] sm:$0x10] %vm1345, %v1344
    %s1356 = scalar_lea.vmem [#allocation0], 941
    %1357 = vst.msk [vmem:[%s1356] sm:$0x20] %vm1345, %v1344
    %s1358 = scalar_lea.vmem [#allocation0], 492
    %1359 = vst.msk [vmem:[%s1358] sm:$0x40] %vm1345, %v1344
    %s1360 = scalar_lea.vmem [#allocation0], 1003
    %1361 = vst.msk [vmem:[%s1360] sm:$0x80] %vm1345, %v1344
    %v1362 = vld.sshfl [vmem:[#allocation1] sm:$0xff pattern:$0x99999810]
    %s1363 = scalar_lea.vmem [#allocation1], 16
    %v1364 = vld.sshfl [vmem:[%s1363] sm:$0xff pattern:$0x98100000]
    %vm1365 = vcmask 1047556
    %v1366 = vsel %vm1365, %v1364, %v1362
    %1367 = vrot.lane.b32.xlu0 %v1366, 20
    %v1368 = vpop.permute.xlu0 %1367
    %vm1369 = vcmask 31744
    %s1370 = scalar_lea.vmem [#allocation0], 51
    %1371 = vst.msk [vmem:[%s1370] sm:$0x1] %vm1369, %v1368
    %s1372 = scalar_lea.vmem [#allocation0], 562
    %1373 = vst.msk [vmem:[%s1372] sm:$0x2] %vm1369, %v1368
    %s1374 = scalar_lea.vmem [#allocation0], 113
    %1375 = vst.msk [vmem:[%s1374] sm:$0x4] %vm1369, %v1368
    %s1376 = scalar_lea.vmem [#allocation0], 624
    %1377 = vst.msk [vmem:[%s1376] sm:$0x8] %vm1369, %v1368
    %s1378 = scalar_lea.vmem [#allocation0], 175
    %1379 = vst.msk [vmem:[%s1378] sm:$0x10] %vm1369, %v1368
    %s1380 = scalar_lea.vmem [#allocation0], 686
    %1381 = vst.msk [vmem:[%s1380] sm:$0x20] %vm1369, %v1368
    %s1382 = scalar_lea.vmem [#allocation0], 237
    %1383 = vst.msk [vmem:[%s1382] sm:$0x40] %vm1369, %v1368
    %s1384 = scalar_lea.vmem [#allocation0], 748
    %1385 = vst.msk [vmem:[%s1384] sm:$0x80] %vm1369, %v1368
    %s1386 = scalar_lea.vmem [#allocation1], 32
    %v1387 = vld.sshfl [vmem:[%s1386] sm:$0xff pattern:$0x99999810]
    %s1388 = scalar_lea.vmem [#allocation1], 48
    %v1389 = vld.sshfl [vmem:[%s1388] sm:$0xff pattern:$0x98100000]
    %vm1390 = vcmask 1047556
    %v1391 = vsel %vm1390, %v1389, %v1387
    %1392 = vrot.lane.b32.xlu0 %v1391, 20
    %v1393 = vpop.permute.xlu0 %1392
    %vm1394 = vcmask 31744
    %s1395 = scalar_lea.vmem [#allocation0], 307
    %1396 = vst.msk [vmem:[%s1395] sm:$0x1] %vm1394, %v1393
    %s1397 = scalar_lea.vmem [#allocation0], 818
    %1398 = vst.msk [vmem:[%s1397] sm:$0x2] %vm1394, %v1393
    %s1399 = scalar_lea.vmem [#allocation0], 369
    %1400 = vst.msk [vmem:[%s1399] sm:$0x4] %vm1394, %v1393
    %s1401 = scalar_lea.vmem [#allocation0], 880
    %1402 = vst.msk [vmem:[%s1401] sm:$0x8] %vm1394, %v1393
    %s1403 = scalar_lea.vmem [#allocation0], 431
    %1404 = vst.msk [vmem:[%s1403] sm:$0x10] %vm1394, %v1393
    %s1405 = scalar_lea.vmem [#allocation0], 942
    %1406 = vst.msk [vmem:[%s1405] sm:$0x20] %vm1394, %v1393
    %s1407 = scalar_lea.vmem [#allocation0], 493
    %1408 = vst.msk [vmem:[%s1407] sm:$0x40] %vm1394, %v1393
    %s1409 = scalar_lea.vmem [#allocation0], 1004
    %1410 = vst.msk [vmem:[%s1409] sm:$0x80] %vm1394, %v1393
    %v1411 = vld.sshfl [vmem:[#allocation1] sm:$0xff pattern:$0x99999810]
    %s1412 = scalar_lea.vmem [#allocation1], 16
    %v1413 = vld.sshfl [vmem:[%s1412] sm:$0xff pattern:$0x98100000]
    %vm1414 = vcmask 1047556
    %v1415 = vsel %vm1414, %v1413, %v1411
    %1416 = vrot.lane.b32.xlu0 %v1415, 16
    %v1417 = vpop.permute.xlu0 %1416
    %vm1418 = vcmask 31744
    %s1419 = scalar_lea.vmem [#allocation0], 56
    %1420 = vst.msk [vmem:[%s1419] sm:$0x1] %vm1418, %v1417
    %s1421 = scalar_lea.vmem [#allocation0], 567
    %1422 = vst.msk [vmem:[%s1421] sm:$0x2] %vm1418, %v1417
    %s1423 = scalar_lea.vmem [#allocation0], 118
    %1424 = vst.msk [vmem:[%s1423] sm:$0x4] %vm1418, %v1417
    %s1425 = scalar_lea.vmem [#allocation0], 629
    %1426 = vst.msk [vmem:[%s1425] sm:$0x8] %vm1418, %v1417
    %s1427 = scalar_lea.vmem [#allocation0], 180
    %1428 = vst.msk [vmem:[%s1427] sm:$0x10] %vm1418, %v1417
    %s1429 = scalar_lea.vmem [#allocation0], 691
    %1430 = vst.msk [vmem:[%s1429] sm:$0x20] %vm1418, %v1417
    %s1431 = scalar_lea.vmem [#allocation0], 242
    %1432 = vst.msk [vmem:[%s1431] sm:$0x40] %vm1418, %v1417
    %s1433 = scalar_lea.vmem [#allocation0], 753
    %1434 = vst.msk [vmem:[%s1433] sm:$0x80] %vm1418, %v1417
    %s1435 = scalar_lea.vmem [#allocation1], 32
    %v1436 = vld.sshfl [vmem:[%s1435] sm:$0xff pattern:$0x99999810]
    %s1437 = scalar_lea.vmem [#allocation1], 48
    %v1438 = vld.sshfl [vmem:[%s1437] sm:$0xff pattern:$0x98100000]
    %vm1439 = vcmask 1047556
    %v1440 = vsel %vm1439, %v1438, %v1436
    %1441 = vrot.lane.b32.xlu0 %v1440, 16
    %v1442 = vpop.permute.xlu0 %1441
    %vm1443 = vcmask 31744
    %s1444 = scalar_lea.vmem [#allocation0], 312
    %1445 = vst.msk [vmem:[%s1444] sm:$0x1] %vm1443, %v1442
    %s1446 = scalar_lea.vmem [#allocation0], 823
    %1447 = vst.msk [vmem:[%s1446] sm:$0x2] %vm1443, %v1442
    %s1448 = scalar_lea.vmem [#allocation0], 374
    %1449 = vst.msk [vmem:[%s1448] sm:$0x4] %vm1443, %v1442
    %s1450 = scalar_lea.vmem [#allocation0], 885
    %1451 = vst.msk [vmem:[%s1450] sm:$0x8] %vm1443, %v1442
    %s1452 = scalar_lea.vmem [#allocation0], 436
    %1453 = vst.msk [vmem:[%s1452] sm:$0x10] %vm1443, %v1442
    %s1454 = scalar_lea.vmem [#allocation0], 947
    %1455 = vst.msk [vmem:[%s1454] sm:$0x20] %vm1443, %v1442
    %s1456 = scalar_lea.vmem [#allocation0], 498
    %1457 = vst.msk [vmem:[%s1456] sm:$0x40] %vm1443, %v1442
    %s1458 = scalar_lea.vmem [#allocation0], 1009
    %1459 = vst.msk [vmem:[%s1458] sm:$0x80] %vm1443, %v1442
    %v1460 = vld.sshfl [vmem:[#allocation1] sm:$0xff pattern:$0x99999810]
    %s1461 = scalar_lea.vmem [#allocation1], 16
    %v1462 = vld.sshfl [vmem:[%s1461] sm:$0xff pattern:$0x98100000]
    %vm1463 = vcmask 1047556
    %v1464 = vsel %vm1463, %v1462, %v1460
    %1465 = vrot.lane.b32.xlu0 %v1464, 12
    %v1466 = vpop.permute.xlu0 %1465
    %vm1467 = vcmask 31744
    %s1468 = scalar_lea.vmem [#allocation0], 57
    %1469 = vst.msk [vmem:[%s1468] sm:$0x1] %vm1467, %v1466
    %s1470 = scalar_lea.vmem [#allocation0], 568
    %1471 = vst.msk [vmem:[%s1470] sm:$0x2] %vm1467, %v1466
    %s1472 = scalar_lea.vmem [#allocation0], 119
    %1473 = vst.msk [vmem:[%s1472] sm:$0x4] %vm1467, %v1466
    %s1474 = scalar_lea.vmem [#allocation0], 630
    %1475 = vst.msk [vmem:[%s1474] sm:$0x8] %vm1467, %v1466
    %s1476 = scalar_lea.vmem [#allocation0], 181
    %1477 = vst.msk [vmem:[%s1476] sm:$0x10] %vm1467, %v1466
    %s1478 = scalar_lea.vmem [#allocation0], 692
    %1479 = vst.msk [vmem:[%s1478] sm:$0x20] %vm1467, %v1466
    %s1480 = scalar_lea.vmem [#allocation0], 243
    %1481 = vst.msk [vmem:[%s1480] sm:$0x40] %vm1467, %v1466
    %s1482 = scalar_lea.vmem [#allocation0], 754
    %1483 = vst.msk [vmem:[%s1482] sm:$0x80] %vm1467, %v1466
    %s1484 = scalar_lea.vmem [#allocation1], 32
    %v1485 = vld.sshfl [vmem:[%s1484] sm:$0xff pattern:$0x99999810]
    %s1486 = scalar_lea.vmem [#allocation1], 48
    %v1487 = vld.sshfl [vmem:[%s1486] sm:$0xff pattern:$0x98100000]
    %vm1488 = vcmask 1047556
    %v1489 = vsel %vm1488, %v1487, %v1485
    %1490 = vrot.lane.b32.xlu0 %v1489, 12
    %v1491 = vpop.permute.xlu0 %1490
    %vm1492 = vcmask 31744
    %s1493 = scalar_lea.vmem [#allocation0], 313
    %1494 = vst.msk [vmem:[%s1493] sm:$0x1] %vm1492, %v1491
    %s1495 = scalar_lea.vmem [#allocation0], 824
    %1496 = vst.msk [vmem:[%s1495] sm:$0x2] %vm1492, %v1491
    %s1497 = scalar_lea.vmem [#allocation0], 375
    %1498 = vst.msk [vmem:[%s1497] sm:$0x4] %vm1492, %v1491
    %s1499 = scalar_lea.vmem [#allocation0], 886
    %1500 = vst.msk [vmem:[%s1499] sm:$0x8] %vm1492, %v1491
    %s1501 = scalar_lea.vmem [#allocation0], 437
    %1502 = vst.msk [vmem:[%s1501] sm:$0x10] %vm1492, %v1491
    %s1503 = scalar_lea.vmem [#allocation0], 948
    %1504 = vst.msk [vmem:[%s1503] sm:$0x20] %vm1492, %v1491
    %s1505 = scalar_lea.vmem [#allocation0], 499
    %1506 = vst.msk [vmem:[%s1505] sm:$0x40] %vm1492, %v1491
    %s1507 = scalar_lea.vmem [#allocation0], 1010
    %1508 = vst.msk [vmem:[%s1507] sm:$0x80] %vm1492, %v1491
    %v1509 = vld.sshfl [vmem:[#allocation1] sm:$0xff pattern:$0x99999810]
    %s1510 = scalar_lea.vmem [#allocation1], 16
    %v1511 = vld.sshfl [vmem:[%s1510] sm:$0xff pattern:$0x98100000]
    %vm1512 = vcmask 1047556
    %v1513 = vsel %vm1512, %v1511, %v1509
    %1514 = vrot.lane.b32.xlu0 %v1513, 8
    %v1515 = vpop.permute.xlu0 %1514
    %vm1516 = vcmask 31744
    %s1517 = scalar_lea.vmem [#allocation0], 58
    %1518 = vst.msk [vmem:[%s1517] sm:$0x1] %vm1516, %v1515
    %s1519 = scalar_lea.vmem [#allocation0], 569
    %1520 = vst.msk [vmem:[%s1519] sm:$0x2] %vm1516, %v1515
    %s1521 = scalar_lea.vmem [#allocation0], 120
    %1522 = vst.msk [vmem:[%s1521] sm:$0x4] %vm1516, %v1515
    %s1523 = scalar_lea.vmem [#allocation0], 631
    %1524 = vst.msk [vmem:[%s1523] sm:$0x8] %vm1516, %v1515
    %s1525 = scalar_lea.vmem [#allocation0], 182
    %1526 = vst.msk [vmem:[%s1525] sm:$0x10] %vm1516, %v1515
    %s1527 = scalar_lea.vmem [#allocation0], 693
    %1528 = vst.msk [vmem:[%s1527] sm:$0x20] %vm1516, %v1515
    %s1529 = scalar_lea.vmem [#allocation0], 244
    %1530 = vst.msk [vmem:[%s1529] sm:$0x40] %vm1516, %v1515
    %s1531 = scalar_lea.vmem [#allocation0], 755
    %1532 = vst.msk [vmem:[%s1531] sm:$0x80] %vm1516, %v1515
    %s1533 = scalar_lea.vmem [#allocation1], 32
    %v1534 = vld.sshfl [vmem:[%s1533] sm:$0xff pattern:$0x99999810]
    %s1535 = scalar_lea.vmem [#allocation1], 48
    %v1536 = vld.sshfl [vmem:[%s1535] sm:$0xff pattern:$0x98100000]
    %vm1537 = vcmask 1047556
    %v1538 = vsel %vm1537, %v1536, %v1534
    %1539 = vrot.lane.b32.xlu0 %v1538, 8
    %v1540 = vpop.permute.xlu0 %1539
    %vm1541 = vcmask 31744
    %s1542 = scalar_lea.vmem [#allocation0], 314
    %1543 = vst.msk [vmem:[%s1542] sm:$0x1] %vm1541, %v1540
    %s1544 = scalar_lea.vmem [#allocation0], 825
    %1545 = vst.msk [vmem:[%s1544] sm:$0x2] %vm1541, %v1540
    %s1546 = scalar_lea.vmem [#allocation0], 376
    %1547 = vst.msk [vmem:[%s1546] sm:$0x4] %vm1541, %v1540
    %s1548 = scalar_lea.vmem [#allocation0], 887
    %1549 = vst.msk [vmem:[%s1548] sm:$0x8] %vm1541, %v1540
    %s1550 = scalar_lea.vmem [#allocation0], 438
    %1551 = vst.msk [vmem:[%s1550] sm:$0x10] %vm1541, %v1540
    %s1552 = scalar_lea.vmem [#allocation0], 949
    %1553 = vst.msk [vmem:[%s1552] sm:$0x20] %vm1541, %v1540
    %s1554 = scalar_lea.vmem [#allocation0], 500
    %1555 = vst.msk [vmem:[%s1554] sm:$0x40] %vm1541, %v1540
    %s1556 = scalar_lea.vmem [#allocation0], 1011
    %1557 = vst.msk [vmem:[%s1556] sm:$0x80] %vm1541, %v1540
    %v1558 = vld.sshfl [vmem:[#allocation1] sm:$0xff pattern:$0x99999810]
    %s1559 = scalar_lea.vmem [#allocation1], 16
    %v1560 = vld.sshfl [vmem:[%s1559] sm:$0xff pattern:$0x98100000]
    %vm1561 = vcmask 1047556
    %v1562 = vsel %vm1561, %v1560, %v1558
    %1563 = vrot.lane.b32.xlu0 %v1562, 4
    %v1564 = vpop.permute.xlu0 %1563
    %vm1565 = vcmask 31744
    %s1566 = scalar_lea.vmem [#allocation0], 59
    %1567 = vst.msk [vmem:[%s1566] sm:$0x1] %vm1565, %v1564
    %s1568 = scalar_lea.vmem [#allocation0], 570
    %1569 = vst.msk [vmem:[%s1568] sm:$0x2] %vm1565, %v1564
    %s1570 = scalar_lea.vmem [#allocation0], 121
    %1571 = vst.msk [vmem:[%s1570] sm:$0x4] %vm1565, %v1564
    %s1572 = scalar_lea.vmem [#allocation0], 632
    %1573 = vst.msk [vmem:[%s1572] sm:$0x8] %vm1565, %v1564
    %s1574 = scalar_lea.vmem [#allocation0], 183
    %1575 = vst.msk [vmem:[%s1574] sm:$0x10] %vm1565, %v1564
    %s1576 = scalar_lea.vmem [#allocation0], 694
    %1577 = vst.msk [vmem:[%s1576] sm:$0x20] %vm1565, %v1564
    %s1578 = scalar_lea.vmem [#allocation0], 245
    %1579 = vst.msk [vmem:[%s1578] sm:$0x40] %vm1565, %v1564
    %s1580 = scalar_lea.vmem [#allocation0], 756
    %1581 = vst.msk [vmem:[%s1580] sm:$0x80] %vm1565, %v1564
    %s1582 = scalar_lea.vmem [#allocation1], 32
    %v1583 = vld.sshfl [vmem:[%s1582] sm:$0xff pattern:$0x99999810]
    %s1584 = scalar_lea.vmem [#allocation1], 48
    %v1585 = vld.sshfl [vmem:[%s1584] sm:$0xff pattern:$0x98100000]
    %vm1586 = vcmask 1047556
    %v1587 = vsel %vm1586, %v1585, %v1583
    %1588 = vrot.lane.b32.xlu0 %v1587, 4
    %v1589 = vpop.permute.xlu0 %1588
    %vm1590 = vcmask 31744
    %s1591 = scalar_lea.vmem [#allocation0], 315
    %1592 = vst.msk [vmem:[%s1591] sm:$0x1] %vm1590, %v1589
    %s1593 = scalar_lea.vmem [#allocation0], 826
    %1594 = vst.msk [vmem:[%s1593] sm:$0x2] %vm1590, %v1589
    %s1595 = scalar_lea.vmem [#allocation0], 377
    %1596 = vst.msk [vmem:[%s1595] sm:$0x4] %vm1590, %v1589
    %s1597 = scalar_lea.vmem [#allocation0], 888
    %1598 = vst.msk [vmem:[%s1597] sm:$0x8] %vm1590, %v1589
    %s1599 = scalar_lea.vmem [#allocation0], 439
    %1600 = vst.msk [vmem:[%s1599] sm:$0x10] %vm1590, %v1589
    %s1601 = scalar_lea.vmem [#allocation0], 950
    %1602 = vst.msk [vmem:[%s1601] sm:$0x20] %vm1590, %v1589
    %s1603 = scalar_lea.vmem [#allocation0], 501
    %1604 = vst.msk [vmem:[%s1603] sm:$0x40] %vm1590, %v1589
    %s1605 = scalar_lea.vmem [#allocation0], 1012
    %1606 = vst.msk [vmem:[%s1605] sm:$0x80] %vm1590, %v1589
    %s1608 = ssub.s32 16, 1
    %v1609 = vld [vmem:[#allocation0] sm:%s1608]
    %s1611 = ssub.s32 16, 1
    %1612 = vst [vmem:[%s1] sm:%s1611] %v1609
    %s1613 = scalar_lea.vmem [#allocation0], 8
    %v1614 = vld [vmem:[%s1613] sm:%s1608]
    %s1616 = ssub.s32 16, 1
    %s1617 = scalar_lea.vmem %s1, 4
    %1618 = vst [vmem:[%s1617] sm:%s1616] %v1614
    %s1619 = scalar_lea.vmem [#allocation0], 16
    %v1620 = vld [vmem:[%s1619] sm:%s1608]
    %s1622 = ssub.s32 16, 1
    %s1623 = scalar_lea.vmem %s1, 8
    %1624 = vst [vmem:[%s1623] sm:%s1622] %v1620
    %s1625 = scalar_lea.vmem [#allocation0], 24
    %v1626 = vld [vmem:[%s1625] sm:%s1608]
    %s1628 = ssub.s32 16, 1
    %s1629 = scalar_lea.vmem %s1, 12
    %1630 = vst [vmem:[%s1629] sm:%s1628] %v1626
    %s1631 = scalar_lea.vmem [#allocation0], 32
    %v1632 = vld [vmem:[%s1631] sm:%s1608]
    %s1634 = ssub.s32 16, 1
    %s1635 = scalar_lea.vmem %s1, 16
    %1636 = vst [vmem:[%s1635] sm:%s1634] %v1632
    %s1637 = scalar_lea.vmem [#allocation0], 40
    %v1638 = vld [vmem:[%s1637] sm:%s1608]
    %s1640 = ssub.s32 16, 1
    %s1641 = scalar_lea.vmem %s1, 20
    %1642 = vst [vmem:[%s1641] sm:%s1640] %v1638
    %s1643 = scalar_lea.vmem [#allocation0], 48
    %v1644 = vld [vmem:[%s1643] sm:%s1608]
    %s1646 = ssub.s32 16, 1
    %s1647 = scalar_lea.vmem %s1, 24
    %1648 = vst [vmem:[%s1647] sm:%s1646] %v1644
    %s1649 = scalar_lea.vmem [#allocation0], 56
    %v1650 = vld [vmem:[%s1649] sm:%s1608]
    %s1652 = ssub.s32 16, 1
    %s1653 = scalar_lea.vmem %s1, 28
    %1654 = vst [vmem:[%s1653] sm:%s1652] %v1650
    %s1655 = scalar_lea.vmem [#allocation0], 64
    %v1656 = vld [vmem:[%s1655] sm:%s1608]
    %s1658 = ssub.s32 16, 1
    %s1659 = scalar_lea.vmem %s1, 32
    %1660 = vst [vmem:[%s1659] sm:%s1658] %v1656
    %s1661 = scalar_lea.vmem [#allocation0], 72
    %v1662 = vld [vmem:[%s1661] sm:%s1608]
    %s1664 = ssub.s32 16, 1
    %s1665 = scalar_lea.vmem %s1, 36
    %1666 = vst [vmem:[%s1665] sm:%s1664] %v1662
    %s1667 = scalar_lea.vmem [#allocation0], 80
    %v1668 = vld [vmem:[%s1667] sm:%s1608]
    %s1670 = ssub.s32 16, 1
    %s1671 = scalar_lea.vmem %s1, 40
    %1672 = vst [vmem:[%s1671] sm:%s1670] %v1668
    %s1673 = scalar_lea.vmem [#allocation0], 88
    %v1674 = vld [vmem:[%s1673] sm:%s1608]
    %s1676 = ssub.s32 16, 1
    %s1677 = scalar_lea.vmem %s1, 44
    %1678 = vst [vmem:[%s1677] sm:%s1676] %v1674
    %s1679 = scalar_lea.vmem [#allocation0], 96
    %v1680 = vld [vmem:[%s1679] sm:%s1608]
    %s1682 = ssub.s32 16, 1
    %s1683 = scalar_lea.vmem %s1, 48
    %1684 = vst [vmem:[%s1683] sm:%s1682] %v1680
    %s1685 = scalar_lea.vmem [#allocation0], 104
    %v1686 = vld [vmem:[%s1685] sm:%s1608]
    %s1688 = ssub.s32 16, 1
    %s1689 = scalar_lea.vmem %s1, 52
    %1690 = vst [vmem:[%s1689] sm:%s1688] %v1686
    %s1691 = scalar_lea.vmem [#allocation0], 112
    %v1692 = vld [vmem:[%s1691] sm:%s1608]
    %s1694 = ssub.s32 16, 1
    %s1695 = scalar_lea.vmem %s1, 56
    %1696 = vst [vmem:[%s1695] sm:%s1694] %v1692
    %s1697 = scalar_lea.vmem [#allocation0], 120
    %v1698 = vld [vmem:[%s1697] sm:%s1608]
    %s1700 = ssub.s32 16, 1
    %s1701 = scalar_lea.vmem %s1, 60
    %1702 = vst [vmem:[%s1701] sm:%s1700] %v1698
    %s1703 = scalar_lea.vmem [#allocation0], 128
    %v1704 = vld [vmem:[%s1703] sm:%s1608]
    %s1706 = ssub.s32 16, 1
    %s1707 = scalar_lea.vmem %s1, 64
    %1708 = vst [vmem:[%s1707] sm:%s1706] %v1704
    %s1709 = scalar_lea.vmem [#allocation0], 136
    %v1710 = vld [vmem:[%s1709] sm:%s1608]
    %s1712 = ssub.s32 16, 1
    %s1713 = scalar_lea.vmem %s1, 68
    %1714 = vst [vmem:[%s1713] sm:%s1712] %v1710
    %s1715 = scalar_lea.vmem [#allocation0], 144
    %v1716 = vld [vmem:[%s1715] sm:%s1608]
    %s1718 = ssub.s32 16, 1
    %s1719 = scalar_lea.vmem %s1, 72
    %1720 = vst [vmem:[%s1719] sm:%s1718] %v1716
    %s1721 = scalar_lea.vmem [#allocation0], 152
    %v1722 = vld [vmem:[%s1721] sm:%s1608]
    %s1724 = ssub.s32 16, 1
    %s1725 = scalar_lea.vmem %s1, 76
    %1726 = vst [vmem:[%s1725] sm:%s1724] %v1722
    %s1727 = scalar_lea.vmem [#allocation0], 160
    %v1728 = vld [vmem:[%s1727] sm:%s1608]
    %s1730 = ssub.s32 16, 1
    %s1731 = scalar_lea.vmem %s1, 80
    %1732 = vst [vmem:[%s1731] sm:%s1730] %v1728
    %s1733 = scalar_lea.vmem [#allocation0], 168
    %v1734 = vld [vmem:[%s1733] sm:%s1608]
    %s1736 = ssub.s32 16, 1
    %s1737 = scalar_lea.vmem %s1, 84
    %1738 = vst [vmem:[%s1737] sm:%s1736] %v1734
    %s1739 = scalar_lea.vmem [#allocation0], 176
    %v1740 = vld [vmem:[%s1739] sm:%s1608]
    %s1742 = ssub.s32 16, 1
    %s1743 = scalar_lea.vmem %s1, 88
    %1744 = vst [vmem:[%s1743] sm:%s1742] %v1740
    %s1745 = scalar_lea.vmem [#allocation0], 184
    %v1746 = vld [vmem:[%s1745] sm:%s1608]
    %s1748 = ssub.s32 16, 1
    %s1749 = scalar_lea.vmem %s1, 92
    %1750 = vst [vmem:[%s1749] sm:%s1748] %v1746
    %s1751 = scalar_lea.vmem [#allocation0], 192
    %v1752 = vld [vmem:[%s1751] sm:%s1608]
    %s1754 = ssub.s32 16, 1
    %s1755 = scalar_lea.vmem %s1, 96
    %1756 = vst [vmem:[%s1755] sm:%s1754] %v1752
    %s1757 = scalar_lea.vmem [#allocation0], 200
    %v1758 = vld [vmem:[%s1757] sm:%s1608]
    %s1760 = ssub.s32 16, 1
    %s1761 = scalar_lea.vmem %s1, 100
    %1762 = vst [vmem:[%s1761] sm:%s1760] %v1758
    %s1763 = scalar_lea.vmem [#allocation0], 208
    %v1764 = vld [vmem:[%s1763] sm:%s1608]
    %s1766 = ssub.s32 16, 1
    %s1767 = scalar_lea.vmem %s1, 104
    %1768 = vst [vmem:[%s1767] sm:%s1766] %v1764
    %s1769 = scalar_lea.vmem [#allocation0], 216
    %v1770 = vld [vmem:[%s1769] sm:%s1608]
    %s1772 = ssub.s32 16, 1
    %s1773 = scalar_lea.vmem %s1, 108
    %1774 = vst [vmem:[%s1773] sm:%s1772] %v1770
    %s1775 = scalar_lea.vmem [#allocation0], 224
    %v1776 = vld [vmem:[%s1775] sm:%s1608]
    %s1778 = ssub.s32 16, 1
    %s1779 = scalar_lea.vmem %s1, 112
    %1780 = vst [vmem:[%s1779] sm:%s1778] %v1776
    %s1781 = scalar_lea.vmem [#allocation0], 232
    %v1782 = vld [vmem:[%s1781] sm:%s1608]
    %s1784 = ssub.s32 16, 1
    %s1785 = scalar_lea.vmem %s1, 116
    %1786 = vst [vmem:[%s1785] sm:%s1784] %v1782
    %s1787 = scalar_lea.vmem [#allocation0], 240
    %v1788 = vld [vmem:[%s1787] sm:%s1608]
    %s1790 = ssub.s32 16, 1
    %s1791 = scalar_lea.vmem %s1, 120
    %1792 = vst [vmem:[%s1791] sm:%s1790] %v1788
    %s1793 = scalar_lea.vmem [#allocation0], 248
    %v1794 = vld [vmem:[%s1793] sm:%s1608]
    %s1796 = ssub.s32 16, 1
    %s1797 = scalar_lea.vmem %s1, 124
    %1798 = vst [vmem:[%s1797] sm:%s1796] %v1794
    %s1799 = scalar_lea.vmem [#allocation0], 256
    %v1800 = vld [vmem:[%s1799] sm:%s1608]
    %s1802 = ssub.s32 16, 1
    %s1803 = scalar_lea.vmem %s1, 128
    %1804 = vst [vmem:[%s1803] sm:%s1802] %v1800
    %s1805 = scalar_lea.vmem [#allocation0], 264
    %v1806 = vld [vmem:[%s1805] sm:%s1608]
    %s1808 = ssub.s32 16, 1
    %s1809 = scalar_lea.vmem %s1, 132
    %1810 = vst [vmem:[%s1809] sm:%s1808] %v1806
    %s1811 = scalar_lea.vmem [#allocation0], 272
    %v1812 = vld [vmem:[%s1811] sm:%s1608]
    %s1814 = ssub.s32 16, 1
    %s1815 = scalar_lea.vmem %s1, 136
    %1816 = vst [vmem:[%s1815] sm:%s1814] %v1812
    %s1817 = scalar_lea.vmem [#allocation0], 280
    %v1818 = vld [vmem:[%s1817] sm:%s1608]
    %s1820 = ssub.s32 16, 1
    %s1821 = scalar_lea.vmem %s1, 140
    %1822 = vst [vmem:[%s1821] sm:%s1820] %v1818
    %s1823 = scalar_lea.vmem [#allocation0], 288
    %v1824 = vld [vmem:[%s1823] sm:%s1608]
    %s1826 = ssub.s32 16, 1
    %s1827 = scalar_lea.vmem %s1, 144
    %1828 = vst [vmem:[%s1827] sm:%s1826] %v1824
    %s1829 = scalar_lea.vmem [#allocation0], 296
    %v1830 = vld [vmem:[%s1829] sm:%s1608]
    %s1832 = ssub.s32 16, 1
    %s1833 = scalar_lea.vmem %s1, 148
    %1834 = vst [vmem:[%s1833] sm:%s1832] %v1830
    %s1835 = scalar_lea.vmem [#allocation0], 304
    %v1836 = vld [vmem:[%s1835] sm:%s1608]
    %s1838 = ssub.s32 16, 1
    %s1839 = scalar_lea.vmem %s1, 152
    %1840 = vst [vmem:[%s1839] sm:%s1838] %v1836
    %s1841 = scalar_lea.vmem [#allocation0], 312
    %v1842 = vld [vmem:[%s1841] sm:%s1608]
    %s1844 = ssub.s32 16, 1
    %s1845 = scalar_lea.vmem %s1, 156
    %1846 = vst [vmem:[%s1845] sm:%s1844] %v1842
    %s1847 = scalar_lea.vmem [#allocation0], 320
    %v1848 = vld [vmem:[%s1847] sm:%s1608]
    %s1850 = ssub.s32 16, 1
    %s1851 = scalar_lea.vmem %s1, 160
    %1852 = vst [vmem:[%s1851] sm:%s1850] %v1848
    %s1853 = scalar_lea.vmem [#allocation0], 328
    %v1854 = vld [vmem:[%s1853] sm:%s1608]
    %s1856 = ssub.s32 16, 1
    %s1857 = scalar_lea.vmem %s1, 164
    %1858 = vst [vmem:[%s1857] sm:%s1856] %v1854
    %s1859 = scalar_lea.vmem [#allocation0], 336
    %v1860 = vld [vmem:[%s1859] sm:%s1608]
    %s1862 = ssub.s32 16, 1
    %s1863 = scalar_lea.vmem %s1, 168
    %1864 = vst [vmem:[%s1863] sm:%s1862] %v1860
    %s1865 = scalar_lea.vmem [#allocation0], 344
    %v1866 = vld [vmem:[%s1865] sm:%s1608]
    %s1868 = ssub.s32 16, 1
    %s1869 = scalar_lea.vmem %s1, 172
    %1870 = vst [vmem:[%s1869] sm:%s1868] %v1866
    %s1871 = scalar_lea.vmem [#allocation0], 352
    %v1872 = vld [vmem:[%s1871] sm:%s1608]
    %s1874 = ssub.s32 16, 1
    %s1875 = scalar_lea.vmem %s1, 176
    %1876 = vst [vmem:[%s1875] sm:%s1874] %v1872
    %s1877 = scalar_lea.vmem [#allocation0], 360
    %v1878 = vld [vmem:[%s1877] sm:%s1608]
    %s1880 = ssub.s32 16, 1
    %s1881 = scalar_lea.vmem %s1, 180
    %1882 = vst [vmem:[%s1881] sm:%s1880] %v1878
    %s1883 = scalar_lea.vmem [#allocation0], 368
    %v1884 = vld [vmem:[%s1883] sm:%s1608]
    %s1886 = ssub.s32 16, 1
    %s1887 = scalar_lea.vmem %s1, 184
    %1888 = vst [vmem:[%s1887] sm:%s1886] %v1884
    %s1889 = scalar_lea.vmem [#allocation0], 376
    %v1890 = vld [vmem:[%s1889] sm:%s1608]
    %s1892 = ssub.s32 16, 1
    %s1893 = scalar_lea.vmem %s1, 188
    %1894 = vst [vmem:[%s1893] sm:%s1892] %v1890
    %s1895 = scalar_lea.vmem [#allocation0], 384
    %v1896 = vld [vmem:[%s1895] sm:%s1608]
    %s1898 = ssub.s32 16, 1
    %s1899 = scalar_lea.vmem %s1, 192
    %1900 = vst [vmem:[%s1899] sm:%s1898] %v1896
    %s1901 = scalar_lea.vmem [#allocation0], 392
    %v1902 = vld [vmem:[%s1901] sm:%s1608]
    %s1904 = ssub.s32 16, 1
    %s1905 = scalar_lea.vmem %s1, 196
    %1906 = vst [vmem:[%s1905] sm:%s1904] %v1902
    %s1907 = scalar_lea.vmem [#allocation0], 400
    %v1908 = vld [vmem:[%s1907] sm:%s1608]
    %s1910 = ssub.s32 16, 1
    %s1911 = scalar_lea.vmem %s1, 200
    %1912 = vst [vmem:[%s1911] sm:%s1910] %v1908
    %s1913 = scalar_lea.vmem [#allocation0], 408
    %v1914 = vld [vmem:[%s1913] sm:%s1608]
    %s1916 = ssub.s32 16, 1
    %s1917 = scalar_lea.vmem %s1, 204
    %1918 = vst [vmem:[%s1917] sm:%s1916] %v1914
    %s1919 = scalar_lea.vmem [#allocation0], 416
    %v1920 = vld [vmem:[%s1919] sm:%s1608]
    %s1922 = ssub.s32 16, 1
    %s1923 = scalar_lea.vmem %s1, 208
    %1924 = vst [vmem:[%s1923] sm:%s1922] %v1920
    %s1925 = scalar_lea.vmem [#allocation0], 424
    %v1926 = vld [vmem:[%s1925] sm:%s1608]
    %s1928 = ssub.s32 16, 1
    %s1929 = scalar_lea.vmem %s1, 212
    %1930 = vst [vmem:[%s1929] sm:%s1928] %v1926
    %s1931 = scalar_lea.vmem [#allocation0], 432
    %v1932 = vld [vmem:[%s1931] sm:%s1608]
    %s1934 = ssub.s32 16, 1
    %s1935 = scalar_lea.vmem %s1, 216
    %1936 = vst [vmem:[%s1935] sm:%s1934] %v1932
    %s1937 = scalar_lea.vmem [#allocation0], 440
    %v1938 = vld [vmem:[%s1937] sm:%s1608]
    %s1940 = ssub.s32 16, 1
    %s1941 = scalar_lea.vmem %s1, 220
    %1942 = vst [vmem:[%s1941] sm:%s1940] %v1938
    %s1943 = scalar_lea.vmem [#allocation0], 448
    %v1944 = vld [vmem:[%s1943] sm:%s1608]
    %s1946 = ssub.s32 16, 1
    %s1947 = scalar_lea.vmem %s1, 224
    %1948 = vst [vmem:[%s1947] sm:%s1946] %v1944
    %s1949 = scalar_lea.vmem [#allocation0], 456
    %v1950 = vld [vmem:[%s1949] sm:%s1608]
    %s1952 = ssub.s32 16, 1
    %s1953 = scalar_lea.vmem %s1, 228
    %1954 = vst [vmem:[%s1953] sm:%s1952] %v1950
    %s1955 = scalar_lea.vmem [#allocation0], 464
    %v1956 = vld [vmem:[%s1955] sm:%s1608]
    %s1958 = ssub.s32 16, 1
    %s1959 = scalar_lea.vmem %s1, 232
    %1960 = vst [vmem:[%s1959] sm:%s1958] %v1956
    %s1961 = scalar_lea.vmem [#allocation0], 472
    %v1962 = vld [vmem:[%s1961] sm:%s1608]
    %s1964 = ssub.s32 16, 1
    %s1965 = scalar_lea.vmem %s1, 236
    %1966 = vst [vmem:[%s1965] sm:%s1964] %v1962
    %s1967 = scalar_lea.vmem [#allocation0], 480
    %v1968 = vld [vmem:[%s1967] sm:%s1608]
    %s1970 = ssub.s32 16, 1
    %s1971 = scalar_lea.vmem %s1, 240
    %1972 = vst [vmem:[%s1971] sm:%s1970] %v1968
    %s1973 = scalar_lea.vmem [#allocation0], 488
    %v1974 = vld [vmem:[%s1973] sm:%s1608]
    %s1976 = ssub.s32 16, 1
    %s1977 = scalar_lea.vmem %s1, 244
    %1978 = vst [vmem:[%s1977] sm:%s1976] %v1974
    %s1979 = scalar_lea.vmem [#allocation0], 496
    %v1980 = vld [vmem:[%s1979] sm:%s1608]
    %s1982 = ssub.s32 16, 1
    %s1983 = scalar_lea.vmem %s1, 248
    %1984 = vst [vmem:[%s1983] sm:%s1982] %v1980
    %s1985 = scalar_lea.vmem [#allocation0], 504
    %v1986 = vld [vmem:[%s1985] sm:%s1608]
    %s1988 = ssub.s32 16, 1
    %s1989 = scalar_lea.vmem %s1, 252
    %1990 = vst [vmem:[%s1989] sm:%s1988] %v1986
    %s1991 = scalar_lea.vmem [#allocation0], 512
    %v1992 = vld [vmem:[%s1991] sm:%s1608]
    %s1994 = ssub.s32 16, 1
    %s1995 = scalar_lea.vmem %s1, 256
    %1996 = vst [vmem:[%s1995] sm:%s1994] %v1992
    %s1997 = scalar_lea.vmem [#allocation0], 520
    %v1998 = vld [vmem:[%s1997] sm:%s1608]
    %s2000 = ssub.s32 16, 1
    %s2001 = scalar_lea.vmem %s1, 260
    %2002 = vst [vmem:[%s2001] sm:%s2000] %v1998
    %s2003 = scalar_lea.vmem [#allocation0], 528
    %v2004 = vld [vmem:[%s2003] sm:%s1608]
    %s2006 = ssub.s32 16, 1
    %s2007 = scalar_lea.vmem %s1, 264
    %2008 = vst [vmem:[%s2007] sm:%s2006] %v2004
    %s2009 = scalar_lea.vmem [#allocation0], 536
    %v2010 = vld [vmem:[%s2009] sm:%s1608]
    %s2012 = ssub.s32 16, 1
    %s2013 = scalar_lea.vmem %s1, 268
    %2014 = vst [vmem:[%s2013] sm:%s2012] %v2010
    %s2015 = scalar_lea.vmem [#allocation0], 544
    %v2016 = vld [vmem:[%s2015] sm:%s1608]
    %s2018 = ssub.s32 16, 1
    %s2019 = scalar_lea.vmem %s1, 272
    %2020 = vst [vmem:[%s2019] sm:%s2018] %v2016
    %s2021 = scalar_lea.vmem [#allocation0], 552
    %v2022 = vld [vmem:[%s2021] sm:%s1608]
    %s2024 = ssub.s32 16, 1
    %s2025 = scalar_lea.vmem %s1, 276
    %2026 = vst [vmem:[%s2025] sm:%s2024] %v2022
    %s2027 = scalar_lea.vmem [#allocation0], 560
    %v2028 = vld [vmem:[%s2027] sm:%s1608]
    %s2030 = ssub.s32 16, 1
    %s2031 = scalar_lea.vmem %s1, 280
    %2032 = vst [vmem:[%s2031] sm:%s2030] %v2028
    %s2033 = scalar_lea.vmem [#allocation0], 568
    %v2034 = vld [vmem:[%s2033] sm:%s1608]
    %s2036 = ssub.s32 16, 1
    %s2037 = scalar_lea.vmem %s1, 284
    %2038 = vst [vmem:[%s2037] sm:%s2036] %v2034
    %s2039 = scalar_lea.vmem [#allocation0], 576
    %v2040 = vld [vmem:[%s2039] sm:%s1608]
    %s2042 = ssub.s32 16, 1
    %s2043 = scalar_lea.vmem %s1, 288
    %2044 = vst [vmem:[%s2043] sm:%s2042] %v2040
    %s2045 = scalar_lea.vmem [#allocation0], 584
    %v2046 = vld [vmem:[%s2045] sm:%s1608]
    %s2048 = ssub.s32 16, 1
    %s2049 = scalar_lea.vmem %s1, 292
    %2050 = vst [vmem:[%s2049] sm:%s2048] %v2046
    %s2051 = scalar_lea.vmem [#allocation0], 592
    %v2052 = vld [vmem:[%s2051] sm:%s1608]
    %s2054 = ssub.s32 16, 1
    %s2055 = scalar_lea.vmem %s1, 296
    %2056 = vst [vmem:[%s2055] sm:%s2054] %v2052
    %s2057 = scalar_lea.vmem [#allocation0], 600
    %v2058 = vld [vmem:[%s2057] sm:%s1608]
    %s2060 = ssub.s32 16, 1
    %s2061 = scalar_lea.vmem %s1, 300
    %2062 = vst [vmem:[%s2061] sm:%s2060] %v2058
    %s2063 = scalar_lea.vmem [#allocation0], 608
    %v2064 = vld [vmem:[%s2063] sm:%s1608]
    %s2066 = ssub.s32 16, 1
    %s2067 = scalar_lea.vmem %s1, 304
    %2068 = vst [vmem:[%s2067] sm:%s2066] %v2064
    %s2069 = scalar_lea.vmem [#allocation0], 616
    %v2070 = vld [vmem:[%s2069] sm:%s1608]
    %s2072 = ssub.s32 16, 1
    %s2073 = scalar_lea.vmem %s1, 308
    %2074 = vst [vmem:[%s2073] sm:%s2072] %v2070
    %s2075 = scalar_lea.vmem [#allocation0], 624
    %v2076 = vld [vmem:[%s2075] sm:%s1608]
    %s2078 = ssub.s32 16, 1
    %s2079 = scalar_lea.vmem %s1, 312
    %2080 = vst [vmem:[%s2079] sm:%s2078] %v2076
    %s2081 = scalar_lea.vmem [#allocation0], 632
    %v2082 = vld [vmem:[%s2081] sm:%s1608]
    %s2084 = ssub.s32 16, 1
    %s2085 = scalar_lea.vmem %s1, 316
    %2086 = vst [vmem:[%s2085] sm:%s2084] %v2082
    %s2087 = scalar_lea.vmem [#allocation0], 640
    %v2088 = vld [vmem:[%s2087] sm:%s1608]
    %s2090 = ssub.s32 16, 1
    %s2091 = scalar_lea.vmem %s1, 320
    %2092 = vst [vmem:[%s2091] sm:%s2090] %v2088
    %s2093 = scalar_lea.vmem [#allocation0], 648
    %v2094 = vld [vmem:[%s2093] sm:%s1608]
    %s2096 = ssub.s32 16, 1
    %s2097 = scalar_lea.vmem %s1, 324
    %2098 = vst [vmem:[%s2097] sm:%s2096] %v2094
    %s2099 = scalar_lea.vmem [#allocation0], 656
    %v2100 = vld [vmem:[%s2099] sm:%s1608]
    %s2102 = ssub.s32 16, 1
    %s2103 = scalar_lea.vmem %s1, 328
    %2104 = vst [vmem:[%s2103] sm:%s2102] %v2100
    %s2105 = scalar_lea.vmem [#allocation0], 664
    %v2106 = vld [vmem:[%s2105] sm:%s1608]
    %s2108 = ssub.s32 16, 1
    %s2109 = scalar_lea.vmem %s1, 332
    %2110 = vst [vmem:[%s2109] sm:%s2108] %v2106
    %s2111 = scalar_lea.vmem [#allocation0], 672
    %v2112 = vld [vmem:[%s2111] sm:%s1608]
    %s2114 = ssub.s32 16, 1
    %s2115 = scalar_lea.vmem %s1, 336
    %2116 = vst [vmem:[%s2115] sm:%s2114] %v2112
    %s2117 = scalar_lea.vmem [#allocation0], 680
    %v2118 = vld [vmem:[%s2117] sm:%s1608]
    %s2120 = ssub.s32 16, 1
    %s2121 = scalar_lea.vmem %s1, 340
    %2122 = vst [vmem:[%s2121] sm:%s2120] %v2118
    %s2123 = scalar_lea.vmem [#allocation0], 688
    %v2124 = vld [vmem:[%s2123] sm:%s1608]
    %s2126 = ssub.s32 16, 1
    %s2127 = scalar_lea.vmem %s1, 344
    %2128 = vst [vmem:[%s2127] sm:%s2126] %v2124
    %s2129 = scalar_lea.vmem [#allocation0], 696
    %v2130 = vld [vmem:[%s2129] sm:%s1608]
    %s2132 = ssub.s32 16, 1
    %s2133 = scalar_lea.vmem %s1, 348
    %2134 = vst [vmem:[%s2133] sm:%s2132] %v2130
    %s2135 = scalar_lea.vmem [#allocation0], 704
    %v2136 = vld [vmem:[%s2135] sm:%s1608]
    %s2138 = ssub.s32 16, 1
    %s2139 = scalar_lea.vmem %s1, 352
    %2140 = vst [vmem:[%s2139] sm:%s2138] %v2136
    %s2141 = scalar_lea.vmem [#allocation0], 712
    %v2142 = vld [vmem:[%s2141] sm:%s1608]
    %s2144 = ssub.s32 16, 1
    %s2145 = scalar_lea.vmem %s1, 356
    %2146 = vst [vmem:[%s2145] sm:%s2144] %v2142
    %s2147 = scalar_lea.vmem [#allocation0], 720
    %v2148 = vld [vmem:[%s2147] sm:%s1608]
    %s2150 = ssub.s32 16, 1
    %s2151 = scalar_lea.vmem %s1, 360
    %2152 = vst [vmem:[%s2151] sm:%s2150] %v2148
    %s2153 = scalar_lea.vmem [#allocation0], 728
    %v2154 = vld [vmem:[%s2153] sm:%s1608]
    %s2156 = ssub.s32 16, 1
    %s2157 = scalar_lea.vmem %s1, 364
    %2158 = vst [vmem:[%s2157] sm:%s2156] %v2154
    %s2159 = scalar_lea.vmem [#allocation0], 736
    %v2160 = vld [vmem:[%s2159] sm:%s1608]
    %s2162 = ssub.s32 16, 1
    %s2163 = scalar_lea.vmem %s1, 368
    %2164 = vst [vmem:[%s2163] sm:%s2162] %v2160
    %s2165 = scalar_lea.vmem [#allocation0], 744
    %v2166 = vld [vmem:[%s2165] sm:%s1608]
    %s2168 = ssub.s32 16, 1
    %s2169 = scalar_lea.vmem %s1, 372
    %2170 = vst [vmem:[%s2169] sm:%s2168] %v2166
    %s2171 = scalar_lea.vmem [#allocation0], 752
    %v2172 = vld [vmem:[%s2171] sm:%s1608]
    %s2174 = ssub.s32 16, 1
    %s2175 = scalar_lea.vmem %s1, 376
    %2176 = vst [vmem:[%s2175] sm:%s2174] %v2172
    %s2177 = scalar_lea.vmem [#allocation0], 760
    %v2178 = vld [vmem:[%s2177] sm:%s1608]
    %s2180 = ssub.s32 16, 1
    %s2181 = scalar_lea.vmem %s1, 380
    %2182 = vst [vmem:[%s2181] sm:%s2180] %v2178
    %s2183 = scalar_lea.vmem [#allocation0], 768
    %v2184 = vld [vmem:[%s2183] sm:%s1608]
    %s2186 = ssub.s32 16, 1
    %s2187 = scalar_lea.vmem %s1, 384
    %2188 = vst [vmem:[%s2187] sm:%s2186] %v2184
    %s2189 = scalar_lea.vmem [#allocation0], 776
    %v2190 = vld [vmem:[%s2189] sm:%s1608]
    %s2192 = ssub.s32 16, 1
    %s2193 = scalar_lea.vmem %s1, 388
    %2194 = vst [vmem:[%s2193] sm:%s2192] %v2190
    %s2195 = scalar_lea.vmem [#allocation0], 784
    %v2196 = vld [vmem:[%s2195] sm:%s1608]
    %s2198 = ssub.s32 16, 1
    %s2199 = scalar_lea.vmem %s1, 392
    %2200 = vst [vmem:[%s2199] sm:%s2198] %v2196
    %s2201 = scalar_lea.vmem [#allocation0], 792
    %v2202 = vld [vmem:[%s2201] sm:%s1608]
    %s2204 = ssub.s32 16, 1
    %s2205 = scalar_lea.vmem %s1, 396
    %2206 = vst [vmem:[%s2205] sm:%s2204] %v2202
    %s2207 = scalar_lea.vmem [#allocation0], 800
    %v2208 = vld [vmem:[%s2207] sm:%s1608]
    %s2210 = ssub.s32 16, 1
    %s2211 = scalar_lea.vmem %s1, 400
    %2212 = vst [vmem:[%s2211] sm:%s2210] %v2208
    %s2213 = scalar_lea.vmem [#allocation0], 808
    %v2214 = vld [vmem:[%s2213] sm:%s1608]
    %s2216 = ssub.s32 16, 1
    %s2217 = scalar_lea.vmem %s1, 404
    %2218 = vst [vmem:[%s2217] sm:%s2216] %v2214
    %s2219 = scalar_lea.vmem [#allocation0], 816
    %v2220 = vld [vmem:[%s2219] sm:%s1608]
    %s2222 = ssub.s32 16, 1
    %s2223 = scalar_lea.vmem %s1, 408
    %2224 = vst [vmem:[%s2223] sm:%s2222] %v2220
    %s2225 = scalar_lea.vmem [#allocation0], 824
    %v2226 = vld [vmem:[%s2225] sm:%s1608]
    %s2228 = ssub.s32 16, 1
    %s2229 = scalar_lea.vmem %s1, 412
    %2230 = vst [vmem:[%s2229] sm:%s2228] %v2226
    %s2231 = scalar_lea.vmem [#allocation0], 832
    %v2232 = vld [vmem:[%s2231] sm:%s1608]
    %s2234 = ssub.s32 16, 1
    %s2235 = scalar_lea.vmem %s1, 416
    %2236 = vst [vmem:[%s2235] sm:%s2234] %v2232
    %s2237 = scalar_lea.vmem [#allocation0], 840
    %v2238 = vld [vmem:[%s2237] sm:%s1608]
    %s2240 = ssub.s32 16, 1
    %s2241 = scalar_lea.vmem %s1, 420
    %2242 = vst [vmem:[%s2241] sm:%s2240] %v2238
    %s2243 = scalar_lea.vmem [#allocation0], 848
    %v2244 = vld [vmem:[%s2243] sm:%s1608]
    %s2246 = ssub.s32 16, 1
    %s2247 = scalar_lea.vmem %s1, 424
    %2248 = vst [vmem:[%s2247] sm:%s2246] %v2244
    %s2249 = scalar_lea.vmem [#allocation0], 856
    %v2250 = vld [vmem:[%s2249] sm:%s1608]
    %s2252 = ssub.s32 16, 1
    %s2253 = scalar_lea.vmem %s1, 428
    %2254 = vst [vmem:[%s2253] sm:%s2252] %v2250
    %s2255 = scalar_lea.vmem [#allocation0], 864
    %v2256 = vld [vmem:[%s2255] sm:%s1608]
    %s2258 = ssub.s32 16, 1
    %s2259 = scalar_lea.vmem %s1, 432
    %2260 = vst [vmem:[%s2259] sm:%s2258] %v2256
    %s2261 = scalar_lea.vmem [#allocation0], 872
    %v2262 = vld [vmem:[%s2261] sm:%s1608]
    %s2264 = ssub.s32 16, 1
    %s2265 = scalar_lea.vmem %s1, 436
    %2266 = vst [vmem:[%s2265] sm:%s2264] %v2262
    %s2267 = scalar_lea.vmem [#allocation0], 880
    %v2268 = vld [vmem:[%s2267] sm:%s1608]
    %s2270 = ssub.s32 16, 1
    %s2271 = scalar_lea.vmem %s1, 440
    %2272 = vst [vmem:[%s2271] sm:%s2270] %v2268
    %s2273 = scalar_lea.vmem [#allocation0], 888
    %v2274 = vld [vmem:[%s2273] sm:%s1608]
    %s2276 = ssub.s32 16, 1
    %s2277 = scalar_lea.vmem %s1, 444
    %2278 = vst [vmem:[%s2277] sm:%s2276] %v2274
    %s2279 = scalar_lea.vmem [#allocation0], 896
    %v2280 = vld [vmem:[%s2279] sm:%s1608]
    %s2282 = ssub.s32 16, 1
    %s2283 = scalar_lea.vmem %s1, 448
    %2284 = vst [vmem:[%s2283] sm:%s2282] %v2280
    %s2285 = scalar_lea.vmem [#allocation0], 904
    %v2286 = vld [vmem:[%s2285] sm:%s1608]
    %s2288 = ssub.s32 16, 1
    %s2289 = scalar_lea.vmem %s1, 452
    %2290 = vst [vmem:[%s2289] sm:%s2288] %v2286
    %s2291 = scalar_lea.vmem [#allocation0], 912
    %v2292 = vld [vmem:[%s2291] sm:%s1608]
    %s2294 = ssub.s32 16, 1
    %s2295 = scalar_lea.vmem %s1, 456
    %2296 = vst [vmem:[%s2295] sm:%s2294] %v2292
    %s2297 = scalar_lea.vmem [#allocation0], 920
    %v2298 = vld [vmem:[%s2297] sm:%s1608]
    %s2300 = ssub.s32 16, 1
    %s2301 = scalar_lea.vmem %s1, 460
    %2302 = vst [vmem:[%s2301] sm:%s2300] %v2298
    %s2303 = scalar_lea.vmem [#allocation0], 928
    %v2304 = vld [vmem:[%s2303] sm:%s1608]
    %s2306 = ssub.s32 16, 1
    %s2307 = scalar_lea.vmem %s1, 464
    %2308 = vst [vmem:[%s2307] sm:%s2306] %v2304
    %s2309 = scalar_lea.vmem [#allocation0], 936
    %v2310 = vld [vmem:[%s2309] sm:%s1608]
    %s2312 = ssub.s32 16, 1
    %s2313 = scalar_lea.vmem %s1, 468
    %2314 = vst [vmem:[%s2313] sm:%s2312] %v2310
    %s2315 = scalar_lea.vmem [#allocation0], 944
    %v2316 = vld [vmem:[%s2315] sm:%s1608]
    %s2318 = ssub.s32 16, 1
    %s2319 = scalar_lea.vmem %s1, 472
    %2320 = vst [vmem:[%s2319] sm:%s2318] %v2316
    %s2321 = scalar_lea.vmem [#allocation0], 952
    %v2322 = vld [vmem:[%s2321] sm:%s1608]
    %s2324 = ssub.s32 16, 1
    %s2325 = scalar_lea.vmem %s1, 476
    %2326 = vst [vmem:[%s2325] sm:%s2324] %v2322
    %s2327 = scalar_lea.vmem [#allocation0], 960
    %v2328 = vld [vmem:[%s2327] sm:%s1608]
    %s2330 = ssub.s32 16, 1
    %s2331 = scalar_lea.vmem %s1, 480
    %2332 = vst [vmem:[%s2331] sm:%s2330] %v2328
    %s2333 = scalar_lea.vmem [#allocation0], 968
    %v2334 = vld [vmem:[%s2333] sm:%s1608]
    %s2336 = ssub.s32 16, 1
    %s2337 = scalar_lea.vmem %s1, 484
    %2338 = vst [vmem:[%s2337] sm:%s2336] %v2334
    %s2339 = scalar_lea.vmem [#allocation0], 976
    %v2340 = vld [vmem:[%s2339] sm:%s1608]
    %s2342 = ssub.s32 16, 1
    %s2343 = scalar_lea.vmem %s1, 488
    %2344 = vst [vmem:[%s2343] sm:%s2342] %v2340
    %s2345 = scalar_lea.vmem [#allocation0], 984
    %v2346 = vld [vmem:[%s2345] sm:%s1608]
    %s2348 = ssub.s32 16, 1
    %s2349 = scalar_lea.vmem %s1, 492
    %2350 = vst [vmem:[%s2349] sm:%s2348] %v2346
    %s2351 = scalar_lea.vmem [#allocation0], 992
    %v2352 = vld [vmem:[%s2351] sm:%s1608]
    %s2354 = ssub.s32 16, 1
    %s2355 = scalar_lea.vmem %s1, 496
    %2356 = vst [vmem:[%s2355] sm:%s2354] %v2352
    %s2357 = scalar_lea.vmem [#allocation0], 1000
    %v2358 = vld [vmem:[%s2357] sm:%s1608]
    %s2360 = ssub.s32 16, 1
    %s2361 = scalar_lea.vmem %s1, 500
    %2362 = vst [vmem:[%s2361] sm:%s2360] %v2358
    %s2363 = scalar_lea.vmem [#allocation0], 1008
    %v2364 = vld [vmem:[%s2363] sm:%s1608]
    %s2366 = ssub.s32 16, 1
    %s2367 = scalar_lea.vmem %s1, 504
    %2368 = vst [vmem:[%s2367] sm:%s2366] %v2364
    %s2369 = scalar_lea.vmem [#allocation0], 1016
    %v2370 = vld [vmem:[%s2369] sm:%s1608]
    %s2372 = ssub.s32 16, 1
    %s2373 = scalar_lea.vmem %s1, 508
    %2374 = vst [vmem:[%s2373] sm:%s2372] %v2370

// kernel: generator_forward.10
$region0: #{generator_forward.10}
  #allocation0 [shape = 'u32[]', space=smem, size = 0x4, offset = 0x4, fixed_abs, tag = 'smem constant byte address 0x4 - core index']
  #allocation1 [shape = 'u32[72,128]{1,0:T(1,128)}', space=vmem, size = 0x9000, scoped, tag = 'internal scratch']
  %s0 = inlined_call_operand.vmem [shape: f32[32,64], index: 0, kind: input, shape index: {}]
  %s1 = inlined_call_operand.vmem [shape: f32[1,64], index: 1, kind: input, shape index: {}]
  %s2 = inlined_call_operand.vmem [shape: f32[1,64], index: 2, kind: input, shape index: {}]
  %s3 = inlined_call_operand.vmem [shape: f32[32,64], index: 3, kind: output, shape index: {}]
  %s4 = sld [smem:[#allocation0]]
  $region22: #{generator_forward.10} parent=0
    _
  %s6 = ssub.s32 1, %s4
  %s7 = scalar_select 0, %s6, %s4
  // Predicated region
  $region2: #{generator_forward.10} parent=0 // pred_check
    _
  $region3: #{generator_forward.10} parent=0 // pred_check_branch
    %9 = sbr.rel (0) target = $region5
  $region4: #{generator_forward.10} parent=0 // pred_region
    _
  $region5: #{generator_forward.10} parent=0 // pred_fallthru
    _
  // Predicated region
  $region6: #{generator_forward.10} parent=0 // pred_check
    _
  $region7: #{generator_forward.10} parent=0 // pred_check_branch
    %11 = sbr.rel (0) target = $region9
  $region8: #{generator_forward.10} parent=0 // pred_region
    _
  $region9: #{generator_forward.10} parent=0 // pred_fallthru
    _
  // Predicated region
  $region10: #{generator_forward.10} parent=0 // pred_check
    _
  $region11: #{generator_forward.10} parent=0 // pred_check_branch
    %13 = sbr.rel (0) target = $region13
  $region12: #{generator_forward.10} parent=0 // pred_region
    _
  $region13: #{generator_forward.10} parent=0 // pred_fallthru
    _
  %v14 = vld [vmem:[%s0] sm:$0xff]
  %v15 = vld [vmem:[%s0 + $0x8] sm:$0xff]
  %v16 = vld [vmem:[%s0 + $0x10] sm:$0xff]
  %v17 = vld [vmem:[%s0 + $0x18] sm:$0xff]
  %v18 = vld [vmem:[%s1] sm:$0x1]
  %v20 = vperm.slane %v18, 0
  %v22 = vmul.f32 %v14, %v20
  %v23 = vmul.f32 %v15, %v20
  %v24 = vmul.f32 %v16, %v20
  %v25 = vmul.f32 %v17, %v20
  %v26 = vld [vmem:[%s2] sm:$0x1]
  %v28 = vperm.slane %v26, 0
  %v30 = vadd.f32 %v22, %v28
  %v31 = vadd.f32 %v23, %v28
  %v32 = vadd.f32 %v24, %v28
  %v33 = vadd.f32 %v25, %v28
  %v34 = vmax.f32 %v30, 0.0
  %v35 = vmax.f32 %v31, 0.0
  %v36 = vmax.f32 %v32, 0.0
  %v37 = vmax.f32 %v33, 0.0
  %vm38 = vcmask 523264
  %39 = vst.msk [vmem:[%s3] sm:$0xff] %vm38, %v34
  %40 = vst.msk [vmem:[%s3 + $0x8] sm:$0xff] %vm38, %v35
  %41 = vst.msk [vmem:[%s3 + $0x10] sm:$0xff] %vm38, %v36
  %42 = vst.msk [vmem:[%s3 + $0x18] sm:$0xff] %vm38, %v37
  // Predicated region
  $region14: #{generator_forward.10} parent=0 // pred_check
    _
  $region15: #{generator_forward.10} parent=0 // pred_check_branch
    %44 = sbr.rel (0) target = $region17
  $region16: #{generator_forward.10} parent=0 // pred_region
    _
  $region17: #{generator_forward.10} parent=0 // pred_fallthru
    _
  // Predicated region
  $region18: #{generator_forward.10} parent=0 // pred_check
    _
  $region19: #{generator_forward.10} parent=0 // pred_check_branch
    %46 = sbr.rel (0) target = $region21
  $region20: #{generator_forward.10} parent=0 // pred_region
    _
  $region21: #{generator_forward.10} parent=0 // pred_fallthru
    _

// kernel: generator_forward.9
$region0: #{generator_forward.9}
  #allocation0 [shape = 'u32[]', space=smem, size = 0x4, offset = 0x4, fixed_abs, tag = 'smem constant byte address 0x4 - core index']
  #allocation1 [shape = 'u32[72,128]{1,0:T(1,128)}', space=vmem, size = 0x9000, scoped, tag = 'internal scratch']
  %s0 = inlined_call_operand.vmem [shape: f32[32,64], index: 0, kind: input, shape index: {}]
  %s1 = inlined_call_operand.vmem [shape: f32[2,64], index: 1, kind: output, shape index: {}]
  %s2 = sld [smem:[#allocation0]]
  $region18: #{generator_forward.9} parent=0
    _
  %s4 = ssub.s32 1, %s2
  %s5 = scalar_select 0, %s4, %s2
  // Predicated region
  $region2: #{generator_forward.9} parent=0 // pred_check
    _
  $region3: #{generator_forward.9} parent=0 // pred_check_branch
    %7 = sbr.rel (0) target = $region5
  $region4: #{generator_forward.9} parent=0 // pred_region
    _
  $region5: #{generator_forward.9} parent=0 // pred_fallthru
    _
  %p8 = scmp.eq.s32.totalorder 0, 0
  // Predicated region
  $region6: #{generator_forward.9} parent=0 // pred_check
    %p9 = pneg %p8
  $region7: #{generator_forward.9} parent=0 // pred_check_branch
    %11 = sbr.rel (%p9) target = $region9
  $region8: #{generator_forward.9} parent=0 // pred_region
    %vm12 = vcmask 517120
    %13 = vst.msk [vmem:[%s1] sm:$0x3] %vm12, 0.0
  $region9: #{generator_forward.9} parent=0 // pred_fallthru
    _
  %v14 = vld [vmem:[%s0] sm:$0xff]
  %v15 = vld [vmem:[%s0 + $0x8] sm:$0xff]
  %v16 = vld [vmem:[%s0 + $0x10] sm:$0xff]
  %v17 = vld [vmem:[%s0 + $0x18] sm:$0xff]
  %vm18 = vcmask 523264
  %v19 = vsel %vm18, %v14, 0.0
  %v20 = vsel %vm18, %v15, 0.0
  %v21 = vadd.f32 %v19, %v20
  %v22 = vsel %vm18, %v16, 0.0
  %v23 = vadd.f32 %v21, %v22
  %v24 = vsel %vm18, %v17, 0.0
  %v25 = vadd.f32 %v23, %v24
  %v26 = vrot.slane %v25, 4
  %v27 = vadd.f32 %v25, %v26
  %v28 = vrot.slane %v27, 2
  %v29 = vadd.f32 %v27, %v28
  %v30 = vrot.slane %v29, 1
  %v31 = vadd.f32 %v29, %v30
  %v32 = vmul.f32 %v14, %v14
  %v33 = vmul.f32 %v15, %v15
  %v34 = vmul.f32 %v16, %v16
  %v35 = vmul.f32 %v17, %v17
  %v36 = vsel %vm18, %v32, 0.0
  %v37 = vsel %vm18, %v33, 0.0
  %v38 = vadd.f32 %v36, %v37
  %v39 = vsel %vm18, %v34, 0.0
  %v40 = vadd.f32 %v38, %v39
  %v41 = vsel %vm18, %v35, 0.0
  %v42 = vadd.f32 %v40, %v41
  %v43 = vrot.slane %v42, 4
  %v44 = vadd.f32 %v42, %v43
  %v45 = vrot.slane %v44, 2
  %v46 = vadd.f32 %v44, %v45
  %v47 = vrot.slane %v46, 1
  %v48 = vadd.f32 %v46, %v47
  %v49 = vld [vmem:[%s1] sm:$0x3]
  %vm50 = vcmask 1040384
  %v51 = vsel %vm50, %v31, %v48
  %v52 = vadd.f32 %v49, %v51
  %vm53 = vcmask 517120
  %54 = vst.msk [vmem:[%s1] sm:$0x3] %vm53, %v52
  // Predicated region
  $region10: #{generator_forward.9} parent=0 // pred_check
    _
  $region11: #{generator_forward.9} parent=0 // pred_check_branch
    %56 = sbr.rel (0) target = $region13
  $region12: #{generator_forward.9} parent=0 // pred_region
    _
  $region13: #{generator_forward.9} parent=0 // pred_fallthru
    _
  // Predicated region
  $region14: #{generator_forward.9} parent=0 // pred_check
    _
  $region15: #{generator_forward.9} parent=0 // pred_check_branch
    %58 = sbr.rel (0) target = $region17
  $region16: #{generator_forward.9} parent=0 // pred_region
    _
  $region17: #{generator_forward.9} parent=0 // pred_fallthru
    _

// kernel: generator_forward.8
$region0: #{generator_forward.8}
  #allocation0 [shape = 'u32[]', space=smem, size = 0x4, offset = 0x4, fixed_abs, tag = 'smem constant byte address 0x4 - core index']
  #allocation1 [shape = 'u32[72,128]{1,0:T(1,128)}', space=vmem, size = 0x9000, scoped, tag = 'internal scratch']
  #allocation2 [shape = 'f32[16,256]{1,0:T(8,128)}', space=vmem, size = 0x4000, scoped, tag = 'scratch operand']
  %s0 = inlined_call_operand.vmem [shape: bf16[1,16,128], index: 0, kind: input, shape index: {}]
  %s1 = inlined_call_operand.vmem [shape: bf16[1,128,1024], index: 1, kind: input, shape index: {}]
  %s2 = inlined_call_operand.vmem [shape: f32[1,16,1024], index: 2, kind: output, shape index: {}]
  %s3 = sld [smem:[#allocation0]]
  $region106: #{generator_forward.8} parent=0
    _
  %s5 = ssub.s32 1, %s3
  %s6 = scalar_select 0, %s5, %s3
  $region1: #{generator_forward.8} parent=0
    #allocation3 [shape = 'u8[131072]{0}', space=vmem, size = 0x20000, scoped, tag = 'input window, operand 1']
    #allocation4 [shape = 'u8[32768]{0}', space=vmem, size = 0x8000, scoped, tag = 'output window, operand 0']
    loop: start=0, step=1, limit=6
    $region2: #{generator_forward.8} parent=1 // loop_pre_header
      _
    $region3: #{generator_forward.8} parent=1 // loop_header
      %s8 = sphi 0, %s12
      %p9 = scmp.ge.s32.totalorder %s8, 6
      %s15 = sphi 0, %s41
      %s16 = sphi 0, %s37
      %s17 = sphi 0, %s33
      %s18 = sphi 0, %s29
      %s19 = sphi 0, %s15
      %s20 = sphi 0, %s16
      %s21 = sphi 0, %s17
      %s22 = sphi 0, %s18
      %s23 = sphi 0, %s19
      %s24 = sphi 0, %s20
      %s25 = sphi 0, %s21
      %s26 = sphi 0, %s22
      %s48 = sphi 0, %s50
      %s51 = sphi 0, %s48
      %s52 = sphi 0, %s51
      %s68 = sphi 0, %s52
      %s78 = sphi 0, %s80
      %s81 = sphi 0, %s78
      %s82 = sphi 0, %s81
      %s98 = sphi 0, %s82
      %s108 = sphi 0, %s110
      %s111 = sphi 0, %s108
      %s112 = sphi 0, %s111
      %s128 = sphi 0, %s112
    $region4: #{generator_forward.8} parent=1 // loop_header_branch
      %11 = sbr.rel (%p9) target = $region8
    $region5: #{generator_forward.8} parent=1 // loop_body
      %s13 = ssub.s32 %s8, 1
      %s14 = ssub.s32 %s8, 2
      %s27 = sadd.s32 1, %s18
      %p28 = scmp.ge.s32.totalorder %s27, 1
      %s29 = scalar_select %p28, 0, %s27
      %s30 = sadd.s32 1, %s17
      %s31 = scalar_select %p28, %s30, %s17
      %p32 = scmp.ge.s32.totalorder %s31, 4
      %s33 = scalar_select %p32, 0, %s31
      %s34 = sadd.s32 1, %s16
      %s35 = scalar_select %p32, %s34, %s16
      %p36 = scmp.ge.s32.totalorder %s35, 1
      %s37 = scalar_select %p36, 0, %s35
      %s38 = sadd.s32 1, %s15
      %s39 = scalar_select %p36, %s38, %s15
      %p40 = scmp.ge.s32.totalorder %s39, 1
      %s41 = scalar_select %p40, 0, %s39
      %s42 = ssub.s32 %s15, %s41
      %s43 = ssub.s32 %s16, %s37
      %s44 = sor.u32 %s42, %s43
      %s45 = ssub.s32 %s18, %s29
      %s46 = sor.u32 %s44, %s45
      %p47 = scmp.eq.s32.totalorder %s46, 0
      %s49 = sadd.s32 %s48, 1
      %s50 = scalar_select %p47, %s48, %s49
      %p53 = pneg %p47
      %p54 = scmp.eq.s32.totalorder %s8, 3
      %p55 = por %p53, %p54
      %p56 = scmp.ne.s32.totalorder %s48, %s51
      %p57 = scmp.eq.s32.totalorder %s8, 0
      %p58 = por %p56, %p57
      %p59 = scmp.ne.s32.totalorder %s48, %s51
      %p60 = scmp.eq.s32.totalorder %s13, 3
      %p61 = por %p59, %p60
      %p62 = scmp.ne.s32.totalorder %s51, %s52
      %p63 = scmp.eq.s32.totalorder %s13, 0
      %p64 = por %p62, %p63
      %p65 = scmp.ne.s32.totalorder %s51, %s52
      %p66 = scmp.eq.s32.totalorder %s14, 3
      %p67 = por %p65, %p66
      %p69 = scmp.ne.s32.totalorder %s52, %s68
      %p70 = scmp.eq.s32.totalorder %s14, 0
      %p71 = por %p69, %p70
      %s72 = ssub.s32 %s15, %s41
      %s73 = ssub.s32 %s18, %s29
      %s74 = sor.u32 %s72, %s73
      %s75 = ssub.s32 %s17, %s33
      %s76 = sor.u32 %s74, %s75
      %p77 = scmp.eq.s32.totalorder %s76, 0
      %s79 = sadd.s32 %s78, 1
      %s80 = scalar_select %p77, %s78, %s79
      %p83 = pneg %p77
      %p84 = scmp.eq.s32.totalorder %s8, 3
      %p85 = por %p83, %p84
      %p86 = scmp.ne.s32.totalorder %s78, %s81
      %p87 = scmp.eq.s32.totalorder %s8, 0
      %p88 = por %p86, %p87
      %p89 = scmp.ne.s32.totalorder %s78, %s81
      %p90 = scmp.eq.s32.totalorder %s13, 3
      %p91 = por %p89, %p90
      %p92 = scmp.ne.s32.totalorder %s81, %s82
      %p93 = scmp.eq.s32.totalorder %s13, 0
      %p94 = por %p92, %p93
      %p95 = scmp.ne.s32.totalorder %s81, %s82
      %p96 = scmp.eq.s32.totalorder %s14, 3
      %p97 = por %p95, %p96
      %p99 = scmp.ne.s32.totalorder %s82, %s98
      %p100 = scmp.eq.s32.totalorder %s14, 0
      %p101 = por %p99, %p100
      %s102 = ssub.s32 %s15, %s41
      %s103 = ssub.s32 %s16, %s37
      %s104 = sor.u32 %s102, %s103
      %s105 = ssub.s32 %s17, %s33
      %s106 = sor.u32 %s104, %s105
      %p107 = scmp.eq.s32.totalorder %s106, 0
      %s109 = sadd.s32 %s108, 1
      %s110 = scalar_select %p107, %s108, %s109
      %p113 = pneg %p107
      %p114 = scmp.eq.s32.totalorder %s8, 3
      %p115 = por %p113, %p114
      %p116 = scmp.ne.s32.totalorder %s108, %s111
      %p117 = scmp.eq.s32.totalorder %s8, 0
      %p118 = por %p116, %p117
      %p119 = scmp.ne.s32.totalorder %s108, %s111
      %p120 = scmp.eq.s32.totalorder %s13, 3
      %p121 = por %p119, %p120
      %p122 = scmp.ne.s32.totalorder %s111, %s112
      %p123 = scmp.eq.s32.totalorder %s13, 0
      %p124 = por %p122, %p123
      %p125 = scmp.ne.s32.totalorder %s111, %s112
      %p126 = scmp.eq.s32.totalorder %s14, 3
      %p127 = por %p125, %p126
      %p129 = scmp.ne.s32.totalorder %s112, %s128
      %p130 = scmp.eq.s32.totalorder %s14, 0
      %p131 = por %p129, %p130
      %p132 = scmp.le.s32.totalorder 1, %s8
      %p133 = scmp.lt.s32.totalorder %s8, 5
      %p134 = pnand %p132, %p133
      %p135 = pneg %p134
      // Predicated region
      $region9: #{generator_forward.8} parent=5 // pred_check
        _
      $region10: #{generator_forward.8} parent=5 // pred_check_branch
        %137 = sbr.rel (%p134) target = $region12
      $region11: #{generator_forward.8} parent=5 // pred_region
        %s138 = ssub.s32 %s8, 1
        // Predicated region
        $region13: #{generator_forward.8} parent=11 // pred_check
          %p139 = pneg %p64
        $region14: #{generator_forward.8} parent=11 // pred_check_branch
          %141 = sbr.rel (%p139) target = $region16
        $region15: #{generator_forward.8} parent=11 // pred_region
          %s142 = smul.u32 2, %s20
          %p143 = scmp.lt.s32.totalorder %s19, 0
          %s144 = scalar_select %p143, %s19, 0
          %p145 = scmp.lt.s32.totalorder %s142, 1
          %s146 = scalar_select %p145, %s142, 1
          %p147 = scmp.lt.s32.totalorder %s22, 0
          %s148 = scalar_select %p147, %s22, 0
          %s149 = sadd.s32 %s148, %s146
          %s150 = smul.addr %s144, 2
          %s151 = sadd.s32 %s149, %s150
          %s152 = smul.addr %s151, 4
          %s153 = scalar_lea.vmem %s0, %s152
          %s154 = smul.u32 2, %s20
        $region16: #{generator_forward.8} parent=11 // pred_fallthru
          _
      $region12: #{generator_forward.8} parent=5 // pred_fallthru
        _
      %p155 = scmp.lt.s32.totalorder %s8, 4
      // Predicated region
      $region17: #{generator_forward.8} parent=5 // pred_check
        %p156 = pneg %p155
      $region18: #{generator_forward.8} parent=5 // pred_check_branch
        %158 = sbr.rel (%p156) target = $region20
      $region19: #{generator_forward.8} parent=5 // pred_region
        // Predicated region
        $region21: #{generator_forward.8} parent=19 // pred_check
          %p159 = pneg %p88
        $region22: #{generator_forward.8} parent=19 // pred_check_branch
          %161 = sbr.rel (%p159) target = $region24
        $region23: #{generator_forward.8} parent=19 // pred_region
          %s162 = sand.u32 %s78, 1
          %s163 = sand.u32 %s78, 1
          %s164 = smul.addr %s163, 128
          %s165 = scalar_lea.vmem [#allocation3], %s164
          %s166 = smul.u32 16, %s18
          %s167 = smul.u32 2, %s17
          %s168 = smul.addr %s166, 8
          %s169 = sadd.s32 %s167, %s168
          %s170 = smul.addr %s15, 128
          %s171 = sadd.s32 %s169, %s170
          %s172 = smul.addr %s171, 4
          %s173 = scalar_lea.vmem %s1, %s172
          // Predicated region
          $region25: #{generator_forward.8} parent=23 // pred_check
            _
          $region26: #{generator_forward.8} parent=23 // pred_check_branch
            %175 = sbr.rel (0) target = $region28
          $region27: #{generator_forward.8} parent=23 // pred_region
            // Predicated region
            $region29: #{generator_forward.8} parent=27 // pred_check
              _
            $region30: #{generator_forward.8} parent=27 // pred_check_branch
              %177 = sbr.rel (0) target = $region32
            $region31: #{generator_forward.8} parent=27 // pred_region
              // Predicated region
              $region44: #{generator_forward.8} parent=31 // pred_check
                _
              $region45: #{generator_forward.8} parent=31 // pred_check_branch
                %223 = sbr.rel (0) target = $region47
              $region46: #{generator_forward.8} parent=31 // pred_region
                loop: start=0, step=1, limit=1
                $region48: #{generator_forward.8} parent=46 // loop_pre_header
                  _
                $region49: #{generator_forward.8} parent=46 // loop_header
                  %s225 = sphi 0, %s229
                  %p226 = scmp.ge.s32.totalorder %s225, 1
                  %s230 = sphi %s173, %s173
                  %s231 = sphi %s165, %s165
                $region50: #{generator_forward.8} parent=46 // loop_header_branch
                  %228 = sbr.rel (%p226) target = $region54
                $region51: #{generator_forward.8} parent=46 // loop_body
                  %v232 = vld [vmem:[%s230] sm:$0xff]
                  %233 = vst [vmem:[%s231] sm:$0xff] %v232
                  %v234 = vld [vmem:[%s230 + $0x20] sm:$0xff]
                  %235 = vst [vmem:[%s231 + $0x8] sm:$0xff] %v234
                  %v236 = vld [vmem:[%s230 + $0x40] sm:$0xff]
                  %237 = vst [vmem:[%s231 + $0x10] sm:$0xff] %v236
                  %v238 = vld [vmem:[%s230 + $0x60] sm:$0xff]
                  %239 = vst [vmem:[%s231 + $0x18] sm:$0xff] %v238
                  %v240 = vld [vmem:[%s230 + $0x80] sm:$0xff]
                  %241 = vst [vmem:[%s231 + $0x20] sm:$0xff] %v240
                  %v242 = vld [vmem:[%s230 + $0xa0] sm:$0xff]
                  %243 = vst [vmem:[%s231 + $0x28] sm:$0xff] %v242
                  %v244 = vld [vmem:[%s230 + $0xc0] sm:$0xff]
                  %245 = vst [vmem:[%s231 + $0x30] sm:$0xff] %v244
                  %v246 = vld [vmem:[%s230 + $0xe0] sm:$0xff]
                  %247 = vst [vmem:[%s231 + $0x38] sm:$0xff] %v246
                  %v248 = vld [vmem:[%s230 + $0x100] sm:$0xff]
                  %249 = vst [vmem:[%s231 + $0x40] sm:$0xff] %v248
                  %v250 = vld [vmem:[%s230 + $0x120] sm:$0xff]
                  %251 = vst [vmem:[%s231 + $0x48] sm:$0xff] %v250
                  %v252 = vld [vmem:[%s230 + $0x140] sm:$0xff]
                  %253 = vst [vmem:[%s231 + $0x50] sm:$0xff] %v252
                  %v254 = vld [vmem:[%s230 + $0x160] sm:$0xff]
                  %255 = vst [vmem:[%s231 + $0x58] sm:$0xff] %v254
                  %v256 = vld [vmem:[%s230 + $0x180] sm:$0xff]
                  %257 = vst [vmem:[%s231 + $0x60] sm:$0xff] %v256
                  %v258 = vld [vmem:[%s230 + $0x1a0] sm:$0xff]
                  %259 = vst [vmem:[%s231 + $0x68] sm:$0xff] %v258
                  %v260 = vld [vmem:[%s230 + $0x1c0] sm:$0xff]
                  %261 = vst [vmem:[%s231 + $0x70] sm:$0xff] %v260
                  %v262 = vld [vmem:[%s230 + $0x1e0] sm:$0xff]
                  %263 = vst [vmem:[%s231 + $0x78] sm:$0xff] %v262
                $region52: #{generator_forward.8} parent=46 // loop_footer
                  %s229 = sadd.s32 1, %s225
                $region53: #{generator_forward.8} parent=46 // loop_footer_branch
                  %224 = sbr.rel target = $region49
                $region54: #{generator_forward.8} parent=46 // loop_exit
                  _
              $region47: #{generator_forward.8} parent=31 // pred_fallthru
                _
              // Predicated region
              $region55: #{generator_forward.8} parent=31 // pred_check
                _
              $region56: #{generator_forward.8} parent=31 // pred_check_branch
                %265 = sbr.rel target = $region58
              $region57: #{generator_forward.8} parent=31 // pred_region
                _
              $region58: #{generator_forward.8} parent=31 // pred_fallthru
                _
            $region32: #{generator_forward.8} parent=27 // pred_fallthru
              _
            // Predicated region
            $region33: #{generator_forward.8} parent=27 // pred_check
              _
            $region34: #{generator_forward.8} parent=27 // pred_check_branch
              %179 = sbr.rel target = $region36
            $region35: #{generator_forward.8} parent=27 // pred_region
              %s181 = ssub.s32 256, 1
              loop: start=0, step=1, limit=1
              $region37: #{generator_forward.8} parent=35 // loop_pre_header
                _
              $region38: #{generator_forward.8} parent=35 // loop_header
                %s183 = sphi 0, %s187
                %p184 = scmp.ge.s32.totalorder %s183, 1
                %s188 = sphi %s173, %s173
                %s189 = sphi %s165, %s165
              $region39: #{generator_forward.8} parent=35 // loop_header_branch
                %186 = sbr.rel (%p184) target = $region43
              $region40: #{generator_forward.8} parent=35 // loop_body
                %v190 = vld [vmem:[%s188] sm:%s181]
                %191 = vst [vmem:[%s189] sm:%s181] %v190
                %v192 = vld [vmem:[%s188 + $0x20] sm:%s181]
                %193 = vst [vmem:[%s189 + $0x8] sm:%s181] %v192
                %v194 = vld [vmem:[%s188 + $0x40] sm:%s181]
                %195 = vst [vmem:[%s189 + $0x10] sm:%s181] %v194
                %v196 = vld [vmem:[%s188 + $0x60] sm:%s181]
                %197 = vst [vmem:[%s189 + $0x18] sm:%s181] %v196
                %v198 = vld [vmem:[%s188 + $0x80] sm:%s181]
                %199 = vst [vmem:[%s189 + $0x20] sm:%s181] %v198
                %v200 = vld [vmem:[%s188 + $0xa0] sm:%s181]
                %201 = vst [vmem:[%s189 + $0x28] sm:%s181] %v200
                %v202 = vld [vmem:[%s188 + $0xc0] sm:%s181]
                %203 = vst [vmem:[%s189 + $0x30] sm:%s181] %v202
                %v204 = vld [vmem:[%s188 + $0xe0] sm:%s181]
                %205 = vst [vmem:[%s189 + $0x38] sm:%s181] %v204
                %v206 = vld [vmem:[%s188 + $0x100] sm:%s181]
                %207 = vst [vmem:[%s189 + $0x40] sm:%s181] %v206
                %v208 = vld [vmem:[%s188 + $0x120] sm:%s181]
                %209 = vst [vmem:[%s189 + $0x48] sm:%s181] %v208
                %v210 = vld [vmem:[%s188 + $0x140] sm:%s181]
                %211 = vst [vmem:[%s189 + $0x50] sm:%s181] %v210
                %v212 = vld [vmem:[%s188 + $0x160] sm:%s181]
                %213 = vst [vmem:[%s189 + $0x58] sm:%s181] %v212
                %v214 = vld [vmem:[%s188 + $0x180] sm:%s181]
                %215 = vst [vmem:[%s189 + $0x60] sm:%s181] %v214
                %v216 = vld [vmem:[%s188 + $0x1a0] sm:%s181]
                %217 = vst [vmem:[%s189 + $0x68] sm:%s181] %v216
                %v218 = vld [vmem:[%s188 + $0x1c0] sm:%s181]
                %219 = vst [vmem:[%s189 + $0x70] sm:%s181] %v218
                %v220 = vld [vmem:[%s188 + $0x1e0] sm:%s181]
                %221 = vst [vmem:[%s189 + $0x78] sm:%s181] %v220
              $region41: #{generator_forward.8} parent=35 // loop_footer
                %s187 = sadd.s32 1, %s183
              $region42: #{generator_forward.8} parent=35 // loop_footer_branch
                %182 = sbr.rel target = $region38
              $region43: #{generator_forward.8} parent=35 // loop_exit
                _
            $region36: #{generator_forward.8} parent=27 // pred_fallthru
              _
          $region28: #{generator_forward.8} parent=23 // pred_fallthru
            _
          %266 = vnop
        $region24: #{generator_forward.8} parent=19 // pred_fallthru
          _
      $region20: #{generator_forward.8} parent=5 // pred_fallthru
        _
      %p267 = scmp.le.s32.totalorder 1, %s8
      %p268 = scmp.lt.s32.totalorder %s8, 5
      %p269 = pnand %p267, %p268
      %p270 = pneg %p269
      // Predicated region
      $region59: #{generator_forward.8} parent=5 // pred_check
        _
      $region60: #{generator_forward.8} parent=5 // pred_check_branch
        %272 = sbr.rel (%p269) target = $region62
      $region61: #{generator_forward.8} parent=5 // pred_region
        %s273 = ssub.s32 %s8, 1
        %s274 = sand.u32 %s81, 1
        %s275 = sand.u32 %s81, 1
        %s276 = smul.addr %s275, 128
        %s277 = scalar_lea.vmem [#allocation3], %s276
        // Predicated region
        $region63: #{generator_forward.8} parent=61 // pred_check
          %p278 = pneg %p94
        $region64: #{generator_forward.8} parent=61 // pred_check_branch
          %280 = sbr.rel (%p278) target = $region66
        $region65: #{generator_forward.8} parent=61 // pred_region
          _
        $region66: #{generator_forward.8} parent=61 // pred_fallthru
          _
        %s281 = smul.u32 2, %s20
        %p282 = scmp.lt.s32.totalorder %s19, 0
        %s283 = scalar_select %p282, %s19, 0
        %p284 = scmp.lt.s32.totalorder %s281, 1
        %s285 = scalar_select %p284, %s281, 1
        %p286 = scmp.lt.s32.totalorder %s22, 0
        %s287 = scalar_select %p286, %s22, 0
        %s288 = sadd.s32 %s287, %s285
        %s289 = smul.addr %s283, 2
        %s290 = sadd.s32 %s288, %s289
        %s291 = smul.addr %s290, 4
        %s292 = scalar_lea.vmem %s0, %s291
        %p293 = pneg %p64
        %p294 = pneg %p61
        %s295 = sand.u32 %s81, 1
        %s296 = sand.u32 %s81, 1
        %s297 = smul.addr %s296, 128
        %s298 = scalar_lea.vmem [#allocation3], %s297
        %p299 = pneg %p94
        %p300 = pneg %p91
        %p301 = pneg %p124
        %p302 = pneg %p121
        %s303 = sand.u32 %s111, 1
        %s304 = sand.u32 %s111, 1
        %s305 = smul.addr %s304, 32
        %s306 = scalar_lea.vmem [#allocation4], %s305
        %s307 = smul.u32 2, %s20
        %p308 = scmp.lt.s32.totalorder %s19, 0
        %s309 = scalar_select %p308, %s19, 0
        %p310 = scmp.lt.s32.totalorder %s307, 1
        %s311 = scalar_select %p310, %s307, 1
        %p312 = scmp.lt.s32.totalorder %s22, 0
        %s313 = scalar_select %p312, %s22, 0
        %s314 = sadd.s32 %s313, %s311
        %s315 = smul.addr %s309, 2
        %s316 = sadd.s32 %s314, %s315
        %s317 = smul.addr %s316, 4
        %s318 = scalar_lea.vmem %s0, %s317
        %s319 = smul.u32 2, %s20
        %s320 = smul.u32 16, %s22
        %s321 = smul.u32 2, %s21
        %s322 = smul.u32 2, %s20
        %s323 = smul.u32 2, %s21
        %p324 = scmp.eq.s32.totalorder %s22, 0
        // Predicated region
        $region67: #{generator_forward.8} parent=61 // pred_check
          %p325 = pneg %p324
        $region68: #{generator_forward.8} parent=61 // pred_check_branch
          %327 = sbr.rel (%p325) target = $region70
        $region69: #{generator_forward.8} parent=61 // pred_region
          %328 = vst [vmem:[#allocation2] sm:$0xff] 0.0
          %329 = vst [vmem:[#allocation2 + $0x8] sm:$0xff] 0.0
          %330 = vst [vmem:[#allocation2 + $0x10] sm:$0xff] 0.0
          %331 = vst [vmem:[#allocation2 + $0x18] sm:$0xff] 0.0
        $region70: #{generator_forward.8} parent=61 // pred_fallthru
          _
        %v332 = vld [vmem:[#allocation2] sm:$0xff]
        %v333 = vld [vmem:[#allocation2 + $0x8] sm:$0xff]
        %v334 = vld [vmem:[#allocation2 + $0x10] sm:$0xff]
        %v335 = vld [vmem:[#allocation2 + $0x18] sm:$0xff]
        %v336 = vld [vmem:[%s318] sm:$0xf]
        %v337 = vld [vmem:[%s318 + $0x4] sm:$0xf]
        %v338 = vld [vmem:[%s277] sm:$0xff]
        %v339 = vld [vmem:[%s277 + $0x8] sm:$0xff]
        %v340 = vld [vmem:[%s277 + $0x10] sm:$0xff]
        %v341 = vld [vmem:[%s277 + $0x18] sm:$0xff]
        %v342 = vld [vmem:[%s277 + $0x20] sm:$0xff]
        %v343 = vld [vmem:[%s277 + $0x28] sm:$0xff]
        %v344 = vld [vmem:[%s277 + $0x30] sm:$0xff]
        %v345 = vld [vmem:[%s277 + $0x38] sm:$0xff]
        %v346 = vld [vmem:[%s277 + $0x40] sm:$0xff]
        %v347 = vld [vmem:[%s277 + $0x48] sm:$0xff]
        %v348 = vld [vmem:[%s277 + $0x50] sm:$0xff]
        %v349 = vld [vmem:[%s277 + $0x58] sm:$0xff]
        %v350 = vld [vmem:[%s277 + $0x60] sm:$0xff]
        %v351 = vld [vmem:[%s277 + $0x68] sm:$0xff]
        %v352 = vld [vmem:[%s277 + $0x70] sm:$0xff]
        %v353 = vld [vmem:[%s277 + $0x78] sm:$0xff]
        %v356 = vunpack.c.l.b16 %v336
        %v357 = vunpack.c.l.b16 %v337
        %v358 = vpack.c.b16 %v357, %v356
        %v376 = vunpack.c.l.b16 %v338
        %v377 = vunpack.c.h.b16 %v338
        %v378 = vunpack.c.l.b16 %v339
        %v379 = vunpack.c.h.b16 %v339
        %v380 = vunpack.c.l.b16 %v340
        %v381 = vunpack.c.h.b16 %v340
        %v382 = vunpack.c.l.b16 %v341
        %v383 = vunpack.c.h.b16 %v341
        %v384 = vunpack.c.l.b16 %v342
        %v385 = vunpack.c.h.b16 %v342
        %v386 = vunpack.c.l.b16 %v343
        %v387 = vunpack.c.h.b16 %v343
        %v388 = vunpack.c.l.b16 %v344
        %v389 = vunpack.c.h.b16 %v344
        %v390 = vunpack.c.l.b16 %v345
        %v391 = vunpack.c.h.b16 %v345
        %v392 = vunpack.c.l.b16 %v346
        %v393 = vunpack.c.h.b16 %v346
        %v394 = vunpack.c.l.b16 %v347
        %v395 = vunpack.c.h.b16 %v347
        %v396 = vunpack.c.l.b16 %v348
        %v397 = vunpack.c.h.b16 %v348
        %v398 = vunpack.c.l.b16 %v349
        %v399 = vunpack.c.h.b16 %v349
        %v400 = vunpack.c.l.b16 %v350
        %v401 = vunpack.c.h.b16 %v350
        %v402 = vunpack.c.l.b16 %v351
        %v403 = vunpack.c.h.b16 %v351
        %v404 = vunpack.c.l.b16 %v352
        %v405 = vunpack.c.h.b16 %v352
        %v406 = vunpack.c.l.b16 %v353
        %v407 = vunpack.c.h.b16 %v353
        %v408 = vpack.c.b16 %v378, %v376
        %v409 = vpack.c.b16 %v379, %v377
        %v410 = vpack.c.b16 %v382, %v380
        %v411 = vpack.c.b16 %v383, %v381
        %v412 = vpack.c.b16 %v386, %v384
        %v413 = vpack.c.b16 %v387, %v385
        %v414 = vpack.c.b16 %v390, %v388
        %v415 = vpack.c.b16 %v391, %v389
        %v416 = vpack.c.b16 %v394, %v392
        %v417 = vpack.c.b16 %v395, %v393
        %v418 = vpack.c.b16 %v398, %v396
        %v419 = vpack.c.b16 %v399, %v397
        %v420 = vpack.c.b16 %v402, %v400
        %v421 = vpack.c.b16 %v403, %v401
        %v422 = vpack.c.b16 %v406, %v404
        %v423 = vpack.c.b16 %v407, %v405
        %440 = vmatpush.bf16.msra.mxu0 %v422
        %441 = vmatpush.bf16.msra.mxu0 %v420
        %442 = vmatpush.bf16.msra.mxu0 %v418
        %443 = vmatpush.bf16.msra.mxu0 %v416
        %444 = vmatpush.bf16.msra.mxu0 %v414
        %445 = vmatpush.bf16.msra.mxu0 %v412
        %446 = vmatpush.bf16.msra.mxu0 %v410
        %447 = vmatpush.bf16.msra.mxu0 %v408
        %448 = vmatmul.bf16.gmra.mxu0 %v358
        %v449 = vpop.f32.mrf.mxu0
        %v450 = vadd.f32 0.0, %v449
        %v451 = vpop.f32.mrf.mxu0
        %v452 = vadd.f32 0.0, %v451
        %453 = vdwg.mxu0
        %454 = vmatpush.bf16.msra.mxu0 %v423
        %455 = vmatpush.bf16.msra.mxu0 %v421
        %456 = vmatpush.bf16.msra.mxu0 %v419
        %457 = vmatpush.bf16.msra.mxu0 %v417
        %458 = vmatpush.bf16.msra.mxu0 %v415
        %459 = vmatpush.bf16.msra.mxu0 %v413
        %460 = vmatpush.bf16.msra.mxu0 %v411
        %461 = vmatpush.bf16.msra.mxu0 %v409
        %462 = vmatmul.bf16.gmra.mxu0 %v358
        %v463 = vpop.f32.mrf.mxu0
        %v464 = vadd.f32 0.0, %v463
        %v465 = vpop.f32.mrf.mxu0
        %v466 = vadd.f32 0.0, %v465
        %467 = vdwg.mxu0
        %v468 = vadd.f32 %v332, %v450
        %v469 = vadd.f32 %v333, %v464
        %v470 = vadd.f32 %v334, %v452
        %v471 = vadd.f32 %v335, %v466
        %472 = vst [vmem:[#allocation2] sm:$0xff] %v468
        %473 = vst [vmem:[#allocation2 + $0x8] sm:$0xff] %v469
        %474 = vst [vmem:[#allocation2 + $0x10] sm:$0xff] %v470
        %475 = vst [vmem:[#allocation2 + $0x18] sm:$0xff] %v471
        // Predicated region
        $region71: #{generator_forward.8} parent=61 // pred_check
          %p476 = pneg %p324
        $region72: #{generator_forward.8} parent=61 // pred_check_branch
          %478 = sbr.rel (%p476) target = $region74
        $region73: #{generator_forward.8} parent=61 // pred_region
          %v479 = vld [vmem:[#allocation2] sm:$0xff]
          %v480 = vld [vmem:[#allocation2 + $0x8] sm:$0xff]
          %v481 = vld [vmem:[#allocation2 + $0x10] sm:$0xff]
          %v482 = vld [vmem:[#allocation2 + $0x18] sm:$0xff]
          %483 = vst [vmem:[%s306] sm:$0xff] %v479
          %484 = vst [vmem:[%s306 + $0x8] sm:$0xff] %v480
          %485 = vst [vmem:[%s306 + $0x10] sm:$0xff] %v481
          %486 = vst [vmem:[%s306 + $0x18] sm:$0xff] %v482
        $region74: #{generator_forward.8} parent=61 // pred_fallthru
          _
        %s487 = sand.u32 %s111, 1
        %s488 = sand.u32 %s111, 1
        %s489 = smul.addr %s488, 32
        %s490 = scalar_lea.vmem [#allocation4], %s489
        // Predicated region
        $region75: #{generator_forward.8} parent=61 // pred_check
          %p491 = pneg %p121
        $region76: #{generator_forward.8} parent=61 // pred_check_branch
          %493 = sbr.rel (%p491) target = $region78
        $region77: #{generator_forward.8} parent=61 // pred_region
          %s494 = smul.u32 2, %s20
          %s495 = smul.u32 2, %s21
          %s496 = smul.addr %s494, 8
          %s497 = sadd.s32 %s495, %s496
          %s498 = smul.addr %s19, 16
          %s499 = sadd.s32 %s497, %s498
          %s500 = smul.addr %s499, 8
          %s501 = scalar_lea.vmem %s2, %s500
          // Predicated region
          $region79: #{generator_forward.8} parent=77 // pred_check
            _
          $region80: #{generator_forward.8} parent=77 // pred_check_branch
            %503 = sbr.rel (0) target = $region82
          $region81: #{generator_forward.8} parent=77 // pred_region
            // Predicated region
            $region83: #{generator_forward.8} parent=81 // pred_check
              _
            $region84: #{generator_forward.8} parent=81 // pred_check_branch
              %505 = sbr.rel (0) target = $region86
            $region85: #{generator_forward.8} parent=81 // pred_region
              loop: start=0, step=1, limit=1
              $region87: #{generator_forward.8} parent=85 // loop_pre_header
                _
              $region88: #{generator_forward.8} parent=85 // loop_header
                %s507 = sphi 0, %s511
                %p508 = scmp.ge.s32.totalorder %s507, 1
                %s512 = sphi %s490, %s490
                %s513 = sphi %s501, %s501
              $region89: #{generator_forward.8} parent=85 // loop_header_branch
                %510 = sbr.rel (%p508) target = $region93
              $region90: #{generator_forward.8} parent=85 // loop_body
                %v514 = vld [vmem:[%s512] sm:$0xff]
                %515 = vst [vmem:[%s513] sm:$0xff] %v514
                %v516 = vld [vmem:[%s512 + $0x8] sm:$0xff]
                %517 = vst [vmem:[%s513 + $0x8] sm:$0xff] %v516
                %v518 = vld [vmem:[%s512 + $0x10] sm:$0xff]
                %519 = vst [vmem:[%s513 + $0x40] sm:$0xff] %v518
                %v520 = vld [vmem:[%s512 + $0x18] sm:$0xff]
                %521 = vst [vmem:[%s513 + $0x48] sm:$0xff] %v520
              $region91: #{generator_forward.8} parent=85 // loop_footer
                %s511 = sadd.s32 1, %s507
              $region92: #{generator_forward.8} parent=85 // loop_footer_branch
                %506 = sbr.rel target = $region88
              $region93: #{generator_forward.8} parent=85 // loop_exit
                _
            $region86: #{generator_forward.8} parent=81 // pred_fallthru
              _
            // Predicated region
            $region94: #{generator_forward.8} parent=81 // pred_check
              _
            $region95: #{generator_forward.8} parent=81 // pred_check_branch
              %523 = sbr.rel target = $region97
            $region96: #{generator_forward.8} parent=81 // pred_region
              _
            $region97: #{generator_forward.8} parent=81 // pred_fallthru
              _
          $region82: #{generator_forward.8} parent=77 // pred_fallthru
            _
          %524 = vnop
        $region78: #{generator_forward.8} parent=61 // pred_fallthru
          _
      $region62: #{generator_forward.8} parent=5 // pred_fallthru
        _
      %p525 = scmp.le.s32.totalorder 2, %s8
      // Predicated region
      $region98: #{generator_forward.8} parent=5 // pred_check
        %p526 = pneg %p525
      $region99: #{generator_forward.8} parent=5 // pred_check_branch
        %528 = sbr.rel (%p526) target = $region101
      $region100: #{generator_forward.8} parent=5 // pred_region
        %s529 = ssub.s32 %s8, 2
        // Predicated region
        $region102: #{generator_forward.8} parent=100 // pred_check
          %p530 = pneg %p127
        $region103: #{generator_forward.8} parent=100 // pred_check_branch
          %532 = sbr.rel (%p530) target = $region105
        $region104: #{generator_forward.8} parent=100 // pred_region
          %s533 = sand.u32 %s112, 1
          %s534 = sand.u32 %s112, 1
          %s535 = smul.addr %s534, 32
          %s536 = scalar_lea.vmem [#allocation4], %s535
        $region105: #{generator_forward.8} parent=100 // pred_fallthru
          _
      $region101: #{generator_forward.8} parent=5 // pred_fallthru
        _
    $region6: #{generator_forward.8} parent=1 // loop_footer
      %s12 = sadd.s32 1, %s8
    $region7: #{generator_forward.8} parent=1 // loop_footer_branch
      %7 = sbr.rel target = $region3
    $region8: #{generator_forward.8} parent=1 // loop_exit
      _

// kernel: generator_forward.12
$region0: #{generator_forward.12}
  #allocation0 [shape = 'u32[]', space=smem, size = 0x4, offset = 0x4, fixed_abs, tag = 'smem constant byte address 0x4 - core index']
  #allocation1 [shape = 'u32[72,128]{1,0:T(1,128)}', space=vmem, size = 0x9000, scoped, tag = 'internal scratch']
  #allocation2 [shape = 'f32[32,128]{1,0:T(8,128)}', space=vmem, size = 0x4000, scoped, tag = 'scratch operand']
  %s0 = inlined_call_operand.vmem [shape: bf16[4,32,256], index: 0, kind: input, shape index: {}]
  %s1 = inlined_call_operand.vmem [shape: bf16[4,256,128], index: 1, kind: input, shape index: {}]
  %s2 = inlined_call_operand.vmem [shape: f32[4,32,128], index: 2, kind: output, shape index: {}]
  %s3 = sld [smem:[#allocation0]]
  $region49: #{generator_forward.12} parent=0
    _
  %s5 = ssub.s32 1, %s3
  %s6 = scalar_select 0, %s5, %s3
  loop: start=0, step=1, limit=6
  $region2: #{generator_forward.12} parent=0 // loop_pre_header
    _
  $region3: #{generator_forward.12} parent=0 // loop_header
    %s8 = sphi 0, %s12
    %p9 = scmp.ge.s32.totalorder %s8, 6
    %s15 = sphi 0, %s41
    %s16 = sphi 0, %s37
    %s17 = sphi 0, %s33
    %s18 = sphi 0, %s29
    %s19 = sphi 0, %s15
    %s20 = sphi 0, %s16
    %s21 = sphi 0, %s17
    %s22 = sphi 0, %s18
    %s23 = sphi 0, %s19
    %s24 = sphi 0, %s20
    %s25 = sphi 0, %s21
    %s26 = sphi 0, %s22
    %s48 = sphi 0, %s50
    %s51 = sphi 0, %s48
    %s52 = sphi 0, %s51
    %s68 = sphi 0, %s52
    %s78 = sphi 0, %s80
    %s81 = sphi 0, %s78
    %s82 = sphi 0, %s81
    %s98 = sphi 0, %s82
    %s108 = sphi 0, %s110
    %s111 = sphi 0, %s108
    %s112 = sphi 0, %s111
    %s128 = sphi 0, %s112
  $region4: #{generator_forward.12} parent=0 // loop_header_branch
    %11 = sbr.rel (%p9) target = $region8
  $region5: #{generator_forward.12} parent=0 // loop_body
    %s13 = ssub.s32 %s8, 1
    %s14 = ssub.s32 %s8, 2
    %s27 = sadd.s32 1, %s18
    %p28 = scmp.ge.s32.totalorder %s27, 1
    %s29 = scalar_select %p28, 0, %s27
    %s30 = sadd.s32 1, %s17
    %s31 = scalar_select %p28, %s30, %s17
    %p32 = scmp.ge.s32.totalorder %s31, 1
    %s33 = scalar_select %p32, 0, %s31
    %s34 = sadd.s32 1, %s16
    %s35 = scalar_select %p32, %s34, %s16
    %p36 = scmp.ge.s32.totalorder %s35, 1
    %s37 = scalar_select %p36, 0, %s35
    %s38 = sadd.s32 1, %s15
    %s39 = scalar_select %p36, %s38, %s15
    %p40 = scmp.ge.s32.totalorder %s39, 4
    %s41 = scalar_select %p40, 0, %s39
    %s42 = ssub.s32 %s15, %s41
    %s43 = ssub.s32 %s16, %s37
    %s44 = sor.u32 %s42, %s43
    %s45 = ssub.s32 %s18, %s29
    %s46 = sor.u32 %s44, %s45
    %p47 = scmp.eq.s32.totalorder %s46, 0
    %s49 = sadd.s32 %s48, 1
    %s50 = scalar_select %p47, %s48, %s49
    %p53 = pneg %p47
    %p54 = scmp.eq.s32.totalorder %s8, 3
    %p55 = por %p53, %p54
    %p56 = scmp.ne.s32.totalorder %s48, %s51
    %p57 = scmp.eq.s32.totalorder %s8, 0
    %p58 = por %p56, %p57
    %p59 = scmp.ne.s32.totalorder %s48, %s51
    %p60 = scmp.eq.s32.totalorder %s13, 3
    %p61 = por %p59, %p60
    %p62 = scmp.ne.s32.totalorder %s51, %s52
    %p63 = scmp.eq.s32.totalorder %s13, 0
    %p64 = por %p62, %p63
    %p65 = scmp.ne.s32.totalorder %s51, %s52
    %p66 = scmp.eq.s32.totalorder %s14, 3
    %p67 = por %p65, %p66
    %p69 = scmp.ne.s32.totalorder %s52, %s68
    %p70 = scmp.eq.s32.totalorder %s14, 0
    %p71 = por %p69, %p70
    %s72 = ssub.s32 %s15, %s41
    %s73 = ssub.s32 %s18, %s29
    %s74 = sor.u32 %s72, %s73
    %s75 = ssub.s32 %s17, %s33
    %s76 = sor.u32 %s74, %s75
    %p77 = scmp.eq.s32.totalorder %s76, 0
    %s79 = sadd.s32 %s78, 1
    %s80 = scalar_select %p77, %s78, %s79
    %p83 = pneg %p77
    %p84 = scmp.eq.s32.totalorder %s8, 3
    %p85 = por %p83, %p84
    %p86 = scmp.ne.s32.totalorder %s78, %s81
    %p87 = scmp.eq.s32.totalorder %s8, 0
    %p88 = por %p86, %p87
    %p89 = scmp.ne.s32.totalorder %s78, %s81
    %p90 = scmp.eq.s32.totalorder %s13, 3
    %p91 = por %p89, %p90
    %p92 = scmp.ne.s32.totalorder %s81, %s82
    %p93 = scmp.eq.s32.totalorder %s13, 0
    %p94 = por %p92, %p93
    %p95 = scmp.ne.s32.totalorder %s81, %s82
    %p96 = scmp.eq.s32.totalorder %s14, 3
    %p97 = por %p95, %p96
    %p99 = scmp.ne.s32.totalorder %s82, %s98
    %p100 = scmp.eq.s32.totalorder %s14, 0
    %p101 = por %p99, %p100
    %s102 = ssub.s32 %s15, %s41
    %s103 = ssub.s32 %s16, %s37
    %s104 = sor.u32 %s102, %s103
    %s105 = ssub.s32 %s17, %s33
    %s106 = sor.u32 %s104, %s105
    %p107 = scmp.eq.s32.totalorder %s106, 0
    %s109 = sadd.s32 %s108, 1
    %s110 = scalar_select %p107, %s108, %s109
    %p113 = pneg %p107
    %p114 = scmp.eq.s32.totalorder %s8, 3
    %p115 = por %p113, %p114
    %p116 = scmp.ne.s32.totalorder %s108, %s111
    %p117 = scmp.eq.s32.totalorder %s8, 0
    %p118 = por %p116, %p117
    %p119 = scmp.ne.s32.totalorder %s108, %s111
    %p120 = scmp.eq.s32.totalorder %s13, 3
    %p121 = por %p119, %p120
    %p122 = scmp.ne.s32.totalorder %s111, %s112
    %p123 = scmp.eq.s32.totalorder %s13, 0
    %p124 = por %p122, %p123
    %p125 = scmp.ne.s32.totalorder %s111, %s112
    %p126 = scmp.eq.s32.totalorder %s14, 3
    %p127 = por %p125, %p126
    %p129 = scmp.ne.s32.totalorder %s112, %s128
    %p130 = scmp.eq.s32.totalorder %s14, 0
    %p131 = por %p129, %p130
    %p132 = scmp.le.s32.totalorder 1, %s8
    %p133 = scmp.lt.s32.totalorder %s8, 5
    %p134 = pnand %p132, %p133
    %p135 = pneg %p134
    // Predicated region
    $region9: #{generator_forward.12} parent=5 // pred_check
      _
    $region10: #{generator_forward.12} parent=5 // pred_check_branch
      %137 = sbr.rel (%p134) target = $region12
    $region11: #{generator_forward.12} parent=5 // pred_region
      %s138 = ssub.s32 %s8, 1
    $region12: #{generator_forward.12} parent=5 // pred_fallthru
      _
    %p139 = scmp.lt.s32.totalorder %s8, 4
    // Predicated region
    $region13: #{generator_forward.12} parent=5 // pred_check
      %p140 = pneg %p139
    $region14: #{generator_forward.12} parent=5 // pred_check_branch
      %142 = sbr.rel (%p140) target = $region16
    $region15: #{generator_forward.12} parent=5 // pred_region
      // Predicated region
      $region17: #{generator_forward.12} parent=15 // pred_check
        %p143 = pneg %p58
      $region18: #{generator_forward.12} parent=15 // pred_check_branch
        %145 = sbr.rel (%p143) target = $region20
      $region19: #{generator_forward.12} parent=15 // pred_region
        %s146 = smul.u32 4, %s16
        %s147 = smul.u32 2, %s18
        %p148 = scmp.lt.s32.totalorder %s15, 3
        %s149 = scalar_select %p148, %s15, 3
        %p150 = scmp.lt.s32.totalorder %s146, 3
        %s151 = scalar_select %p150, %s146, 3
        %p152 = scmp.lt.s32.totalorder %s147, 1
        %s153 = scalar_select %p152, %s147, 1
        %s154 = smul.addr %s151, 2
        %s155 = sadd.s32 %s153, %s154
        %s156 = smul.addr %s149, 8
        %s157 = sadd.s32 %s155, %s156
        %s158 = smul.addr %s157, 4
        %s159 = scalar_lea.vmem %s0, %s158
        %s160 = smul.u32 4, %s16
        %s161 = smul.u32 2, %s18
      $region20: #{generator_forward.12} parent=15 // pred_fallthru
        _
      // Predicated region
      $region21: #{generator_forward.12} parent=15 // pred_check
        %p162 = pneg %p88
      $region22: #{generator_forward.12} parent=15 // pred_check_branch
        %164 = sbr.rel (%p162) target = $region24
      $region23: #{generator_forward.12} parent=15 // pred_region
        %s165 = smul.u32 32, %s18
        %p166 = scmp.lt.s32.totalorder %s15, 3
        %s167 = scalar_select %p166, %s15, 3
        %p168 = scmp.lt.s32.totalorder %s165, 31
        %s169 = scalar_select %p168, %s165, 31
        %p170 = scmp.lt.s32.totalorder %s17, 0
        %s171 = scalar_select %p170, %s17, 0
        %s172 = sadd.s32 %s171, %s169
        %s173 = smul.addr %s167, 32
        %s174 = sadd.s32 %s172, %s173
        %s175 = smul.addr %s174, 4
        %s176 = scalar_lea.vmem %s1, %s175
        %s177 = smul.u32 32, %s18
      $region24: #{generator_forward.12} parent=15 // pred_fallthru
        _
    $region16: #{generator_forward.12} parent=5 // pred_fallthru
      _
    %p178 = scmp.le.s32.totalorder 1, %s8
    %p179 = scmp.lt.s32.totalorder %s8, 5
    %p180 = pnand %p178, %p179
    %p181 = pneg %p180
    // Predicated region
    $region25: #{generator_forward.12} parent=5 // pred_check
      _
    $region26: #{generator_forward.12} parent=5 // pred_check_branch
      %183 = sbr.rel (%p180) target = $region28
    $region27: #{generator_forward.12} parent=5 // pred_region
      %s184 = ssub.s32 %s8, 1
      %s185 = smul.u32 4, %s20
      %s186 = smul.u32 2, %s22
      %p187 = scmp.lt.s32.totalorder %s19, 3
      %s188 = scalar_select %p187, %s19, 3
      %p189 = scmp.lt.s32.totalorder %s185, 3
      %s190 = scalar_select %p189, %s185, 3
      %p191 = scmp.lt.s32.totalorder %s186, 1
      %s192 = scalar_select %p191, %s186, 1
      %s193 = smul.addr %s190, 2
      %s194 = sadd.s32 %s192, %s193
      %s195 = smul.addr %s188, 8
      %s196 = sadd.s32 %s194, %s195
      %s197 = smul.addr %s196, 4
      %s198 = scalar_lea.vmem %s0, %s197
      %p199 = pneg %p64
      %p200 = pneg %p61
      %s201 = smul.u32 32, %s22
      %p202 = scmp.lt.s32.totalorder %s19, 3
      %s203 = scalar_select %p202, %s19, 3
      %p204 = scmp.lt.s32.totalorder %s201, 31
      %s205 = scalar_select %p204, %s201, 31
      %p206 = scmp.lt.s32.totalorder %s21, 0
      %s207 = scalar_select %p206, %s21, 0
      %s208 = sadd.s32 %s207, %s205
      %s209 = smul.addr %s203, 32
      %s210 = sadd.s32 %s208, %s209
      %s211 = smul.addr %s210, 4
      %s212 = scalar_lea.vmem %s1, %s211
      %p213 = pneg %p94
      %p214 = pneg %p91
      %p215 = pneg %p124
      %p216 = pneg %p121
      %s217 = smul.u32 4, %s20
      %p218 = scmp.lt.s32.totalorder %s19, 3
      %s219 = scalar_select %p218, %s19, 3
      %p220 = scmp.lt.s32.totalorder %s217, 3
      %s221 = scalar_select %p220, %s217, 3
      %p222 = scmp.lt.s32.totalorder %s21, 0
      %s223 = scalar_select %p222, %s21, 0
      %s224 = sadd.s32 %s223, %s221
      %s225 = smul.addr %s219, 4
      %s226 = sadd.s32 %s224, %s225
      %s227 = smul.addr %s226, 8
      %s228 = scalar_lea.vmem %s2, %s227
      %s229 = smul.u32 4, %s20
      %s230 = smul.u32 2, %s22
      %p231 = scmp.lt.s32.totalorder %s19, 3
      %s232 = scalar_select %p231, %s19, 3
      %p233 = scmp.lt.s32.totalorder %s229, 3
      %s234 = scalar_select %p233, %s229, 3
      %p235 = scmp.lt.s32.totalorder %s230, 1
      %s236 = scalar_select %p235, %s230, 1
      %s237 = smul.addr %s234, 2
      %s238 = sadd.s32 %s236, %s237
      %s239 = smul.addr %s232, 8
      %s240 = sadd.s32 %s238, %s239
      %s241 = smul.addr %s240, 4
      %s242 = scalar_lea.vmem %s0, %s241
      %s243 = smul.u32 4, %s20
      %s244 = smul.u32 2, %s22
      %s245 = smul.u32 32, %s22
      %p246 = scmp.lt.s32.totalorder %s19, 3
      %s247 = scalar_select %p246, %s19, 3
      %p248 = scmp.lt.s32.totalorder %s245, 31
      %s249 = scalar_select %p248, %s245, 31
      %p250 = scmp.lt.s32.totalorder %s21, 0
      %s251 = scalar_select %p250, %s21, 0
      %s252 = sadd.s32 %s251, %s249
      %s253 = smul.addr %s247, 32
      %s254 = sadd.s32 %s252, %s253
      %s255 = smul.addr %s254, 4
      %s256 = scalar_lea.vmem %s1, %s255
      %s257 = smul.u32 32, %s22
      %s258 = smul.u32 4, %s20
      %p259 = scmp.lt.s32.totalorder %s19, 3
      %s260 = scalar_select %p259, %s19, 3
      %p261 = scmp.lt.s32.totalorder %s258, 3
      %s262 = scalar_select %p261, %s258, 3
      %p263 = scmp.lt.s32.totalorder %s21, 0
      %s264 = scalar_select %p263, %s21, 0
      %s265 = sadd.s32 %s264, %s262
      %s266 = smul.addr %s260, 4
      %s267 = sadd.s32 %s265, %s266
      %s268 = smul.addr %s267, 8
      %s269 = scalar_lea.vmem %s2, %s268
      %s270 = smul.u32 4, %s20
      %p271 = scmp.eq.s32.totalorder %s22, 0
      // Predicated region
      $region29: #{generator_forward.12} parent=27 // pred_check
        %p272 = pneg %p271
      $region30: #{generator_forward.12} parent=27 // pred_check_branch
        %274 = sbr.rel (%p272) target = $region32
      $region31: #{generator_forward.12} parent=27 // pred_region
        %275 = vst [vmem:[#allocation2] sm:$0xff] 0.0
        %276 = vst [vmem:[#allocation2 + $0x8] sm:$0xff] 0.0
        %277 = vst [vmem:[#allocation2 + $0x10] sm:$0xff] 0.0
        %278 = vst [vmem:[#allocation2 + $0x18] sm:$0xff] 0.0
      $region32: #{generator_forward.12} parent=27 // pred_fallthru
        _
      %v279 = vld [vmem:[#allocation2] sm:$0xff]
      %v280 = vld [vmem:[#allocation2 + $0x8] sm:$0xff]
      %v281 = vld [vmem:[#allocation2 + $0x10] sm:$0xff]
      %v282 = vld [vmem:[#allocation2 + $0x18] sm:$0xff]
      %v283 = vld [vmem:[%s242] sm:$0xff]
      %v284 = vld [vmem:[%s242 + $0x8] sm:$0xff]
      %v285 = vld [vmem:[%s242 + $0x10] sm:$0xff]
      %v286 = vld [vmem:[%s242 + $0x18] sm:$0xff]
      %v287 = vld [vmem:[%s256] sm:$0xf]
      %v288 = vld [vmem:[%s256 + $0x4] sm:$0xf]
      %v289 = vld [vmem:[%s256 + $0x8] sm:$0xf]
      %v290 = vld [vmem:[%s256 + $0xc] sm:$0xf]
      %v291 = vld [vmem:[%s256 + $0x10] sm:$0xf]
      %v292 = vld [vmem:[%s256 + $0x14] sm:$0xf]
      %v293 = vld [vmem:[%s256 + $0x18] sm:$0xf]
      %v294 = vld [vmem:[%s256 + $0x1c] sm:$0xf]
      %v295 = vld [vmem:[%s256 + $0x20] sm:$0xf]
      %v296 = vld [vmem:[%s256 + $0x24] sm:$0xf]
      %v297 = vld [vmem:[%s256 + $0x28] sm:$0xf]
      %v298 = vld [vmem:[%s256 + $0x2c] sm:$0xf]
      %v299 = vld [vmem:[%s256 + $0x30] sm:$0xf]
      %v300 = vld [vmem:[%s256 + $0x34] sm:$0xf]
      %v301 = vld [vmem:[%s256 + $0x38] sm:$0xf]
      %v302 = vld [vmem:[%s256 + $0x3c] sm:$0xf]
      %v303 = vld [vmem:[%s256 + $0x40] sm:$0xf]
      %v304 = vld [vmem:[%s256 + $0x44] sm:$0xf]
      %v305 = vld [vmem:[%s256 + $0x48] sm:$0xf]
      %v306 = vld [vmem:[%s256 + $0x4c] sm:$0xf]
      %v307 = vld [vmem:[%s256 + $0x50] sm:$0xf]
      %v308 = vld [vmem:[%s256 + $0x54] sm:$0xf]
      %v309 = vld [vmem:[%s256 + $0x58] sm:$0xf]
      %v310 = vld [vmem:[%s256 + $0x5c] sm:$0xf]
      %v311 = vld [vmem:[%s256 + $0x60] sm:$0xf]
      %v312 = vld [vmem:[%s256 + $0x64] sm:$0xf]
      %v313 = vld [vmem:[%s256 + $0x68] sm:$0xf]
      %v314 = vld [vmem:[%s256 + $0x6c] sm:$0xf]
      %v315 = vld [vmem:[%s256 + $0x70] sm:$0xf]
      %v316 = vld [vmem:[%s256 + $0x74] sm:$0xf]
      %v317 = vld [vmem:[%s256 + $0x78] sm:$0xf]
      %v318 = vld [vmem:[%s256 + $0x7c] sm:$0xf]
      %v323 = vunpack.c.l.b16 %v283
      %v324 = vunpack.c.h.b16 %v283
      %v325 = vunpack.c.l.b16 %v284
      %v326 = vunpack.c.h.b16 %v284
      %v327 = vunpack.c.l.b16 %v285
      %v328 = vunpack.c.h.b16 %v285
      %v329 = vunpack.c.l.b16 %v286
      %v330 = vunpack.c.h.b16 %v286
      %v331 = vpack.c.b16 %v325, %v323
      %v332 = vpack.c.b16 %v326, %v324
      %v333 = vpack.c.b16 %v329, %v327
      %v334 = vpack.c.b16 %v330, %v328
      %v371 = vunpack.c.l.b16 %v287
      %v372 = vunpack.c.l.b16 %v288
      %v373 = vunpack.c.l.b16 %v289
      %v374 = vunpack.c.l.b16 %v290
      %v375 = vunpack.c.l.b16 %v291
      %v376 = vunpack.c.l.b16 %v292
      %v377 = vunpack.c.l.b16 %v293
      %v378 = vunpack.c.l.b16 %v294
      %v379 = vunpack.c.l.b16 %v295
      %v380 = vunpack.c.l.b16 %v296
      %v381 = vunpack.c.l.b16 %v297
      %v382 = vunpack.c.l.b16 %v298
      %v383 = vunpack.c.l.b16 %v299
      %v384 = vunpack.c.l.b16 %v300
      %v385 = vunpack.c.l.b16 %v301
      %v386 = vunpack.c.l.b16 %v302
      %v387 = vunpack.c.l.b16 %v303
      %v388 = vunpack.c.l.b16 %v304
      %v389 = vunpack.c.l.b16 %v305
      %v390 = vunpack.c.l.b16 %v306
      %v391 = vunpack.c.l.b16 %v307
      %v392 = vunpack.c.l.b16 %v308
      %v393 = vunpack.c.l.b16 %v309
      %v394 = vunpack.c.l.b16 %v310
      %v395 = vunpack.c.l.b16 %v311
      %v396 = vunpack.c.l.b16 %v312
      %v397 = vunpack.c.l.b16 %v313
      %v398 = vunpack.c.l.b16 %v314
      %v399 = vunpack.c.l.b16 %v315
      %v400 = vunpack.c.l.b16 %v316
      %v401 = vunpack.c.l.b16 %v317
      %v402 = vunpack.c.l.b16 %v318
      %v403 = vpack.c.b16 %v372, %v371
      %v404 = vpack.c.b16 %v374, %v373
      %v405 = vpack.c.b16 %v376, %v375
      %v406 = vpack.c.b16 %v378, %v377
      %v407 = vpack.c.b16 %v380, %v379
      %v408 = vpack.c.b16 %v382, %v381
      %v409 = vpack.c.b16 %v384, %v383
      %v410 = vpack.c.b16 %v386, %v385
      %v411 = vpack.c.b16 %v388, %v387
      %v412 = vpack.c.b16 %v390, %v389
      %v413 = vpack.c.b16 %v392, %v391
      %v414 = vpack.c.b16 %v394, %v393
      %v415 = vpack.c.b16 %v396, %v395
      %v416 = vpack.c.b16 %v398, %v397
      %v417 = vpack.c.b16 %v400, %v399
      %v418 = vpack.c.b16 %v402, %v401
      %435 = vmatpush.bf16.msra.mxu0 %v410
      %436 = vmatpush.bf16.msra.mxu0 %v409
      %437 = vmatpush.bf16.msra.mxu0 %v408
      %438 = vmatpush.bf16.msra.mxu0 %v407
      %439 = vmatpush.bf16.msra.mxu0 %v406
      %440 = vmatpush.bf16.msra.mxu0 %v405
      %441 = vmatpush.bf16.msra.mxu0 %v404
      %442 = vmatpush.bf16.msra.mxu0 %v403
      %443 = vmatmul.bf16.gmra.mxu0 %v331
      %v444 = vpop.f32.mrf.mxu0
      %v445 = vadd.f32 0.0, %v444
      %v446 = vpop.f32.mrf.mxu0
      %v447 = vadd.f32 0.0, %v446
      %448 = vmatmul.bf16.gmra.mxu0 %v333
      %v449 = vpop.f32.mrf.mxu0
      %v450 = vadd.f32 0.0, %v449
      %v451 = vpop.f32.mrf.mxu0
      %v452 = vadd.f32 0.0, %v451
      %453 = vdwg.mxu0
      %454 = vmatpush.bf16.msra.mxu0 %v418
      %455 = vmatpush.bf16.msra.mxu0 %v417
      %456 = vmatpush.bf16.msra.mxu0 %v416
      %457 = vmatpush.bf16.msra.mxu0 %v415
      %458 = vmatpush.bf16.msra.mxu0 %v414
      %459 = vmatpush.bf16.msra.mxu0 %v413
      %460 = vmatpush.bf16.msra.mxu0 %v412
      %461 = vmatpush.bf16.msra.mxu0 %v411
      %462 = vmatmul.bf16.gmra.mxu0 %v332
      %v463 = vpop.f32.mrf.mxu0
      %v464 = vadd.f32 %v445, %v463
      %v465 = vpop.f32.mrf.mxu0
      %v466 = vadd.f32 %v447, %v465
      %467 = vmatmul.bf16.gmra.mxu0 %v334
      %v468 = vpop.f32.mrf.mxu0
      %v469 = vadd.f32 %v450, %v468
      %v470 = vpop.f32.mrf.mxu0
      %v471 = vadd.f32 %v452, %v470
      %472 = vdwg.mxu0
      %v473 = vadd.f32 %v279, %v464
      %v474 = vadd.f32 %v280, %v466
      %v475 = vadd.f32 %v281, %v469
      %v476 = vadd.f32 %v282, %v471
      %477 = vst [vmem:[#allocation2] sm:$0xff] %v473
      %478 = vst [vmem:[#allocation2 + $0x8] sm:$0xff] %v474
      %479 = vst [vmem:[#allocation2 + $0x10] sm:$0xff] %v475
      %480 = vst [vmem:[#allocation2 + $0x18] sm:$0xff] %v476
      // Predicated region
      $region33: #{generator_forward.12} parent=27 // pred_check
        %p481 = pneg %p271
      $region34: #{generator_forward.12} parent=27 // pred_check_branch
        %483 = sbr.rel (%p481) target = $region36
      $region35: #{generator_forward.12} parent=27 // pred_region
        %v484 = vld [vmem:[#allocation2] sm:$0xff]
        %v485 = vld [vmem:[#allocation2 + $0x8] sm:$0xff]
        %v486 = vld [vmem:[#allocation2 + $0x10] sm:$0xff]
        %v487 = vld [vmem:[#allocation2 + $0x18] sm:$0xff]
        %488 = vst [vmem:[%s269] sm:$0xff] %v484
        %489 = vst [vmem:[%s269 + $0x8] sm:$0xff] %v485
        %490 = vst [vmem:[%s269 + $0x10] sm:$0xff] %v486
        %491 = vst [vmem:[%s269 + $0x18] sm:$0xff] %v487
      $region36: #{generator_forward.12} parent=27 // pred_fallthru
        _
      %s492 = smul.u32 4, %s20
      %p493 = scmp.lt.s32.totalorder %s19, 3
      %s494 = scalar_select %p493, %s19, 3
      %p495 = scmp.lt.s32.totalorder %s492, 3
      %s496 = scalar_select %p495, %s492, 3
      %p497 = scmp.lt.s32.totalorder %s21, 0
      %s498 = scalar_select %p497, %s21, 0
      %s499 = sadd.s32 %s498, %s496
      %s500 = smul.addr %s494, 4
      %s501 = sadd.s32 %s499, %s500
      %s502 = smul.addr %s501, 8
      %s503 = scalar_lea.vmem %s2, %s502
      // Predicated region
      $region37: #{generator_forward.12} parent=27 // pred_check
        %p504 = pneg %p121
      $region38: #{generator_forward.12} parent=27 // pred_check_branch
        %506 = sbr.rel (%p504) target = $region40
      $region39: #{generator_forward.12} parent=27 // pred_region
        %s507 = smul.u32 4, %s20
      $region40: #{generator_forward.12} parent=27 // pred_fallthru
        _
    $region28: #{generator_forward.12} parent=5 // pred_fallthru
      _
    %p508 = scmp.le.s32.totalorder 2, %s8
    // Predicated region
    $region41: #{generator_forward.12} parent=5 // pred_check
      %p509 = pneg %p508
    $region42: #{generator_forward.12} parent=5 // pred_check_branch
      %511 = sbr.rel (%p509) target = $region44
    $region43: #{generator_forward.12} parent=5 // pred_region
      %s512 = ssub.s32 %s8, 2
      // Predicated region
      $region45: #{generator_forward.12} parent=43 // pred_check
        %p513 = pneg %p127
      $region46: #{generator_forward.12} parent=43 // pred_check_branch
        %515 = sbr.rel (%p513) target = $region48
      $region47: #{generator_forward.12} parent=43 // pred_region
        %s516 = smul.u32 4, %s24
        %p517 = scmp.lt.s32.totalorder %s23, 3
        %s518 = scalar_select %p517, %s23, 3
        %p519 = scmp.lt.s32.totalorder %s516, 3
        %s520 = scalar_select %p519, %s516, 3
        %p521 = scmp.lt.s32.totalorder %s25, 0
        %s522 = scalar_select %p521, %s25, 0
        %s523 = sadd.s32 %s522, %s520
        %s524 = smul.addr %s518, 4
        %s525 = sadd.s32 %s523, %s524
        %s526 = smul.addr %s525, 8
        %s527 = scalar_lea.vmem %s2, %s526
      $region48: #{generator_forward.12} parent=43 // pred_fallthru
        _
    $region44: #{generator_forward.12} parent=5 // pred_fallthru
      _
  $region6: #{generator_forward.12} parent=0 // loop_footer
    %s12 = sadd.s32 1, %s8
  $region7: #{generator_forward.12} parent=0 // loop_footer_branch
    %7 = sbr.rel target = $region3
  $region8: #{generator_forward.12} parent=0 // loop_exit
    _

// kernel: generator_forward.14
$region0: #{generator_forward.14}
  #allocation0 [shape = 'u32[]', space=smem, size = 0x4, offset = 0x4, fixed_abs, tag = 'smem constant byte address 0x4 - core index']
  #allocation1 [shape = 'u32[72,128]{1,0:T(1,128)}', space=vmem, size = 0x9000, scoped, tag = 'internal scratch']
  %s0 = inlined_call_operand.vmem [shape: f32[128,32], index: 0, kind: input, shape index: {}]
  %s1 = inlined_call_operand.vmem [shape: f32[1,32], index: 1, kind: input, shape index: {}]
  %s2 = inlined_call_operand.vmem [shape: f32[1,32], index: 2, kind: input, shape index: {}]
  %s3 = inlined_call_operand.vmem [shape: f32[128,32], index: 3, kind: output, shape index: {}]
  %s4 = sld [smem:[#allocation0]]
  $region22: #{generator_forward.14} parent=0
    _
  %s6 = ssub.s32 1, %s4
  %s7 = scalar_select 0, %s6, %s4
  // Predicated region
  $region2: #{generator_forward.14} parent=0 // pred_check
    _
  $region3: #{generator_forward.14} parent=0 // pred_check_branch
    %9 = sbr.rel (0) target = $region5
  $region4: #{generator_forward.14} parent=0 // pred_region
    _
  $region5: #{generator_forward.14} parent=0 // pred_fallthru
    _
  // Predicated region
  $region6: #{generator_forward.14} parent=0 // pred_check
    _
  $region7: #{generator_forward.14} parent=0 // pred_check_branch
    %11 = sbr.rel (0) target = $region9
  $region8: #{generator_forward.14} parent=0 // pred_region
    _
  $region9: #{generator_forward.14} parent=0 // pred_fallthru
    _
  // Predicated region
  $region10: #{generator_forward.14} parent=0 // pred_check
    _
  $region11: #{generator_forward.14} parent=0 // pred_check_branch
    %13 = sbr.rel (0) target = $region13
  $region12: #{generator_forward.14} parent=0 // pred_region
    _
  $region13: #{generator_forward.14} parent=0 // pred_fallthru
    _
  %v14 = vld [vmem:[%s0] sm:$0xff]
  %v15 = vld [vmem:[%s0 + $0x8] sm:$0xff]
  %v16 = vld [vmem:[%s0 + $0x10] sm:$0xff]
  %v17 = vld [vmem:[%s0 + $0x18] sm:$0xff]
  %v18 = vld [vmem:[%s0 + $0x20] sm:$0xff]
  %v19 = vld [vmem:[%s0 + $0x28] sm:$0xff]
  %v20 = vld [vmem:[%s0 + $0x30] sm:$0xff]
  %v21 = vld [vmem:[%s0 + $0x38] sm:$0xff]
  %v22 = vld [vmem:[%s0 + $0x40] sm:$0xff]
  %v23 = vld [vmem:[%s0 + $0x48] sm:$0xff]
  %v24 = vld [vmem:[%s0 + $0x50] sm:$0xff]
  %v25 = vld [vmem:[%s0 + $0x58] sm:$0xff]
  %v26 = vld [vmem:[%s0 + $0x60] sm:$0xff]
  %v27 = vld [vmem:[%s0 + $0x68] sm:$0xff]
  %v28 = vld [vmem:[%s0 + $0x70] sm:$0xff]
  %v29 = vld [vmem:[%s0 + $0x78] sm:$0xff]
  %v30 = vld [vmem:[%s1] sm:$0x1]
  %v32 = vperm.slane %v30, 0
  %v34 = vmul.f32 %v14, %v32
  %v35 = vmul.f32 %v15, %v32
  %v36 = vmul.f32 %v16, %v32
  %v37 = vmul.f32 %v17, %v32
  %v38 = vmul.f32 %v18, %v32
  %v39 = vmul.f32 %v19, %v32
  %v40 = vmul.f32 %v20, %v32
  %v41 = vmul.f32 %v21, %v32
  %v42 = vmul.f32 %v22, %v32
  %v43 = vmul.f32 %v23, %v32
  %v44 = vmul.f32 %v24, %v32
  %v45 = vmul.f32 %v25, %v32
  %v46 = vmul.f32 %v26, %v32
  %v47 = vmul.f32 %v27, %v32
  %v48 = vmul.f32 %v28, %v32
  %v49 = vmul.f32 %v29, %v32
  %v50 = vld [vmem:[%s2] sm:$0x1]
  %v52 = vperm.slane %v50, 0
  %v54 = vadd.f32 %v34, %v52
  %v55 = vadd.f32 %v35, %v52
  %v56 = vadd.f32 %v36, %v52
  %v57 = vadd.f32 %v37, %v52
  %v58 = vadd.f32 %v38, %v52
  %v59 = vadd.f32 %v39, %v52
  %v60 = vadd.f32 %v40, %v52
  %v61 = vadd.f32 %v41, %v52
  %v62 = vadd.f32 %v42, %v52
  %v63 = vadd.f32 %v43, %v52
  %v64 = vadd.f32 %v44, %v52
  %v65 = vadd.f32 %v45, %v52
  %v66 = vadd.f32 %v46, %v52
  %v67 = vadd.f32 %v47, %v52
  %v68 = vadd.f32 %v48, %v52
  %v69 = vadd.f32 %v49, %v52
  %v70 = vmax.f32 %v54, 0.0
  %v71 = vmax.f32 %v55, 0.0
  %v72 = vmax.f32 %v56, 0.0
  %v73 = vmax.f32 %v57, 0.0
  %v74 = vmax.f32 %v58, 0.0
  %v75 = vmax.f32 %v59, 0.0
  %v76 = vmax.f32 %v60, 0.0
  %v77 = vmax.f32 %v61, 0.0
  %v78 = vmax.f32 %v62, 0.0
  %v79 = vmax.f32 %v63, 0.0
  %v80 = vmax.f32 %v64, 0.0
  %v81 = vmax.f32 %v65, 0.0
  %v82 = vmax.f32 %v66, 0.0
  %v83 = vmax.f32 %v67, 0.0
  %v84 = vmax.f32 %v68, 0.0
  %v85 = vmax.f32 %v69, 0.0
  %vm86 = vcmask 261120
  %87 = vst.msk [vmem:[%s3] sm:$0xff] %vm86, %v70
  %88 = vst.msk [vmem:[%s3 + $0x8] sm:$0xff] %vm86, %v71
  %89 = vst.msk [vmem:[%s3 + $0x10] sm:$0xff] %vm86, %v72
  %90 = vst.msk [vmem:[%s3 + $0x18] sm:$0xff] %vm86, %v73
  %91 = vst.msk [vmem:[%s3 + $0x20] sm:$0xff] %vm86, %v74
  %92 = vst.msk [vmem:[%s3 + $0x28] sm:$0xff] %vm86, %v75
  %93 = vst.msk [vmem:[%s3 + $0x30] sm:$0xff] %vm86, %v76
  %94 = vst.msk [vmem:[%s3 + $0x38] sm:$0xff] %vm86, %v77
  %95 = vst.msk [vmem:[%s3 + $0x40] sm:$0xff] %vm86, %v78
  %96 = vst.msk [vmem:[%s3 + $0x48] sm:$0xff] %vm86, %v79
  %97 = vst.msk [vmem:[%s3 + $0x50] sm:$0xff] %vm86, %v80
  %98 = vst.msk [vmem:[%s3 + $0x58] sm:$0xff] %vm86, %v81
  %99 = vst.msk [vmem:[%s3 + $0x60] sm:$0xff] %vm86, %v82
  %100 = vst.msk [vmem:[%s3 + $0x68] sm:$0xff] %vm86, %v83
  %101 = vst.msk [vmem:[%s3 + $0x70] sm:$0xff] %vm86, %v84
  %102 = vst.msk [vmem:[%s3 + $0x78] sm:$0xff] %vm86, %v85
  // Predicated region
  $region14: #{generator_forward.14} parent=0 // pred_check
    _
  $region15: #{generator_forward.14} parent=0 // pred_check_branch
    %104 = sbr.rel (0) target = $region17
  $region16: #{generator_forward.14} parent=0 // pred_region
    _
  $region17: #{generator_forward.14} parent=0 // pred_fallthru
    _
  // Predicated region
  $region18: #{generator_forward.14} parent=0 // pred_check
    _
  $region19: #{generator_forward.14} parent=0 // pred_check_branch
    %106 = sbr.rel (0) target = $region21
  $region20: #{generator_forward.14} parent=0 // pred_region
    _
  $region21: #{generator_forward.14} parent=0 // pred_fallthru
    _

// kernel: generator_forward.13
$region0: #{generator_forward.13}
  #allocation0 [shape = 'u32[]', space=smem, size = 0x4, offset = 0x4, fixed_abs, tag = 'smem constant byte address 0x4 - core index']
  #allocation1 [shape = 'u32[72,128]{1,0:T(1,128)}', space=vmem, size = 0x9000, scoped, tag = 'internal scratch']
  %s0 = inlined_call_operand.vmem [shape: f32[128,32], index: 0, kind: input, shape index: {}]
  %s1 = inlined_call_operand.vmem [shape: f32[2,32], index: 1, kind: output, shape index: {}]
  %s2 = sld [smem:[#allocation0]]
  $region18: #{generator_forward.13} parent=0
    _
  %s4 = ssub.s32 1, %s2
  %s5 = scalar_select 0, %s4, %s2
  // Predicated region
  $region2: #{generator_forward.13} parent=0 // pred_check
    _
  $region3: #{generator_forward.13} parent=0 // pred_check_branch
    %7 = sbr.rel (0) target = $region5
  $region4: #{generator_forward.13} parent=0 // pred_region
    _
  $region5: #{generator_forward.13} parent=0 // pred_fallthru
    _
  %p8 = scmp.eq.s32.totalorder 0, 0
  // Predicated region
  $region6: #{generator_forward.13} parent=0 // pred_check
    %p9 = pneg %p8
  $region7: #{generator_forward.13} parent=0 // pred_check_branch
    %11 = sbr.rel (%p9) target = $region9
  $region8: #{generator_forward.13} parent=0 // pred_region
    %vm12 = vcmask 254976
    %13 = vst.msk [vmem:[%s1] sm:$0x3] %vm12, 0.0
  $region9: #{generator_forward.13} parent=0 // pred_fallthru
    _
  %v14 = vld [vmem:[%s0] sm:$0xff]
  %v15 = vld [vmem:[%s0 + $0x8] sm:$0xff]
  %v16 = vld [vmem:[%s0 + $0x10] sm:$0xff]
  %v17 = vld [vmem:[%s0 + $0x18] sm:$0xff]
  %v18 = vld [vmem:[%s0 + $0x20] sm:$0xff]
  %v19 = vld [vmem:[%s0 + $0x28] sm:$0xff]
  %v20 = vld [vmem:[%s0 + $0x30] sm:$0xff]
  %v21 = vld [vmem:[%s0 + $0x38] sm:$0xff]
  %v22 = vld [vmem:[%s0 + $0x40] sm:$0xff]
  %v23 = vld [vmem:[%s0 + $0x48] sm:$0xff]
  %v24 = vld [vmem:[%s0 + $0x50] sm:$0xff]
  %v25 = vld [vmem:[%s0 + $0x58] sm:$0xff]
  %v26 = vld [vmem:[%s0 + $0x60] sm:$0xff]
  %v27 = vld [vmem:[%s0 + $0x68] sm:$0xff]
  %v28 = vld [vmem:[%s0 + $0x70] sm:$0xff]
  %v29 = vld [vmem:[%s0 + $0x78] sm:$0xff]
  %vm30 = vcmask 261120
  %v31 = vsel %vm30, %v14, 0.0
  %v32 = vsel %vm30, %v15, 0.0
  %v33 = vadd.f32 %v31, %v32
  %v34 = vsel %vm30, %v16, 0.0
  %v35 = vadd.f32 %v33, %v34
  %v36 = vsel %vm30, %v17, 0.0
  %v37 = vadd.f32 %v35, %v36
  %v38 = vsel %vm30, %v18, 0.0
  %v39 = vadd.f32 %v37, %v38
  %v40 = vsel %vm30, %v19, 0.0
  %v41 = vadd.f32 %v39, %v40
  %v42 = vsel %vm30, %v20, 0.0
  %v43 = vadd.f32 %v41, %v42
  %v44 = vsel %vm30, %v21, 0.0
  %v45 = vadd.f32 %v43, %v44
  %v46 = vsel %vm30, %v22, 0.0
  %v47 = vadd.f32 %v45, %v46
  %v48 = vsel %vm30, %v23, 0.0
  %v49 = vadd.f32 %v47, %v48
  %v50 = vsel %vm30, %v24, 0.0
  %v51 = vadd.f32 %v49, %v50
  %v52 = vsel %vm30, %v25, 0.0
  %v53 = vadd.f32 %v51, %v52
  %v54 = vsel %vm30, %v26, 0.0
  %v55 = vadd.f32 %v53, %v54
  %v56 = vsel %vm30, %v27, 0.0
  %v57 = vadd.f32 %v55, %v56
  %v58 = vsel %vm30, %v28, 0.0
  %v59 = vadd.f32 %v57, %v58
  %v60 = vsel %vm30, %v29, 0.0
  %v61 = vadd.f32 %v59, %v60
  %v62 = vrot.slane %v61, 4
  %v63 = vadd.f32 %v61, %v62
  %v64 = vrot.slane %v63, 2
  %v65 = vadd.f32 %v63, %v64
  %v66 = vrot.slane %v65, 1
  %v67 = vadd.f32 %v65, %v66
  %v68 = vmul.f32 %v14, %v14
  %v69 = vmul.f32 %v15, %v15
  %v70 = vmul.f32 %v16, %v16
  %v71 = vmul.f32 %v17, %v17
  %v72 = vmul.f32 %v18, %v18
  %v73 = vmul.f32 %v19, %v19
  %v74 = vmul.f32 %v20, %v20
  %v75 = vmul.f32 %v21, %v21
  %v76 = vmul.f32 %v22, %v22
  %v77 = vmul.f32 %v23, %v23
  %v78 = vmul.f32 %v24, %v24
  %v79 = vmul.f32 %v25, %v25
  %v80 = vmul.f32 %v26, %v26
  %v81 = vmul.f32 %v27, %v27
  %v82 = vmul.f32 %v28, %v28
  %v83 = vmul.f32 %v29, %v29
  %v84 = vsel %vm30, %v68, 0.0
  %v85 = vsel %vm30, %v69, 0.0
  %v86 = vadd.f32 %v84, %v85
  %v87 = vsel %vm30, %v70, 0.0
  %v88 = vadd.f32 %v86, %v87
  %v89 = vsel %vm30, %v71, 0.0
  %v90 = vadd.f32 %v88, %v89
  %v91 = vsel %vm30, %v72, 0.0
  %v92 = vadd.f32 %v90, %v91
  %v93 = vsel %vm30, %v73, 0.0
  %v94 = vadd.f32 %v92, %v93
  %v95 = vsel %vm30, %v74, 0.0
  %v96 = vadd.f32 %v94, %v95
  %v97 = vsel %vm30, %v75, 0.0
  %v98 = vadd.f32 %v96, %v97
  %v99 = vsel %vm30, %v76, 0.0
  %v100 = vadd.f32 %v98, %v99
  %v101 = vsel %vm30, %v77, 0.0
  %v102 = vadd.f32 %v100, %v101
  %v103 = vsel %vm30, %v78, 0.0
  %v104 = vadd.f32 %v102, %v103
  %v105 = vsel %vm30, %v79, 0.0
  %v106 = vadd.f32 %v104, %v105
  %v107 = vsel %vm30, %v80, 0.0
  %v108 = vadd.f32 %v106, %v107
  %v109 = vsel %vm30, %v81, 0.0
  %v110 = vadd.f32 %v108, %v109
  %v111 = vsel %vm30, %v82, 0.0
  %v112 = vadd.f32 %v110, %v111
  %v113 = vsel %vm30, %v83, 0.0
  %v114 = vadd.f32 %v112, %v113
  %v115 = vrot.slane %v114, 4
  %v116 = vadd.f32 %v114, %v115
  %v117 = vrot.slane %v116, 2
  %v118 = vadd.f32 %v116, %v117
  %v119 = vrot.slane %v118, 1
  %v120 = vadd.f32 %v118, %v119
  %v121 = vld [vmem:[%s1] sm:$0x3]
  %vm122 = vcmask 1040384
  %v123 = vsel %vm122, %v67, %v120
  %v124 = vadd.f32 %v121, %v123
  %vm125 = vcmask 254976
  %126 = vst.msk [vmem:[%s1] sm:$0x3] %vm125, %v124
  // Predicated region
  $region10: #{generator_forward.13} parent=0 // pred_check
    _
  $region11: #{generator_forward.13} parent=0 // pred_check_branch
    %128 = sbr.rel (0) target = $region13
  $region12: #{generator_forward.13} parent=0 // pred_region
    _
  $region13: #{generator_forward.13} parent=0 // pred_fallthru
    _
  // Predicated region
  $region14: #{generator_forward.13} parent=0 // pred_check
    _
  $region15: #{generator_forward.13} parent=0 // pred_check_branch
    %130 = sbr.rel (0) target = $region17
  $region16: #{generator_forward.13} parent=0 // pred_region
    _
  $region17: #{generator_forward.13} parent=0 // pred_fallthru
    _

// kernel: generator_forward.11
$region0: #{generator_forward.11}
  #allocation0 [shape = 'u32[]', space=smem, size = 0x4, offset = 0x4, fixed_abs, tag = 'smem constant byte address 0x4 - core index']
  #allocation1 [shape = 'u32[72,128]{1,0:T(1,128)}', space=vmem, size = 0x9000, scoped, tag = 'internal scratch']
  #allocation2 [shape = 'f32[32,128]{1,0:T(8,128)}', space=vmem, size = 0x4000, scoped, tag = 'scratch operand']
  %s0 = inlined_call_operand.vmem [shape: bf16[1,32,128], index: 0, kind: input, shape index: {}]
  %s1 = inlined_call_operand.vmem [shape: bf16[1,128,128], index: 1, kind: input, shape index: {}]
  %s2 = inlined_call_operand.vmem [shape: f32[1,32,128], index: 2, kind: output, shape index: {}]
  %s3 = sld [smem:[#allocation0]]
  $region26: #{generator_forward.11} parent=0
    _
  %s5 = ssub.s32 1, %s3
  %s6 = scalar_select 0, %s5, %s3
  // Predicated region
  $region2: #{generator_forward.11} parent=0 // pred_check
    _
  $region3: #{generator_forward.11} parent=0 // pred_check_branch
    %8 = sbr.rel (0) target = $region5
  $region4: #{generator_forward.11} parent=0 // pred_region
    _
  $region5: #{generator_forward.11} parent=0 // pred_fallthru
    _
  // Predicated region
  $region6: #{generator_forward.11} parent=0 // pred_check
    _
  $region7: #{generator_forward.11} parent=0 // pred_check_branch
    %10 = sbr.rel (0) target = $region9
  $region8: #{generator_forward.11} parent=0 // pred_region
    _
  $region9: #{generator_forward.11} parent=0 // pred_fallthru
    _
  %p11 = scmp.eq.s32.totalorder 0, 0
  // Predicated region
  $region10: #{generator_forward.11} parent=0 // pred_check
    %p12 = pneg %p11
  $region11: #{generator_forward.11} parent=0 // pred_check_branch
    %14 = sbr.rel (%p12) target = $region13
  $region12: #{generator_forward.11} parent=0 // pred_region
    %15 = vst [vmem:[#allocation2] sm:$0xff] 0.0
    %16 = vst [vmem:[#allocation2 + $0x8] sm:$0xff] 0.0
    %17 = vst [vmem:[#allocation2 + $0x10] sm:$0xff] 0.0
    %18 = vst [vmem:[#allocation2 + $0x18] sm:$0xff] 0.0
  $region13: #{generator_forward.11} parent=0 // pred_fallthru
    _
  %v19 = vld [vmem:[#allocation2] sm:$0xff]
  %v20 = vld [vmem:[#allocation2 + $0x8] sm:$0xff]
  %v21 = vld [vmem:[#allocation2 + $0x10] sm:$0xff]
  %v22 = vld [vmem:[#allocation2 + $0x18] sm:$0xff]
  %v23 = vld [vmem:[%s0] sm:$0xf]
  %v24 = vld [vmem:[%s0 + $0x4] sm:$0xf]
  %v25 = vld [vmem:[%s0 + $0x8] sm:$0xf]
  %v26 = vld [vmem:[%s0 + $0xc] sm:$0xf]
  %v27 = vld [vmem:[%s1] sm:$0xf]
  %v28 = vld [vmem:[%s1 + $0x4] sm:$0xf]
  %v29 = vld [vmem:[%s1 + $0x8] sm:$0xf]
  %v30 = vld [vmem:[%s1 + $0xc] sm:$0xf]
  %v31 = vld [vmem:[%s1 + $0x10] sm:$0xf]
  %v32 = vld [vmem:[%s1 + $0x14] sm:$0xf]
  %v33 = vld [vmem:[%s1 + $0x18] sm:$0xf]
  %v34 = vld [vmem:[%s1 + $0x1c] sm:$0xf]
  %v35 = vld [vmem:[%s1 + $0x20] sm:$0xf]
  %v36 = vld [vmem:[%s1 + $0x24] sm:$0xf]
  %v37 = vld [vmem:[%s1 + $0x28] sm:$0xf]
  %v38 = vld [vmem:[%s1 + $0x2c] sm:$0xf]
  %v39 = vld [vmem:[%s1 + $0x30] sm:$0xf]
  %v40 = vld [vmem:[%s1 + $0x34] sm:$0xf]
  %v41 = vld [vmem:[%s1 + $0x38] sm:$0xf]
  %v42 = vld [vmem:[%s1 + $0x3c] sm:$0xf]
  %v47 = vunpack.c.l.b16 %v23
  %v48 = vunpack.c.l.b16 %v24
  %v49 = vunpack.c.l.b16 %v25
  %v50 = vunpack.c.l.b16 %v26
  %v51 = vpack.c.b16 %v48, %v47
  %v52 = vpack.c.b16 %v50, %v49
  %v71 = vunpack.c.l.b16 %v27
  %v72 = vunpack.c.l.b16 %v28
  %v73 = vunpack.c.l.b16 %v29
  %v74 = vunpack.c.l.b16 %v30
  %v75 = vunpack.c.l.b16 %v31
  %v76 = vunpack.c.l.b16 %v32
  %v77 = vunpack.c.l.b16 %v33
  %v78 = vunpack.c.l.b16 %v34
  %v79 = vunpack.c.l.b16 %v35
  %v80 = vunpack.c.l.b16 %v36
  %v81 = vunpack.c.l.b16 %v37
  %v82 = vunpack.c.l.b16 %v38
  %v83 = vunpack.c.l.b16 %v39
  %v84 = vunpack.c.l.b16 %v40
  %v85 = vunpack.c.l.b16 %v41
  %v86 = vunpack.c.l.b16 %v42
  %v87 = vpack.c.b16 %v72, %v71
  %v88 = vpack.c.b16 %v74, %v73
  %v89 = vpack.c.b16 %v76, %v75
  %v90 = vpack.c.b16 %v78, %v77
  %v91 = vpack.c.b16 %v80, %v79
  %v92 = vpack.c.b16 %v82, %v81
  %v93 = vpack.c.b16 %v84, %v83
  %v94 = vpack.c.b16 %v86, %v85
  %103 = vmatpush.bf16.msra.mxu0 %v94
  %104 = vmatpush.bf16.msra.mxu0 %v93
  %105 = vmatpush.bf16.msra.mxu0 %v92
  %106 = vmatpush.bf16.msra.mxu0 %v91
  %107 = vmatpush.bf16.msra.mxu0 %v90
  %108 = vmatpush.bf16.msra.mxu0 %v89
  %109 = vmatpush.bf16.msra.mxu0 %v88
  %110 = vmatpush.bf16.msra.mxu0 %v87
  %111 = vmatmul.bf16.gmra.mxu0 %v51
  %v112 = vpop.f32.mrf.mxu0
  %v113 = vadd.f32 0.0, %v112
  %v114 = vpop.f32.mrf.mxu0
  %v115 = vadd.f32 0.0, %v114
  %116 = vmatmul.bf16.gmra.mxu0 %v52
  %v117 = vpop.f32.mrf.mxu0
  %v118 = vadd.f32 0.0, %v117
  %v119 = vpop.f32.mrf.mxu0
  %v120 = vadd.f32 0.0, %v119
  %121 = vdwg.mxu0
  %v122 = vadd.f32 %v19, %v113
  %v123 = vadd.f32 %v20, %v115
  %v124 = vadd.f32 %v21, %v118
  %v125 = vadd.f32 %v22, %v120
  %126 = vst [vmem:[#allocation2] sm:$0xff] %v122
  %127 = vst [vmem:[#allocation2 + $0x8] sm:$0xff] %v123
  %128 = vst [vmem:[#allocation2 + $0x10] sm:$0xff] %v124
  %129 = vst [vmem:[#allocation2 + $0x18] sm:$0xff] %v125
  // Predicated region
  $region14: #{generator_forward.11} parent=0 // pred_check
    %p130 = pneg %p11
  $region15: #{generator_forward.11} parent=0 // pred_check_branch
    %132 = sbr.rel (%p130) target = $region17
  $region16: #{generator_forward.11} parent=0 // pred_region
    %v133 = vld [vmem:[#allocation2] sm:$0xff]
    %v134 = vld [vmem:[#allocation2 + $0x8] sm:$0xff]
    %v135 = vld [vmem:[#allocation2 + $0x10] sm:$0xff]
    %v136 = vld [vmem:[#allocation2 + $0x18] sm:$0xff]
    %v137 = vtanh.pop %v133
    %v138 = vtanh.pop %v134
    %v139 = vtanh.pop %v135
    %v140 = vtanh.pop %v136
    %141 = vst [vmem:[%s2] sm:$0xff] %v137
    %142 = vst [vmem:[%s2 + $0x8] sm:$0xff] %v138
    %143 = vst [vmem:[%s2 + $0x10] sm:$0xff] %v139
    %144 = vst [vmem:[%s2 + $0x18] sm:$0xff] %v140
  $region17: #{generator_forward.11} parent=0 // pred_fallthru
    _
  // Predicated region
  $region18: #{generator_forward.11} parent=0 // pred_check
    _
  $region19: #{generator_forward.11} parent=0 // pred_check_branch
    %146 = sbr.rel (0) target = $region21
  $region20: #{generator_forward.11} parent=0 // pred_region
    _
  $region21: #{generator_forward.11} parent=0 // pred_fallthru
    _
  // Predicated region
  $region22: #{generator_forward.11} parent=0 // pred_check
    _
  $region23: #{generator_forward.11} parent=0 // pred_check_branch
    %148 = sbr.rel (0) target = $region25
  $region24: #{generator_forward.11} parent=0 // pred_region
    _
  $region25: #{generator_forward.11} parent=0 // pred_fallthru
    _

// kernel: generator_forward.15
$region0: #{generator_forward.15}
  #allocation0 [shape = 'u32[]', space=smem, size = 0x4, offset = 0x4, fixed_abs, tag = 'smem constant byte address 0x4 - core index']
  #allocation1 [shape = 'u32[72,128]{1,0:T(1,128)}', space=vmem, size = 0x9000, scoped, tag = 'internal scratch']
  #allocation2 [shape = 'f32[128,128]{1,0:T(8,128)}', space=vmem, size = 0x10000, scoped, tag = 'scratch operand']
  #allocation3 [shape = 'f32[1]{0:T(128)S(6)}', space=smem, size = 0x200, scoped, tag = 'scoped memory for generator_forward.15']
  %s0 = inlined_call_operand.<no memory space> [shape: f32[1], index: 0, kind: input, shape index: {}]
  %s1 = inlined_call_operand.vmem [shape: bf16[1,128,128], index: 1, kind: input, shape index: {}]
  %s2 = inlined_call_operand.vmem [shape: bf16[1,128,128], index: 2, kind: input, shape index: {}]
  %s3 = inlined_call_operand.vmem [shape: f32[1,128,128], index: 3, kind: input, shape index: {}]
  %s4 = inlined_call_operand.vmem [shape: f32[1,128,128], index: 4, kind: output, shape index: {}]
  %s5 = sld [smem:[#allocation0]]
  $region34: #{generator_forward.15} parent=0
    _
  %s7 = ssub.s32 1, %s5
  %s8 = scalar_select 0, %s7, %s5
  %9 = sst [smem:[#allocation3]] %s0
  // Predicated region
  $region2: #{generator_forward.15} parent=0 // pred_check
    _
  $region3: #{generator_forward.15} parent=0 // pred_check_branch
    %11 = sbr.rel (0) target = $region5
  $region4: #{generator_forward.15} parent=0 // pred_region
    _
  $region5: #{generator_forward.15} parent=0 // pred_fallthru
    _
  // Predicated region
  $region6: #{generator_forward.15} parent=0 // pred_check
    _
  $region7: #{generator_forward.15} parent=0 // pred_check_branch
    %13 = sbr.rel (0) target = $region9
  $region8: #{generator_forward.15} parent=0 // pred_region
    _
  $region9: #{generator_forward.15} parent=0 // pred_fallthru
    _
  // Predicated region
  $region10: #{generator_forward.15} parent=0 // pred_check
    _
  $region11: #{generator_forward.15} parent=0 // pred_check_branch
    %15 = sbr.rel (0) target = $region13
  $region12: #{generator_forward.15} parent=0 // pred_region
    _
  $region13: #{generator_forward.15} parent=0 // pred_fallthru
    _
  // Predicated region
  $region14: #{generator_forward.15} parent=0 // pred_check
    _
  $region15: #{generator_forward.15} parent=0 // pred_check_branch
    %17 = sbr.rel (0) target = $region17
  $region16: #{generator_forward.15} parent=0 // pred_region
    _
  $region17: #{generator_forward.15} parent=0 // pred_fallthru
    _
  %p18 = scmp.eq.s32.totalorder 0, 0
  // Predicated region
  $region18: #{generator_forward.15} parent=0 // pred_check
    %p19 = pneg %p18
  $region19: #{generator_forward.15} parent=0 // pred_check_branch
    %21 = sbr.rel (%p19) target = $region21
  $region20: #{generator_forward.15} parent=0 // pred_region
    %22 = vst [vmem:[#allocation2] sm:$0xff] 0.0
    %23 = vst [vmem:[#allocation2 + $0x8] sm:$0xff] 0.0
    %24 = vst [vmem:[#allocation2 + $0x10] sm:$0xff] 0.0
    %25 = vst [vmem:[#allocation2 + $0x18] sm:$0xff] 0.0
    %26 = vst [vmem:[#allocation2 + $0x20] sm:$0xff] 0.0
    %27 = vst [vmem:[#allocation2 + $0x28] sm:$0xff] 0.0
    %28 = vst [vmem:[#allocation2 + $0x30] sm:$0xff] 0.0
    %29 = vst [vmem:[#allocation2 + $0x38] sm:$0xff] 0.0
    %30 = vst [vmem:[#allocation2 + $0x40] sm:$0xff] 0.0
    %31 = vst [vmem:[#allocation2 + $0x48] sm:$0xff] 0.0
    %32 = vst [vmem:[#allocation2 + $0x50] sm:$0xff] 0.0
    %33 = vst [vmem:[#allocation2 + $0x58] sm:$0xff] 0.0
    %34 = vst [vmem:[#allocation2 + $0x60] sm:$0xff] 0.0
    %35 = vst [vmem:[#allocation2 + $0x68] sm:$0xff] 0.0
    %36 = vst [vmem:[#allocation2 + $0x70] sm:$0xff] 0.0
    %37 = vst [vmem:[#allocation2 + $0x78] sm:$0xff] 0.0
  $region21: #{generator_forward.15} parent=0 // pred_fallthru
    _
  %v38 = vld [vmem:[#allocation2] sm:$0xff]
  %v39 = vld [vmem:[#allocation2 + $0x8] sm:$0xff]
  %v40 = vld [vmem:[#allocation2 + $0x10] sm:$0xff]
  %v41 = vld [vmem:[#allocation2 + $0x18] sm:$0xff]
  %v42 = vld [vmem:[#allocation2 + $0x20] sm:$0xff]
  %v43 = vld [vmem:[#allocation2 + $0x28] sm:$0xff]
  %v44 = vld [vmem:[#allocation2 + $0x30] sm:$0xff]
  %v45 = vld [vmem:[#allocation2 + $0x38] sm:$0xff]
  %v46 = vld [vmem:[#allocation2 + $0x40] sm:$0xff]
  %v47 = vld [vmem:[#allocation2 + $0x48] sm:$0xff]
  %v48 = vld [vmem:[#allocation2 + $0x50] sm:$0xff]
  %v49 = vld [vmem:[#allocation2 + $0x58] sm:$0xff]
  %v50 = vld [vmem:[#allocation2 + $0x60] sm:$0xff]
  %v51 = vld [vmem:[#allocation2 + $0x68] sm:$0xff]
  %v52 = vld [vmem:[#allocation2 + $0x70] sm:$0xff]
  %v53 = vld [vmem:[#allocation2 + $0x78] sm:$0xff]
  %v54 = vld [vmem:[%s1] sm:$0xf]
  %v55 = vld [vmem:[%s1 + $0x4] sm:$0xf]
  %v56 = vld [vmem:[%s1 + $0x8] sm:$0xf]
  %v57 = vld [vmem:[%s1 + $0xc] sm:$0xf]
  %v58 = vld [vmem:[%s1 + $0x10] sm:$0xf]
  %v59 = vld [vmem:[%s1 + $0x14] sm:$0xf]
  %v60 = vld [vmem:[%s1 + $0x18] sm:$0xf]
  %v61 = vld [vmem:[%s1 + $0x1c] sm:$0xf]
  %v62 = vld [vmem:[%s1 + $0x20] sm:$0xf]
  %v63 = vld [vmem:[%s1 + $0x24] sm:$0xf]
  %v64 = vld [vmem:[%s1 + $0x28] sm:$0xf]
  %v65 = vld [vmem:[%s1 + $0x2c] sm:$0xf]
  %v66 = vld [vmem:[%s1 + $0x30] sm:$0xf]
  %v67 = vld [vmem:[%s1 + $0x34] sm:$0xf]
  %v68 = vld [vmem:[%s1 + $0x38] sm:$0xf]
  %v69 = vld [vmem:[%s1 + $0x3c] sm:$0xf]
  %v70 = vld [vmem:[%s2] sm:$0xf]
  %v71 = vld [vmem:[%s2 + $0x4] sm:$0xf]
  %v72 = vld [vmem:[%s2 + $0x8] sm:$0xf]
  %v73 = vld [vmem:[%s2 + $0xc] sm:$0xf]
  %v74 = vld [vmem:[%s2 + $0x10] sm:$0xf]
  %v75 = vld [vmem:[%s2 + $0x14] sm:$0xf]
  %v76 = vld [vmem:[%s2 + $0x18] sm:$0xf]
  %v77 = vld [vmem:[%s2 + $0x1c] sm:$0xf]
  %v78 = vld [vmem:[%s2 + $0x20] sm:$0xf]
  %v79 = vld [vmem:[%s2 + $0x24] sm:$0xf]
  %v80 = vld [vmem:[%s2 + $0x28] sm:$0xf]
  %v81 = vld [vmem:[%s2 + $0x2c] sm:$0xf]
  %v82 = vld [vmem:[%s2 + $0x30] sm:$0xf]
  %v83 = vld [vmem:[%s2 + $0x34] sm:$0xf]
  %v84 = vld [vmem:[%s2 + $0x38] sm:$0xf]
  %v85 = vld [vmem:[%s2 + $0x3c] sm:$0xf]
  %v102 = vunpack.c.l.b16 %v54
  %v103 = vunpack.c.l.b16 %v55
  %v104 = vunpack.c.l.b16 %v56
  %v105 = vunpack.c.l.b16 %v57
  %v106 = vunpack.c.l.b16 %v58
  %v107 = vunpack.c.l.b16 %v59
  %v108 = vunpack.c.l.b16 %v60
  %v109 = vunpack.c.l.b16 %v61
  %v110 = vunpack.c.l.b16 %v62
  %v111 = vunpack.c.l.b16 %v63
  %v112 = vunpack.c.l.b16 %v64
  %v113 = vunpack.c.l.b16 %v65
  %v114 = vunpack.c.l.b16 %v66
  %v115 = vunpack.c.l.b16 %v67
  %v116 = vunpack.c.l.b16 %v68
  %v117 = vunpack.c.l.b16 %v69
  %v118 = vpack.c.b16 %v103, %v102
  %v119 = vpack.c.b16 %v105, %v104
  %v120 = vpack.c.b16 %v107, %v106
  %v121 = vpack.c.b16 %v109, %v108
  %v122 = vpack.c.b16 %v111, %v110
  %v123 = vpack.c.b16 %v113, %v112
  %v124 = vpack.c.b16 %v115, %v114
  %v125 = vpack.c.b16 %v117, %v116
  %v150 = vunpack.c.l.b16 %v70
  %v151 = vunpack.c.l.b16 %v71
  %v152 = vunpack.c.l.b16 %v72
  %v153 = vunpack.c.l.b16 %v73
  %v154 = vunpack.c.l.b16 %v74
  %v155 = vunpack.c.l.b16 %v75
  %v156 = vunpack.c.l.b16 %v76
  %v157 = vunpack.c.l.b16 %v77
  %v158 = vunpack.c.l.b16 %v78
  %v159 = vunpack.c.l.b16 %v79
  %v160 = vunpack.c.l.b16 %v80
  %v161 = vunpack.c.l.b16 %v81
  %v162 = vunpack.c.l.b16 %v82
  %v163 = vunpack.c.l.b16 %v83
  %v164 = vunpack.c.l.b16 %v84
  %v165 = vunpack.c.l.b16 %v85
  %v166 = vpack.c.b16 %v151, %v150
  %v167 = vpack.c.b16 %v153, %v152
  %v168 = vpack.c.b16 %v155, %v154
  %v169 = vpack.c.b16 %v157, %v156
  %v170 = vpack.c.b16 %v159, %v158
  %v171 = vpack.c.b16 %v161, %v160
  %v172 = vpack.c.b16 %v163, %v162
  %v173 = vpack.c.b16 %v165, %v164
  %182 = vmatpush.bf16.msra.mxu0 %v173
  %183 = vmatpush.bf16.msra.mxu0 %v172
  %184 = vmatpush.bf16.msra.mxu0 %v171
  %185 = vmatpush.bf16.msra.mxu0 %v170
  %186 = vmatpush.bf16.msra.mxu0 %v169
  %187 = vmatpush.bf16.msra.mxu0 %v168
  %188 = vmatpush.bf16.msra.mxu0 %v167
  %189 = vmatpush.bf16.msra.mxu0 %v166
  %190 = vmatmul.bf16.gmra.mxu0 %v118
  %v191 = vpop.f32.mrf.mxu0
  %v192 = vadd.f32 0.0, %v191
  %v193 = vpop.f32.mrf.mxu0
  %v194 = vadd.f32 0.0, %v193
  %195 = vmatmul.bf16.gmra.mxu0 %v119
  %v196 = vpop.f32.mrf.mxu0
  %v197 = vadd.f32 0.0, %v196
  %v198 = vpop.f32.mrf.mxu0
  %v199 = vadd.f32 0.0, %v198
  %200 = vmatmul.bf16.gmra.mxu0 %v120
  %v201 = vpop.f32.mrf.mxu0
  %v202 = vadd.f32 0.0, %v201
  %v203 = vpop.f32.mrf.mxu0
  %v204 = vadd.f32 0.0, %v203
  %205 = vmatmul.bf16.gmra.mxu0 %v121
  %v206 = vpop.f32.mrf.mxu0
  %v207 = vadd.f32 0.0, %v206
  %v208 = vpop.f32.mrf.mxu0
  %v209 = vadd.f32 0.0, %v208
  %210 = vmatmul.bf16.gmra.mxu0 %v122
  %v211 = vpop.f32.mrf.mxu0
  %v212 = vadd.f32 0.0, %v211
  %v213 = vpop.f32.mrf.mxu0
  %v214 = vadd.f32 0.0, %v213
  %215 = vmatmul.bf16.gmra.mxu0 %v123
  %v216 = vpop.f32.mrf.mxu0
  %v217 = vadd.f32 0.0, %v216
  %v218 = vpop.f32.mrf.mxu0
  %v219 = vadd.f32 0.0, %v218
  %220 = vmatmul.bf16.gmra.mxu0 %v124
  %v221 = vpop.f32.mrf.mxu0
  %v222 = vadd.f32 0.0, %v221
  %v223 = vpop.f32.mrf.mxu0
  %v224 = vadd.f32 0.0, %v223
  %225 = vmatmul.bf16.gmra.mxu0 %v125
  %v226 = vpop.f32.mrf.mxu0
  %v227 = vadd.f32 0.0, %v226
  %v228 = vpop.f32.mrf.mxu0
  %v229 = vadd.f32 0.0, %v228
  %230 = vdwg.mxu0
  %v231 = vadd.f32 %v38, %v192
  %v232 = vadd.f32 %v39, %v194
  %v233 = vadd.f32 %v40, %v197
  %v234 = vadd.f32 %v41, %v199
  %v235 = vadd.f32 %v42, %v202
  %v236 = vadd.f32 %v43, %v204
  %v237 = vadd.f32 %v44, %v207
  %v238 = vadd.f32 %v45, %v209
  %v239 = vadd.f32 %v46, %v212
  %v240 = vadd.f32 %v47, %v214
  %v241 = vadd.f32 %v48, %v217
  %v242 = vadd.f32 %v49, %v219
  %v243 = vadd.f32 %v50, %v222
  %v244 = vadd.f32 %v51, %v224
  %v245 = vadd.f32 %v52, %v227
  %v246 = vadd.f32 %v53, %v229
  %247 = vst [vmem:[#allocation2] sm:$0xff] %v231
  %248 = vst [vmem:[#allocation2 + $0x8] sm:$0xff] %v232
  %249 = vst [vmem:[#allocation2 + $0x10] sm:$0xff] %v233
  %250 = vst [vmem:[#allocation2 + $0x18] sm:$0xff] %v234
  %251 = vst [vmem:[#allocation2 + $0x20] sm:$0xff] %v235
  %252 = vst [vmem:[#allocation2 + $0x28] sm:$0xff] %v236
  %253 = vst [vmem:[#allocation2 + $0x30] sm:$0xff] %v237
  %254 = vst [vmem:[#allocation2 + $0x38] sm:$0xff] %v238
  %255 = vst [vmem:[#allocation2 + $0x40] sm:$0xff] %v239
  %256 = vst [vmem:[#allocation2 + $0x48] sm:$0xff] %v240
  %257 = vst [vmem:[#allocation2 + $0x50] sm:$0xff] %v241
  %258 = vst [vmem:[#allocation2 + $0x58] sm:$0xff] %v242
  %259 = vst [vmem:[#allocation2 + $0x60] sm:$0xff] %v243
  %260 = vst [vmem:[#allocation2 + $0x68] sm:$0xff] %v244
  %261 = vst [vmem:[#allocation2 + $0x70] sm:$0xff] %v245
  %262 = vst [vmem:[#allocation2 + $0x78] sm:$0xff] %v246
  // Predicated region
  $region22: #{generator_forward.15} parent=0 // pred_check
    %p263 = pneg %p18
  $region23: #{generator_forward.15} parent=0 // pred_check_branch
    %265 = sbr.rel (%p263) target = $region25
  $region24: #{generator_forward.15} parent=0 // pred_region
    %s266 = sld [smem:[#allocation3]]
    %v267 = vld [vmem:[%s3] sm:$0xff]
    %v268 = vld [vmem:[%s3 + $0x8] sm:$0xff]
    %v269 = vld [vmem:[%s3 + $0x10] sm:$0xff]
    %v270 = vld [vmem:[%s3 + $0x18] sm:$0xff]
    %v271 = vld [vmem:[%s3 + $0x20] sm:$0xff]
    %v272 = vld [vmem:[%s3 + $0x28] sm:$0xff]
    %v273 = vld [vmem:[%s3 + $0x30] sm:$0xff]
    %v274 = vld [vmem:[%s3 + $0x38] sm:$0xff]
    %v275 = vld [vmem:[%s3 + $0x40] sm:$0xff]
    %v276 = vld [vmem:[%s3 + $0x48] sm:$0xff]
    %v277 = vld [vmem:[%s3 + $0x50] sm:$0xff]
    %v278 = vld [vmem:[%s3 + $0x58] sm:$0xff]
    %v279 = vld [vmem:[%s3 + $0x60] sm:$0xff]
    %v280 = vld [vmem:[%s3 + $0x68] sm:$0xff]
    %v281 = vld [vmem:[%s3 + $0x70] sm:$0xff]
    %v282 = vld [vmem:[%s3 + $0x78] sm:$0xff]
    %s283 = ssub.f32 1.0, %s266
    %v284 = vstv %s283
    %v285 = vmul.f32 %v267, %v284
    %v286 = vmul.f32 %v268, %v284
    %v287 = vmul.f32 %v269, %v284
    %v288 = vmul.f32 %v270, %v284
    %v289 = vmul.f32 %v271, %v284
    %v290 = vmul.f32 %v272, %v284
    %v291 = vmul.f32 %v273, %v284
    %v292 = vmul.f32 %v274, %v284
    %v293 = vmul.f32 %v275, %v284
    %v294 = vmul.f32 %v276, %v284
    %v295 = vmul.f32 %v277, %v284
    %v296 = vmul.f32 %v278, %v284
    %v297 = vmul.f32 %v279, %v284
    %v298 = vmul.f32 %v280, %v284
    %v299 = vmul.f32 %v281, %v284
    %v300 = vmul.f32 %v282, %v284
    %v301 = vld [vmem:[#allocation2] sm:$0xff]
    %v302 = vld [vmem:[#allocation2 + $0x8] sm:$0xff]
    %v303 = vld [vmem:[#allocation2 + $0x10] sm:$0xff]
    %v304 = vld [vmem:[#allocation2 + $0x18] sm:$0xff]
    %v305 = vld [vmem:[#allocation2 + $0x20] sm:$0xff]
    %v306 = vld [vmem:[#allocation2 + $0x28] sm:$0xff]
    %v307 = vld [vmem:[#allocation2 + $0x30] sm:$0xff]
    %v308 = vld [vmem:[#allocation2 + $0x38] sm:$0xff]
    %v309 = vld [vmem:[#allocation2 + $0x40] sm:$0xff]
    %v310 = vld [vmem:[#allocation2 + $0x48] sm:$0xff]
    %v311 = vld [vmem:[#allocation2 + $0x50] sm:$0xff]
    %v312 = vld [vmem:[#allocation2 + $0x58] sm:$0xff]
    %v313 = vld [vmem:[#allocation2 + $0x60] sm:$0xff]
    %v314 = vld [vmem:[#allocation2 + $0x68] sm:$0xff]
    %v315 = vld [vmem:[#allocation2 + $0x70] sm:$0xff]
    %v316 = vld [vmem:[#allocation2 + $0x78] sm:$0xff]
    %v317 = vtanh.pop %v301
    %v318 = vtanh.pop %v302
    %v319 = vtanh.pop %v303
    %v320 = vtanh.pop %v304
    %v321 = vtanh.pop %v305
    %v322 = vtanh.pop %v306
    %v323 = vtanh.pop %v307
    %v324 = vtanh.pop %v308
    %v325 = vtanh.pop %v309
    %v326 = vtanh.pop %v310
    %v327 = vtanh.pop %v311
    %v328 = vtanh.pop %v312
    %v329 = vtanh.pop %v313
    %v330 = vtanh.pop %v314
    %v331 = vtanh.pop %v315
    %v332 = vtanh.pop %v316
    %v333 = vstv %s266
    %v334 = vmul.f32 %v317, %v333
    %v335 = vmul.f32 %v318, %v333
    %v336 = vmul.f32 %v319, %v333
    %v337 = vmul.f32 %v320, %v333
    %v338 = vmul.f32 %v321, %v333
    %v339 = vmul.f32 %v322, %v333
    %v340 = vmul.f32 %v323, %v333
    %v341 = vmul.f32 %v324, %v333
    %v342 = vmul.f32 %v325, %v333
    %v343 = vmul.f32 %v326, %v333
    %v344 = vmul.f32 %v327, %v333
    %v345 = vmul.f32 %v328, %v333
    %v346 = vmul.f32 %v329, %v333
    %v347 = vmul.f32 %v330, %v333
    %v348 = vmul.f32 %v331, %v333
    %v349 = vmul.f32 %v332, %v333
    %v350 = vadd.f32 %v285, %v334
    %v351 = vadd.f32 %v286, %v335
    %v352 = vadd.f32 %v287, %v336
    %v353 = vadd.f32 %v288, %v337
    %v354 = vadd.f32 %v289, %v338
    %v355 = vadd.f32 %v290, %v339
    %v356 = vadd.f32 %v291, %v340
    %v357 = vadd.f32 %v292, %v341
    %v358 = vadd.f32 %v293, %v342
    %v359 = vadd.f32 %v294, %v343
    %v360 = vadd.f32 %v295, %v344
    %v361 = vadd.f32 %v296, %v345
    %v362 = vadd.f32 %v297, %v346
    %v363 = vadd.f32 %v298, %v347
    %v364 = vadd.f32 %v299, %v348
    %v365 = vadd.f32 %v300, %v349
    %366 = vst [vmem:[%s4] sm:$0xff] %v350
    %367 = vst [vmem:[%s4 + $0x8] sm:$0xff] %v351
    %368 = vst [vmem:[%s4 + $0x10] sm:$0xff] %v352
    %369 = vst [vmem:[%s4 + $0x18] sm:$0xff] %v353
    %370 = vst [vmem:[%s4 + $0x20] sm:$0xff] %v354
    %371 = vst [vmem:[%s4 + $0x28] sm:$0xff] %v355
    %372 = vst [vmem:[%s4 + $0x30] sm:$0xff] %v356
    %373 = vst [vmem:[%s4 + $0x38] sm:$0xff] %v357
    %374 = vst [vmem:[%s4 + $0x40] sm:$0xff] %v358
    %375 = vst [vmem:[%s4 + $0x48] sm:$0xff] %v359
    %376 = vst [vmem:[%s4 + $0x50] sm:$0xff] %v360
    %377 = vst [vmem:[%s4 + $0x58] sm:$0xff] %v361
    %378 = vst [vmem:[%s4 + $0x60] sm:$0xff] %v362
    %379 = vst [vmem:[%s4 + $0x68] sm:$0xff] %v363
    %380 = vst [vmem:[%s4 + $0x70] sm:$0xff] %v364
    %381 = vst [vmem:[%s4 + $0x78] sm:$0xff] %v365
  $region25: #{generator_forward.15} parent=0 // pred_fallthru
    _
  // Predicated region
  $region26: #{generator_forward.15} parent=0 // pred_check
    _
  $region27: #{generator_forward.15} parent=0 // pred_check_branch
    %383 = sbr.rel (0) target = $region29
  $region28: #{generator_forward.15} parent=0 // pred_region
    _
  $region29: #{generator_forward.15} parent=0 // pred_fallthru
    _
  // Predicated region
  $region30: #{generator_forward.15} parent=0 // pred_check
    _
  $region31: #{generator_forward.15} parent=0 // pred_check_branch
    %385 = sbr.rel (0) target = $region33
  $region32: #{generator_forward.15} parent=0 // pred_region
    _
  $region33: #{generator_forward.15} parent=0 // pred_fallthru
    _

</llo_original>
